<compile_context>
chip_gen: v5e
topology: v5e:2x2
jax: 0.10.0
libtpu: 0.0.40
codegen_flags: <defaults>
</compile_context>

<pallas_src>
import math
import numpy as np
import jax
import jax.numpy as jnp
from jax.experimental import pallas as pl
from jax.experimental.pallas import tpu as pltpu


# Row indices inside the packed (16, C) per-channel parameter block.
_LN0_G, _LN0_B, _LN1_G, _LN1_B, _LN2_G, _LN2_B = 0, 1, 2, 3, 4, 5
_AMIX_K, _AMIX_V, _AMIX_R = 6, 7, 8
_FMIX_K, _FMIX_R = 9, 10
_WNEG, _U = 11, 12
_NVEC = 16


# -----------------------------------------------------------------------------
# Pallas kernel: one batch element per grid step, everything in (T, C) layout.
# -----------------------------------------------------------------------------
def _make_block_kernel(tb, ffn_tc, approx_recip):
    """tb: timestep tile for the serial WKV/LIF loops (8 when T % 8 == 0);
    ffn_tc: row-chunk size for the FFN 4C intermediate;
    approx_recip: use the EUP approximate reciprocal in the WKV output."""

    def kernel(x_ref, vec_ref,
               wk_a_ref, wv_a_ref, wr_a_ref, wo_a_ref,
               wk_f_ref, wv_f_ref, wr_f_ref,
               out_ref,
               x1_scr, y_scr, k_scr, v_scr):
        T, C = x_ref.shape
        f32 = jnp.float32

        def vec(row):
            return vec_ref[row:row + 1, :]                            # (1, C) f32

        def layernorm(h, g_row, b_row):
            mu = jnp.mean(h, axis=-1, keepdims=True)
            var = jnp.mean(jnp.square(h - mu), axis=-1, keepdims=True)
            return (h - mu) * jax.lax.rsqrt(var + 1e-5) * vec(g_row) + vec(b_row)

        # Time-shift zero-row mask hoisted once, reused by both branches.
        row0 = jax.lax.broadcasted_iota(jnp.int32, (T, C), 0) == 0

        def time_shift(h):
            # nn.ZeroPad2d((0,0,1,-1)): hh[t] = h[t-1], hh[0] = 0.  XLU roll + select.
            return jnp.where(row0, 0.0, pltpu.roll(h, shift=1, axis=0))

        def lerp(m_row, h, hh):
            m = vec(m_row)                                            # VPU lerp
            return m * h + (1.0 - m) * hh

        def mm(a, w_ref):
            # MXU matmul; weights may be bf16 (wrapper-controlled), f32 accumulate.
            return jnp.dot(a.astype(w_ref.dtype), w_ref[...],
                           preferred_element_type=f32)

        def lif_inplace(src_ref):
            # MultiStepLIF(tau=2, decay_input=True, v_th=1, v_reset=0).
            # Spikes overwrite src_ref (each row is consumed right after it is read),
            # so the residual add becomes one vectorized full-tile add afterwards.
            nb = T // tb

            def body(b, vm):
                base = pl.multiple_of(b * tb, tb)
                y_blk = src_ref[pl.ds(base, tb), :]                   # (tb, C) full vld
                rows = []
                for j in range(tb):
                    vm = vm + (y_blk[j:j + 1, :] - vm) * 0.5          # charge
                    spk = (vm >= 1.0).astype(f32)                     # fire (Heaviside fwd)
                    rows.append(spk)
                    vm = (1.0 - spk) * vm                             # hard reset to 0
                src_ref[pl.ds(base, tb), :] = jnp.concatenate(rows, axis=0)
                return vm

            jax.lax.fori_loop(0, nb, body, jnp.zeros((1, C), f32))

        # ---- ln0 (layer_id == 0) ----
        x0 = layernorm(x_ref[...].astype(f32), _LN0_G, _LN0_B)
        x1_scr[...] = x0                                              # residual acc

        # ---- attention branch: RWKV_TimeMix(ln1(x0)) ----
        h = layernorm(x0, _LN1_G, _LN1_B)
        hh = time_shift(h)
        k_scr[...] = mm(lerp(_AMIX_K, h, hh), wk_a_ref)               # k
        v_scr[...] = mm(lerp(_AMIX_V, h, hh), wv_a_ref)               # v
        y_scr[...] = jax.nn.sigmoid(mm(lerp(_AMIX_R, h, hh), wr_a_ref))   # sr stash

        w_neg = vec(_WNEG)                                            # -exp(time_decay)
        u = vec(_U)                                                   # time_first

        # Numerically-stable WKV recurrence (SpikeGPT CUDA kernel formulation),
        # processed tb timesteps per iteration: one full (tb, C) vld for k and v,
        # one full (tb, C) vst for the tb output rows (written back into k_scr).
        nb = T // tb

        def wkv_blk(b, carry):
            p, q, o = carry
            base = pl.multiple_of(b * tb, tb)
            k_blk = k_scr[pl.ds(base, tb), :]
            v_blk = v_scr[pl.ds(base, tb), :]
            rows = []
            for j in range(tb):
                kt = k_blk[j:j + 1, :]
                vt = v_blk[j:j + 1, :]
                no = jnp.maximum(o, u + kt)
                A = jnp.exp(o - no)
                Bv = jnp.exp(u + kt - no)
                num = A * p + Bv * vt
                den = A * q + Bv                                      # >= ~1 by construction
                if approx_recip:
                    rows.append(num * pl.reciprocal(den, approx=True))    # EUP slot
                else:
                    rows.append(num / den)
                no2 = jnp.maximum(w_neg + o, kt)
                A2 = jnp.exp(w_neg + o - no2)
                B2 = jnp.exp(kt - no2)
                p = A2 * p + B2 * vt
                q = A2 * q + B2
                o = no2
            k_scr[pl.ds(base, tb), :] = jnp.concatenate(rows, axis=0)     # wkv rows
            return (p, q, o)

        jax.lax.fori_loop(
            0, nb, wkv_blk,
            (jnp.zeros((1, C), f32), jnp.zeros((1, C), f32),
             jnp.full((1, C), -1e38, f32)))

        # att = (sr * wkv) @ Wo ; spikes overwrite y_scr ; one full-tile residual add.
        y_scr[...] = mm(y_scr[...] * k_scr[...], wo_a_ref)
        lif_inplace(y_scr)
        x1_scr[...] = x1_scr[...] + y_scr[...]                        # x1 = x0 + lif1(att)

        # ---- ffn branch: RWKV_ChannelMix(ln2(x1)) ----
        h2 = layernorm(x1_scr[...], _LN2_G, _LN2_B)
        hh2 = time_shift(h2)
        k_scr[...] = lerp(_FMIX_K, h2, hh2)                           # xk stash
        v_scr[...] = lerp(_FMIX_R, h2, hh2)                           # xr stash

        # Real loop (not a static Python for) so the (ffn_tc, 4C) relu(k)^2
        # intermediate reuses one bounded live range at production T.
        nfc = T // ffn_tc

        def ffn_blk(c, _):
            base = pl.multiple_of(c * ffn_tc, ffn_tc)
            xk = k_scr[pl.ds(base, ffn_tc), :]
            xr = v_scr[pl.ds(base, ffn_tc), :]
            kk = jnp.square(jnp.maximum(mm(xk, wk_f_ref), 0.0))       # (ffn_tc, 4C)
            kv = mm(kk, wv_f_ref)
            y_scr[pl.ds(base, ffn_tc), :] = jax.nn.sigmoid(mm(xr, wr_f_ref)) * kv
            return 0

        jax.lax.fori_loop(0, nfc, ffn_blk, 0)

        lif_inplace(y_scr)
        out_ref[...] = x1_scr[...] + y_scr[...]                       # out = x1 + lif2(rkv)
        # TODO(synk): nn.Dropout(p=0.03) treated as identity (eval mode only).
        # TODO(synk): at production C (>=512) the serial WKV/LIF state could be
        # repacked into a full (8, C/8) vreg tile per step for ~8x better VPU/EUP
        # utilization; not worthwhile at the C=128 test size.

    return kernel


# -----------------------------------------------------------------------------
# Wrapper: grid over batch, lane-dense (T, C) blocks, resident unfused weights.
# -----------------------------------------------------------------------------
def block_forward(x_btc, P, use_bf16=True, approx_recip=None):
    """x_btc: (B, T, C) float32, PyTorch layout. Returns (B, T, C) float32."""
    B, T, C = x_btc.shape
    f32 = jnp.float32
    wdt = jnp.bfloat16 if use_bf16 else f32        # MXU operand dtype for weights
    if approx_recip is None:
        approx_recip = use_bf16                    # exact divide on the f32 validation path

    def row(v):
        return jnp.asarray(v, f32).reshape(1, C)

    vecs = jnp.concatenate(
        [row(P['ln0_g']), row(P['ln0_b']),
         row(P['ln1_g']), row(P['ln1_b']),
         row(P['ln2_g']), row(P['ln2_b']),
         row(P['att_mix_k']), row(P['att_mix_v']), row(P['att_mix_r']),
         row(P['ffn_mix_k']), row(P['ffn_mix_r']),
         row(-jnp.exp(P['time_decay'])), row(P['time_first']),
         jnp.zeros((_NVEC - 13, C), f32)], axis=0)                    # (16, C)

    args = [
        x_btc.astype(f32), vecs,
        P['att_wk'].astype(wdt), P['att_wv'].astype(wdt),
        P['att_wr'].astype(wdt), P['att_wo'].astype(wdt),
        P['ffn_wk'].astype(wdt), P['ffn_wv'].astype(wdt), P['ffn_wr'].astype(wdt),
    ]

    tb = 8 if T % 8 == 0 else 1
    ffn_tc = next(c for c in (128, 64, 32, 16, 8, T) if T % c == 0)
    kernel = _make_block_kernel(tb, ffn_tc, approx_recip)

    # VMEM budget: 4x (T,C) f32 scratch + weights (+ x/out blocks), with headroom,
    # clamped so it stays safe on v7x (64 MiB physical VMEM per TensorCore).
    wbytes = 2 if use_bf16 else 4
    est = (4 * T * C * 4                 # scratch
           + 2 * 13 * C * C * wbytes     # weights (worst case: double-buffered)
           + 2 * 2 * T * C * 4           # x / out blocks, double-buffered
           + 2 * _NVEC * C * 4           # packed per-channel vectors
           + (1 << 20))                  # compiler-internal headroom
    vmem_limit = int(min(max(est, 32 * 1024 * 1024), 56 * 1024 * 1024))

    def call(single_buffer_weights):
        def const_spec(a):
            nd = a.ndim
            idx = lambda b, _nd=nd: (0,) * _nd
            if single_buffer_weights:
                # Grid-invariant blocks: double-buffering them is pure VMEM waste.
                return pl.BlockSpec(a.shape, idx, pipeline_mode=pl.Buffered(1))
            return pl.BlockSpec(a.shape, idx)

        in_specs = ([pl.BlockSpec((None, T, C), lambda b: (b, 0, 0))]
                    + [const_spec(a) for a in args[1:]])

        return pl.pallas_call(
            kernel,
            out_shape=jax.ShapeDtypeStruct((B, T, C), f32),
            grid=(B,),
            in_specs=in_specs,
            out_specs=pl.BlockSpec((None, T, C), lambda b: (b, 0, 0)),
            scratch_shapes=[pltpu.VMEM((T, C), f32) for _ in range(4)],
            compiler_params=pltpu.CompilerParams(
                # v7x has 2 TCs: keep B per chip a multiple of 2 for full utilization.
                dimension_semantics=("parallel",),
                vmem_limit_bytes=vmem_limit),
        )(*args)

    try:
        return call(True)
    except Exception:
        # Fallback for jax builds where single-buffered pipeline_mode on invariant
        # blocks is not supported; identical semantics, default buffering.
        return call(False)


# -----------------------------------------------------------------------------
# Pure-JAX reference (mirrors the PyTorch module, unfused, f32).
# -----------------------------------------------------------------------------
def block_ref(x, P):
    B, T, C = x.shape

    def ln(h, g, b):
        mu = h.mean(-1, keepdims=True)
        var = ((h - mu) ** 2).mean(-1, keepdims=True)
        return (h - mu) / jnp.sqrt(var + 1e-5) * g.reshape(1, 1, C) + b.reshape(1, 1, C)

    def shift(h):
        return jnp.concatenate([jnp.zeros((B, 1, C), h.dtype), h[:, :-1]], axis=1)

    def lif(y):
        vm = jnp.zeros((B, C), y.dtype)
        outs = []
        for t in range(T):
            vm = vm + (y[:, t] - vm) / 2.0
            spk = (vm >= 1.0).astype(y.dtype)
            vm = (1.0 - spk) * vm
            outs.append(spk)
        return jnp.stack(outs, axis=1)

    x = ln(x, P['ln0_g'], P['ln0_b'])

    h = ln(x, P['ln1_g'], P['ln1_b']); hh = shift(h)
    mk = P['att_mix_k'].reshape(1, 1, C)
    mv = P['att_mix_v'].reshape(1, 1, C)
    mr = P['att_mix_r'].reshape(1, 1, C)
    xk = h * mk + hh * (1 - mk)
    xv = h * mv + hh * (1 - mv)
    xr = h * mr + hh * (1 - mr)
    k = xk @ P['att_wk']; v = xv @ P['att_wv']
    sr = jax.nn.sigmoid(xr @ P['att_wr'])

    w = -jnp.exp(P['time_decay']).reshape(1, C)
    u = P['time_first'].reshape(1, C)
    p = jnp.zeros((B, C)); q = jnp.zeros((B, C)); o = jnp.full((B, C), -1e38)
    ys = []
    for t in range(T):
        kt = k[:, t]; vt = v[:, t]
        no = jnp.maximum(o, u + kt)
        A = jnp.exp(o - no); Bc = jnp.exp(u + kt - no)
        ys.append((A * p + Bc * vt) / (A * q + Bc))
        no2 = jnp.maximum(w + o, kt)
        A2 = jnp.exp(w + o - no2); B2 = jnp.exp(kt - no2)
        p = A2 * p + B2 * vt; q = A2 * q + B2; o = no2
    wkv = jnp.stack(ys, axis=1)
    att = (sr * wkv) @ P['att_wo']
    x = x + lif(att)

    h = ln(x, P['ln2_g'], P['ln2_b']); hh = shift(h)
    fk = P['ffn_mix_k'].reshape(1, 1, C); fr = P['ffn_mix_r'].reshape(1, 1, C)
    xk = h * fk + hh * (1 - fk)
    xr = h * fr + hh * (1 - fr)
    kk = jnp.square(jnp.maximum(xk @ P['ffn_wk'], 0.0))
    kv = kk @ P['ffn_wv']
    rkv = jax.nn.sigmoid(xr @ P['ffn_wr']) * kv
    x = x + lif(rkv)
    return x


# -----------------------------------------------------------------------------
# Deterministic parameter init (shapes from Block.__init__; SpikeGPT fancy-init
# formulas for per-channel time parameters, small gaussians for weights).
# -----------------------------------------------------------------------------
def init_params(key, C, n_layer=2, layer_id=0):
    ratio_0_to_1 = layer_id / (n_layer - 1)
    ratio_1_to_almost0 = 1.0 - layer_id / n_layer
    h = np.arange(C, dtype=np.float64)
    decay_speed = -5.0 + 8.0 * (h / (C - 1)) ** (0.7 + 1.3 * ratio_0_to_1)
    zigzag = np.array([(i + 1) % 3 - 1 for i in range(C)], dtype=np.float64) * 0.5
    time_first = np.ones(C) * math.log(0.3) + zigzag
    xpos = np.arange(C, dtype=np.float64) / C
    att_mix_k = xpos ** ratio_1_to_almost0
    att_mix_v = att_mix_k + 0.3 * ratio_0_to_1
    att_mix_r = xpos ** (0.5 * ratio_1_to_almost0)

    ks = jax.random.split(key, 7)
    std = 0.2
    P = dict(
        ln0_g=jnp.ones((C,), jnp.float32), ln0_b=jnp.zeros((C,), jnp.float32),
        ln1_g=jnp.ones((C,), jnp.float32), ln1_b=jnp.zeros((C,), jnp.float32),
        ln2_g=jnp.ones((C,), jnp.float32), ln2_b=jnp.zeros((C,), jnp.float32),
        att_mix_k=jnp.asarray(att_mix_k, jnp.float32),
        att_mix_v=jnp.asarray(att_mix_v, jnp.float32),
        att_mix_r=jnp.asarray(att_mix_r, jnp.float32),
        time_decay=jnp.asarray(decay_speed, jnp.float32),
        time_first=jnp.asarray(time_first, jnp.float32),
        att_wk=jax.random.normal(ks[0], (C, C), jnp.float32) * std,
        att_wv=jax.random.normal(ks[1], (C, C), jnp.float32) * std,
        att_wr=jax.random.normal(ks[2], (C, C), jnp.float32) * std,
        att_wo=jax.random.normal(ks[3], (C, C), jnp.float32) * std,
        ffn_mix_k=jnp.asarray(att_mix_k, jnp.float32),
        ffn_mix_r=jnp.asarray(att_mix_k, jnp.float32),
        ffn_wk=jax.random.normal(ks[4], (C, 4 * C), jnp.float32) * std,
        ffn_wv=jax.random.normal(ks[5], (4 * C, C), jnp.float32) * std,
        ffn_wr=jax.random.normal(ks[6], (C, C), jnp.float32) * std,
    )
    return P


if __name__ == "__main__":
    # Small but lane-aligned config: batch=2, ctx_len=8, n_embd=128 (C multiple of
    # 128 keeps every store lane-dense and the MXU at full lane width; B=2 keeps
    # both v7x TensorCores busy under the "parallel" batch axis).
    B, T, C = 2, 8, 128
    key = jax.random.PRNGKey(0)
    kx, kp = jax.random.split(key)
    x = jax.random.normal(kx, (B, T, C), jnp.float32)
    params = init_params(kp, C, n_layer=2, layer_id=0)

    # f32 MXU-operand path (exact WKV divide): validated against the pure-JAX ref.
    out = jax.block_until_ready(block_forward(x, params, use_bf16=False))
    ref = block_ref(x, params)
    diff = jnp.abs(out - ref)
    # Tolerate (extremely rare) LIF threshold flips from MXU vs XLA rounding.
    mismatch_frac = float(jnp.mean((diff > 1e-2).astype(jnp.float32)))
    assert out.shape == (B, T, C)
    assert bool(jnp.all(jnp.isfinite(out)))
    assert mismatch_frac < 0.01, f"kernel/ref mismatch fraction {mismatch_frac}"

    # bf16 MXU-operand path (production default; approx EUP reciprocal in WKV):
    # smoke-test only, since bf16 rounding can flip near-threshold LIF spikes.
    out_bf16 = jax.block_until_ready(block_forward(x, params, use_bf16=True))
    assert out_bf16.shape == (B, T, C)
    assert bool(jnp.all(jnp.isfinite(out_bf16)))

    print("KERNEL_OK")
</pallas_src>

<mosaic_0001>
module attributes {stable_mosaic.version = 11 : i64} {
  func.func @kernel(%arg0: i32, %arg1: memref<1x8x128xf32, #tpu.memory_space<vmem>>, %arg2: memref<16x128xf32, #tpu.memory_space<vmem>>, %arg3: memref<128x128xf32, #tpu.memory_space<vmem>>, %arg4: memref<128x128xf32, #tpu.memory_space<vmem>>, %arg5: memref<128x128xf32, #tpu.memory_space<vmem>>, %arg6: memref<128x128xf32, #tpu.memory_space<vmem>>, %arg7: memref<128x512xf32, #tpu.memory_space<vmem>>, %arg8: memref<512x128xf32, #tpu.memory_space<vmem>>, %arg9: memref<128x128xf32, #tpu.memory_space<vmem>>, %arg10: memref<1x8x128xf32, #tpu.memory_space<vmem>>, %arg11: memref<8x128xf32, #tpu.memory_space<vmem>>, %arg12: memref<8x128xf32, #tpu.memory_space<vmem>>, %arg13: memref<8x128xf32, #tpu.memory_space<vmem>>, %arg14: memref<8x128xf32, #tpu.memory_space<vmem>>) attributes {dimension_semantics = [#tpu.dimension_semantics<parallel>], iteration_bounds = array<i64: 2>, scalar_prefetch = 0 : i64, scratch_operands = 4 : i64, tpu.core_type = #tpu.core_type<tc>, window_params = [{transform_indices = @transform_0, window_bounds = array<i64: 1, 8, 128>}, {pipeline_mode = #tpu.pipeline_mode<synchronous>, transform_indices = @transform_1, window_bounds = array<i64: 16, 128>}, {pipeline_mode = #tpu.pipeline_mode<synchronous>, transform_indices = @transform_2, window_bounds = array<i64: 128, 128>}, {pipeline_mode = #tpu.pipeline_mode<synchronous>, transform_indices = @transform_3, window_bounds = array<i64: 128, 128>}, {pipeline_mode = #tpu.pipeline_mode<synchronous>, transform_indices = @transform_4, window_bounds = array<i64: 128, 128>}, {pipeline_mode = #tpu.pipeline_mode<synchronous>, transform_indices = @transform_5, window_bounds = array<i64: 128, 128>}, {pipeline_mode = #tpu.pipeline_mode<synchronous>, transform_indices = @transform_6, window_bounds = array<i64: 128, 512>}, {pipeline_mode = #tpu.pipeline_mode<synchronous>, transform_indices = @transform_7, window_bounds = array<i64: 512, 128>}, {pipeline_mode = #tpu.pipeline_mode<synchronous>, transform_indices = @transform_8, window_bounds = array<i64: 128, 128>}, {transform_indices = @transform_9, window_bounds = array<i64: 1, 8, 128>}]} {
    %0 = tpu.iota {dimensions = array<i32: 0>} : vector<8x128xi32>
    %c0_i32 = arith.constant 0 : i32
    %1 = vector.broadcast %c0_i32 : i32 to vector<8x128xi32>
    %2 = arith.cmpi eq, %0, %1 : vector<8x128xi32>
    %c0 = arith.constant 0 : index
    %c0_0 = arith.constant 0 : index
    %c0_1 = arith.constant 0 : index
    %3 = vector.load %arg1[%c0, %c0_0, %c0_1] : memref<1x8x128xf32, #tpu.memory_space<vmem>>, vector<1x8x128xf32>
    %4 = vector.shape_cast %3 : vector<1x8x128xf32> to vector<8x128xf32>
    %cst = arith.constant dense<0.000000e+00> : vector<8xf32>
    %5 = vector.multi_reduction <add>, %4, %cst [1] : vector<8x128xf32> to vector<8xf32>
    %6 = vector.shape_cast %5 : vector<8xf32> to vector<8x1xf32>
    %cst_2 = arith.constant 1.280000e+02 : f32
    %7 = vector.broadcast %cst_2 : f32 to vector<8x1xf32>
    %8 = arith.divf %6, %7 : vector<8x1xf32>
    %9 = vector.broadcast %8 : vector<8x1xf32> to vector<8x128xf32>
    %10 = arith.subf %4, %9 : vector<8x128xf32>
    %11 = arith.mulf %10, %10 : vector<8x128xf32>
    %cst_3 = arith.constant dense<0.000000e+00> : vector<8xf32>
    %12 = vector.multi_reduction <add>, %11, %cst_3 [1] : vector<8x128xf32> to vector<8xf32>
    %13 = vector.shape_cast %12 : vector<8xf32> to vector<8x1xf32>
    %cst_4 = arith.constant 1.280000e+02 : f32
    %14 = vector.broadcast %cst_4 : f32 to vector<8x1xf32>
    %15 = arith.divf %13, %14 : vector<8x1xf32>
    %16 = vector.broadcast %8 : vector<8x1xf32> to vector<8x128xf32>
    %17 = arith.subf %4, %16 : vector<8x128xf32>
    %cst_5 = arith.constant 9.99999974E-6 : f32
    %18 = vector.broadcast %cst_5 : f32 to vector<8x1xf32>
    %19 = arith.addf %15, %18 : vector<8x1xf32>
    %20 = math.rsqrt %19 : vector<8x1xf32>
    %21 = vector.broadcast %20 : vector<8x1xf32> to vector<8x128xf32>
    %22 = arith.mulf %17, %21 : vector<8x128xf32>
    %c0_6 = arith.constant 0 : index
    %c0_7 = arith.constant 0 : index
    %23 = vector.load %arg2[%c0_6, %c0_7] : memref<16x128xf32, #tpu.memory_space<vmem>>, vector<1x128xf32>
    %24 = vector.broadcast %23 : vector<1x128xf32> to vector<8x128xf32>
    %25 = arith.mulf %22, %24 : vector<8x128xf32>
    %c1 = arith.constant 1 : index
    %c0_8 = arith.constant 0 : index
    %26 = vector.load %arg2[%c1, %c0_8] : memref<16x128xf32, #tpu.memory_space<vmem>>, vector<1x128xf32>
    %27 = vector.broadcast %26 : vector<1x128xf32> to vector<8x128xf32>
    %28 = arith.addf %25, %27 : vector<8x128xf32>
    %c0_9 = arith.constant 0 : index
    %c0_10 = arith.constant 0 : index
    %29 = vector.load %arg11[%c0_9, %c0_10] : memref<8x128xf32, #tpu.memory_space<vmem>>, vector<8x128xf32>
    tpu.vector_store %arg11[%c0_9, %c0_10], %28 {strides = array<i32>} : memref<8x128xf32, #tpu.memory_space<vmem>>, vector<8x128xf32>,
    %cst_11 = arith.constant dense<0.000000e+00> : vector<8xf32>
    %30 = vector.multi_reduction <add>, %28, %cst_11 [1] : vector<8x128xf32> to vector<8xf32>
    %31 = vector.shape_cast %30 : vector<8xf32> to vector<8x1xf32>
    %cst_12 = arith.constant 1.280000e+02 : f32
    %32 = vector.broadcast %cst_12 : f32 to vector<8x1xf32>
    %33 = arith.divf %31, %32 : vector<8x1xf32>
    %34 = vector.broadcast %33 : vector<8x1xf32> to vector<8x128xf32>
    %35 = arith.subf %28, %34 : vector<8x128xf32>
    %36 = arith.mulf %35, %35 : vector<8x128xf32>
    %cst_13 = arith.constant dense<0.000000e+00> : vector<8xf32>
    %37 = vector.multi_reduction <add>, %36, %cst_13 [1] : vector<8x128xf32> to vector<8xf32>
    %38 = vector.shape_cast %37 : vector<8xf32> to vector<8x1xf32>
    %cst_14 = arith.constant 1.280000e+02 : f32
    %39 = vector.broadcast %cst_14 : f32 to vector<8x1xf32>
    %40 = arith.divf %38, %39 : vector<8x1xf32>
    %41 = vector.broadcast %33 : vector<8x1xf32> to vector<8x128xf32>
    %42 = arith.subf %28, %41 : vector<8x128xf32>
    %cst_15 = arith.constant 9.99999974E-6 : f32
    %43 = vector.broadcast %cst_15 : f32 to vector<8x1xf32>
    %44 = arith.addf %40, %43 : vector<8x1xf32>
    %45 = math.rsqrt %44 : vector<8x1xf32>
    %46 = vector.broadcast %45 : vector<8x1xf32> to vector<8x128xf32>
    %47 = arith.mulf %42, %46 : vector<8x128xf32>
    %c2 = arith.constant 2 : index
    %c0_16 = arith.constant 0 : index
    %48 = vector.load %arg2[%c2, %c0_16] : memref<16x128xf32, #tpu.memory_space<vmem>>, vector<1x128xf32>
    %49 = vector.broadcast %48 : vector<1x128xf32> to vector<8x128xf32>
    %50 = arith.mulf %47, %49 : vector<8x128xf32>
    %c3 = arith.constant 3 : index
    %c0_17 = arith.constant 0 : index
    %51 = vector.load %arg2[%c3, %c0_17] : memref<16x128xf32, #tpu.memory_space<vmem>>, vector<1x128xf32>
    %52 = vector.broadcast %51 : vector<1x128xf32> to vector<8x128xf32>
    %53 = arith.addf %50, %52 : vector<8x128xf32>
    %c1_i32 = arith.constant 1 : i32
    %54 = tpu.dynamic_rotate %53 by %c1_i32 dim 0 : vector<8x128xf32>, i32 -> vector<8x128xf32>
    %cst_18 = arith.constant 0.000000e+00 : f32
    %55 = vector.broadcast %cst_18 : f32 to vector<8x128xf32>
    %56 = arith.select %2, %55, %54 : vector<8x128xi1>, vector<8x128xf32>
    %c6 = arith.constant 6 : index
    %c0_19 = arith.constant 0 : index
    %57 = vector.load %arg2[%c6, %c0_19] : memref<16x128xf32, #tpu.memory_space<vmem>>, vector<1x128xf32>
    %58 = vector.broadcast %57 : vector<1x128xf32> to vector<8x128xf32>
    %59 = arith.mulf %58, %53 : vector<8x128xf32>
    %cst_20 = arith.constant 1.000000e+00 : f32
    %60 = vector.broadcast %cst_20 : f32 to vector<1x128xf32>
    %61 = arith.subf %60, %57 : vector<1x128xf32>
    %62 = vector.broadcast %61 : vector<1x128xf32> to vector<8x128xf32>
    %63 = arith.mulf %62, %56 : vector<8x128xf32>
    %64 = arith.addf %59, %63 : vector<8x128xf32>
    %c0_21 = arith.constant 0 : index
    %c0_22 = arith.constant 0 : index
    %65 = vector.load %arg3[%c0_21, %c0_22] : memref<128x128xf32, #tpu.memory_space<vmem>>, vector<128x128xf32>
    %cst_23 = arith.constant dense<0.000000e+00> : vector<8x128xf32>
    %66 = tpu.matmul %64, %65, %cst_23 {dimension_numbers = #tpu.dot_dimension_numbers<[1], [0], [0], [1], [0, 0, 1, 1], [], []>} : vector<8x128xf32>, vector<128x128xf32>, vector<8x128xf32> -> vector<8x128xf32>
    %c0_24 = arith.constant 0 : index
    %c0_25 = arith.constant 0 : index
    %67 = vector.load %arg13[%c0_24, %c0_25] : memref<8x128xf32, #tpu.memory_space<vmem>>, vector<8x128xf32>
    tpu.vector_store %arg13[%c0_24, %c0_25], %66 {strides = array<i32>} : memref<8x128xf32, #tpu.memory_space<vmem>>, vector<8x128xf32>,
    %c7 = arith.constant 7 : index
    %c0_26 = arith.constant 0 : index
    %68 = vector.load %arg2[%c7, %c0_26] : memref<16x128xf32, #tpu.memory_space<vmem>>, vector<1x128xf32>
    %69 = vector.broadcast %68 : vector<1x128xf32> to vector<8x128xf32>
    %70 = arith.mulf %69, %53 : vector<8x128xf32>
    %cst_27 = arith.constant 1.000000e+00 : f32
    %71 = vector.broadcast %cst_27 : f32 to vector<1x128xf32>
    %72 = arith.subf %71, %68 : vector<1x128xf32>
    %73 = vector.broadcast %72 : vector<1x128xf32> to vector<8x128xf32>
    %74 = arith.mulf %73, %56 : vector<8x128xf32>
    %75 = arith.addf %70, %74 : vector<8x128xf32>
    %c0_28 = arith.constant 0 : index
    %c0_29 = arith.constant 0 : index
    %76 = vector.load %arg4[%c0_28, %c0_29] : memref<128x128xf32, #tpu.memory_space<vmem>>, vector<128x128xf32>
    %cst_30 = arith.constant dense<0.000000e+00> : vector<8x128xf32>
    %77 = tpu.matmul %75, %76, %cst_30 {dimension_numbers = #tpu.dot_dimension_numbers<[1], [0], [0], [1], [0, 0, 1, 1], [], []>} : vector<8x128xf32>, vector<128x128xf32>, vector<8x128xf32> -> vector<8x128xf32>
    %c0_31 = arith.constant 0 : index
    %c0_32 = arith.constant 0 : index
    %78 = vector.load %arg14[%c0_31, %c0_32] : memref<8x128xf32, #tpu.memory_space<vmem>>, vector<8x128xf32>
    tpu.vector_store %arg14[%c0_31, %c0_32], %77 {strides = array<i32>} : memref<8x128xf32, #tpu.memory_space<vmem>>, vector<8x128xf32>,
    %c8 = arith.constant 8 : index
    %c0_33 = arith.constant 0 : index
    %79 = vector.load %arg2[%c8, %c0_33] : memref<16x128xf32, #tpu.memory_space<vmem>>, vector<1x128xf32>
    %80 = vector.broadcast %79 : vector<1x128xf32> to vector<8x128xf32>
    %81 = arith.mulf %80, %53 : vector<8x128xf32>
    %cst_34 = arith.constant 1.000000e+00 : f32
    %82 = vector.broadcast %cst_34 : f32 to vector<1x128xf32>
    %83 = arith.subf %82, %79 : vector<1x128xf32>
    %84 = vector.broadcast %83 : vector<1x128xf32> to vector<8x128xf32>
    %85 = arith.mulf %84, %56 : vector<8x128xf32>
    %86 = arith.addf %81, %85 : vector<8x128xf32>
    %c0_35 = arith.constant 0 : index
    %c0_36 = arith.constant 0 : index
    %87 = vector.load %arg5[%c0_35, %c0_36] : memref<128x128xf32, #tpu.memory_space<vmem>>, vector<128x128xf32>
    %cst_37 = arith.constant dense<0.000000e+00> : vector<8x128xf32>
    %88 = tpu.matmul %86, %87, %cst_37 {dimension_numbers = #tpu.dot_dimension_numbers<[1], [0], [0], [1], [0, 0, 1, 1], [], []>} : vector<8x128xf32>, vector<128x128xf32>, vector<8x128xf32> -> vector<8x128xf32>
    %89 = arith.negf %88 : vector<8x128xf32>
    %90 = math.exp %89 : vector<8x128xf32>
    %cst_38 = arith.constant 1.000000e+00 : f32
    %91 = vector.broadcast %cst_38 : f32 to vector<8x128xf32>
    %92 = arith.addf %91, %90 : vector<8x128xf32>
    %93 = arith.divf %91, %92 : vector<8x128xf32>
    %c0_39 = arith.constant 0 : index
    %c0_40 = arith.constant 0 : index
    %94 = vector.load %arg12[%c0_39, %c0_40] : memref<8x128xf32, #tpu.memory_space<vmem>>, vector<8x128xf32>
    tpu.vector_store %arg12[%c0_39, %c0_40], %93 {strides = array<i32>} : memref<8x128xf32, #tpu.memory_space<vmem>>, vector<8x128xf32>,
    %c11 = arith.constant 11 : index
    %c0_41 = arith.constant 0 : index
    %95 = vector.load %arg2[%c11, %c0_41] : memref<16x128xf32, #tpu.memory_space<vmem>>, vector<1x128xf32>
    %c12 = arith.constant 12 : index
    %c0_42 = arith.constant 0 : index
    %96 = vector.load %arg2[%c12, %c0_42] : memref<16x128xf32, #tpu.memory_space<vmem>>, vector<1x128xf32>
    %cst_43 = arith.constant 0.000000e+00 : f32
    %97 = vector.broadcast %cst_43 : f32 to vector<1x128xf32>
    %cst_44 = arith.constant 0.000000e+00 : f32
    %98 = vector.broadcast %cst_44 : f32 to vector<1x128xf32>
    %cst_45 = arith.constant -9.99999968E+37 : f32
    %99 = vector.broadcast %cst_45 : f32 to vector<1x128xf32>
    %c0_i32_46 = arith.constant 0 : i32
    %c8_i32 = arith.constant 8 : i32
    %100 = arith.muli %c0_i32_46, %c8_i32 : i32
    %101 = tpu.assume_multiple %100, 8 : i32
    %102 = arith.index_cast %101 : i32 to index
    %c0_47 = arith.constant 0 : index
    %103 = vector.load %arg13[%102, %c0_47] : memref<8x128xf32, #tpu.memory_space<vmem>>, vector<8x128xf32>
    %104 = arith.index_cast %101 : i32 to index
    %c0_48 = arith.constant 0 : index
    %105 = vector.load %arg14[%104, %c0_48] : memref<8x128xf32, #tpu.memory_space<vmem>>, vector<8x128xf32>
    %106 = vector.extract_strided_slice %103 {offsets = [0, 0], sizes = [1, 128], strides = [1, 1]} : vector<8x128xf32> to vector<1x128xf32>
    %107 = vector.extract_strided_slice %105 {offsets = [0, 0], sizes = [1, 128], strides = [1, 1]} : vector<8x128xf32> to vector<1x128xf32>
    %108 = arith.addf %96, %106 : vector<1x128xf32>
    %109 = arith.maximumf %99, %108 : vector<1x128xf32>
    %110 = arith.subf %99, %109 : vector<1x128xf32>
    %111 = math.exp %110 : vector<1x128xf32>
    %112 = arith.addf %96, %106 : vector<1x128xf32>
    %113 = arith.subf %112, %109 : vector<1x128xf32>
    %114 = math.exp %113 : vector<1x128xf32>
    %115 = arith.mulf %111, %97 : vector<1x128xf32>
    %116 = arith.mulf %114, %107 : vector<1x128xf32>
    %117 = arith.addf %115, %116 : vector<1x128xf32>
    %118 = arith.mulf %111, %98 : vector<1x128xf32>
    %119 = arith.addf %118, %114 : vector<1x128xf32>
    %120 = arith.divf %117, %119 : vector<1x128xf32>
    %121 = arith.addf %95, %99 : vector<1x128xf32>
    %122 = arith.maximumf %121, %106 : vector<1x128xf32>
    %123 = arith.addf %95, %99 : vector<1x128xf32>
    %124 = arith.subf %123, %122 : vector<1x128xf32>
    %125 = math.exp %124 : vector<1x128xf32>
    %126 = arith.subf %106, %122 : vector<1x128xf32>
    %127 = math.exp %126 : vector<1x128xf32>
    %128 = arith.mulf %125, %97 : vector<1x128xf32>
    %129 = arith.mulf %127, %107 : vector<1x128xf32>
    %130 = arith.addf %128, %129 : vector<1x128xf32>
    %131 = arith.mulf %125, %98 : vector<1x128xf32>
    %132 = arith.addf %131, %127 : vector<1x128xf32>
    %133 = vector.extract_strided_slice %103 {offsets = [1, 0], sizes = [1, 128], strides = [1, 1]} : vector<8x128xf32> to vector<1x128xf32>
    %134 = vector.extract_strided_slice %105 {offsets = [1, 0], sizes = [1, 128], strides = [1, 1]} : vector<8x128xf32> to vector<1x128xf32>
    %135 = arith.addf %96, %133 : vector<1x128xf32>
    %136 = arith.maximumf %122, %135 : vector<1x128xf32>
    %137 = arith.subf %122, %136 : vector<1x128xf32>
    %138 = math.exp %137 : vector<1x128xf32>
    %139 = arith.addf %96, %133 : vector<1x128xf32>
    %140 = arith.subf %139, %136 : vector<1x128xf32>
    %141 = math.exp %140 : vector<1x128xf32>
    %142 = arith.mulf %138, %130 : vector<1x128xf32>
    %143 = arith.mulf %141, %134 : vector<1x128xf32>
    %144 = arith.addf %142, %143 : vector<1x128xf32>
    %145 = arith.mulf %138, %132 : vector<1x128xf32>
    %146 = arith.addf %145, %141 : vector<1x128xf32>
    %147 = arith.divf %144, %146 : vector<1x128xf32>
    %148 = arith.addf %95, %122 : vector<1x128xf32>
    %149 = arith.maximumf %148, %133 : vector<1x128xf32>
    %150 = arith.addf %95, %122 : vector<1x128xf32>
    %151 = arith.subf %150, %149 : vector<1x128xf32>
    %152 = math.exp %151 : vector<1x128xf32>
    %153 = arith.subf %133, %149 : vector<1x128xf32>
    %154 = math.exp %153 : vector<1x128xf32>
    %155 = arith.mulf %152, %130 : vector<1x128xf32>
    %156 = arith.mulf %154, %134 : vector<1x128xf32>
    %157 = arith.addf %155, %156 : vector<1x128xf32>
    %158 = arith.mulf %152, %132 : vector<1x128xf32>
    %159 = arith.addf %158, %154 : vector<1x128xf32>
    %160 = vector.extract_strided_slice %103 {offsets = [2, 0], sizes = [1, 128], strides = [1, 1]} : vector<8x128xf32> to vector<1x128xf32>
    %161 = vector.extract_strided_slice %105 {offsets = [2, 0], sizes = [1, 128], strides = [1, 1]} : vector<8x128xf32> to vector<1x128xf32>
    %162 = arith.addf %96, %160 : vector<1x128xf32>
    %163 = arith.maximumf %149, %162 : vector<1x128xf32>
    %164 = arith.subf %149, %163 : vector<1x128xf32>
    %165 = math.exp %164 : vector<1x128xf32>
    %166 = arith.addf %96, %160 : vector<1x128xf32>
    %167 = arith.subf %166, %163 : vector<1x128xf32>
    %168 = math.exp %167 : vector<1x128xf32>
    %169 = arith.mulf %165, %157 : vector<1x128xf32>
    %170 = arith.mulf %168, %161 : vector<1x128xf32>
    %171 = arith.addf %169, %170 : vector<1x128xf32>
    %172 = arith.mulf %165, %159 : vector<1x128xf32>
    %173 = arith.addf %172, %168 : vector<1x128xf32>
    %174 = arith.divf %171, %173 : vector<1x128xf32>
    %175 = arith.addf %95, %149 : vector<1x128xf32>
    %176 = arith.maximumf %175, %160 : vector<1x128xf32>
    %177 = arith.addf %95, %149 : vector<1x128xf32>
    %178 = arith.subf %177, %176 : vector<1x128xf32>
    %179 = math.exp %178 : vector<1x128xf32>
    %180 = arith.subf %160, %176 : vector<1x128xf32>
    %181 = math.exp %180 : vector<1x128xf32>
    %182 = arith.mulf %179, %157 : vector<1x128xf32>
    %183 = arith.mulf %181, %161 : vector<1x128xf32>
    %184 = arith.addf %182, %183 : vector<1x128xf32>
    %185 = arith.mulf %179, %159 : vector<1x128xf32>
    %186 = arith.addf %185, %181 : vector<1x128xf32>
    %187 = vector.extract_strided_slice %103 {offsets = [3, 0], sizes = [1, 128], strides = [1, 1]} : vector<8x128xf32> to vector<1x128xf32>
    %188 = vector.extract_strided_slice %105 {offsets = [3, 0], sizes = [1, 128], strides = [1, 1]} : vector<8x128xf32> to vector<1x128xf32>
    %189 = arith.addf %96, %187 : vector<1x128xf32>
    %190 = arith.maximumf %176, %189 : vector<1x128xf32>
    %191 = arith.subf %176, %190 : vector<1x128xf32>
    %192 = math.exp %191 : vector<1x128xf32>
    %193 = arith.addf %96, %187 : vector<1x128xf32>
    %194 = arith.subf %193, %190 : vector<1x128xf32>
    %195 = math.exp %194 : vector<1x128xf32>
    %196 = arith.mulf %192, %184 : vector<1x128xf32>
    %197 = arith.mulf %195, %188 : vector<1x128xf32>
    %198 = arith.addf %196, %197 : vector<1x128xf32>
    %199 = arith.mulf %192, %186 : vector<1x128xf32>
    %200 = arith.addf %199, %195 : vector<1x128xf32>
    %201 = arith.divf %198, %200 : vector<1x128xf32>
    %202 = arith.addf %95, %176 : vector<1x128xf32>
    %203 = arith.maximumf %202, %187 : vector<1x128xf32>
    %204 = arith.addf %95, %176 : vector<1x128xf32>
    %205 = arith.subf %204, %203 : vector<1x128xf32>
    %206 = math.exp %205 : vector<1x128xf32>
    %207 = arith.subf %187, %203 : vector<1x128xf32>
    %208 = math.exp %207 : vector<1x128xf32>
    %209 = arith.mulf %206, %184 : vector<1x128xf32>
    %210 = arith.mulf %208, %188 : vector<1x128xf32>
    %211 = arith.addf %209, %210 : vector<1x128xf32>
    %212 = arith.mulf %206, %186 : vector<1x128xf32>
    %213 = arith.addf %212, %208 : vector<1x128xf32>
    %214 = vector.extract_strided_slice %103 {offsets = [4, 0], sizes = [1, 128], strides = [1, 1]} : vector<8x128xf32> to vector<1x128xf32>
    %215 = vector.extract_strided_slice %105 {offsets = [4, 0], sizes = [1, 128], strides = [1, 1]} : vector<8x128xf32> to vector<1x128xf32>
    %216 = arith.addf %96, %214 : vector<1x128xf32>
    %217 = arith.maximumf %203, %216 : vector<1x128xf32>
    %218 = arith.subf %203, %217 : vector<1x128xf32>
    %219 = math.exp %218 : vector<1x128xf32>
    %220 = arith.addf %96, %214 : vector<1x128xf32>
    %221 = arith.subf %220, %217 : vector<1x128xf32>
    %222 = math.exp %221 : vector<1x128xf32>
    %223 = arith.mulf %219, %211 : vector<1x128xf32>
    %224 = arith.mulf %222, %215 : vector<1x128xf32>
    %225 = arith.addf %223, %224 : vector<1x128xf32>
    %226 = arith.mulf %219, %213 : vector<1x128xf32>
    %227 = arith.addf %226, %222 : vector<1x128xf32>
    %228 = arith.divf %225, %227 : vector<1x128xf32>
    %229 = arith.addf %95, %203 : vector<1x128xf32>
    %230 = arith.maximumf %229, %214 : vector<1x128xf32>
    %231 = arith.addf %95, %203 : vector<1x128xf32>
    %232 = arith.subf %231, %230 : vector<1x128xf32>
    %233 = math.exp %232 : vector<1x128xf32>
    %234 = arith.subf %214, %230 : vector<1x128xf32>
    %235 = math.exp %234 : vector<1x128xf32>
    %236 = arith.mulf %233, %211 : vector<1x128xf32>
    %237 = arith.mulf %235, %215 : vector<1x128xf32>
    %238 = arith.addf %236, %237 : vector<1x128xf32>
    %239 = arith.mulf %233, %213 : vector<1x128xf32>
    %240 = arith.addf %239, %235 : vector<1x128xf32>
    %241 = vector.extract_strided_slice %103 {offsets = [5, 0], sizes = [1, 128], strides = [1, 1]} : vector<8x128xf32> to vector<1x128xf32>
    %242 = vector.extract_strided_slice %105 {offsets = [5, 0], sizes = [1, 128], strides = [1, 1]} : vector<8x128xf32> to vector<1x128xf32>
    %243 = arith.addf %96, %241 : vector<1x128xf32>
    %244 = arith.maximumf %230, %243 : vector<1x128xf32>
    %245 = arith.subf %230, %244 : vector<1x128xf32>
    %246 = math.exp %245 : vector<1x128xf32>
    %247 = arith.addf %96, %241 : vector<1x128xf32>
    %248 = arith.subf %247, %244 : vector<1x128xf32>
    %249 = math.exp %248 : vector<1x128xf32>
    %250 = arith.mulf %246, %238 : vector<1x128xf32>
    %251 = arith.mulf %249, %242 : vector<1x128xf32>
    %252 = arith.addf %250, %251 : vector<1x128xf32>
    %253 = arith.mulf %246, %240 : vector<1x128xf32>
    %254 = arith.addf %253, %249 : vector<1x128xf32>
    %255 = arith.divf %252, %254 : vector<1x128xf32>
    %256 = arith.addf %95, %230 : vector<1x128xf32>
    %257 = arith.maximumf %256, %241 : vector<1x128xf32>
    %258 = arith.addf %95, %230 : vector<1x128xf32>
    %259 = arith.subf %258, %257 : vector<1x128xf32>
    %260 = math.exp %259 : vector<1x128xf32>
    %261 = arith.subf %241, %257 : vector<1x128xf32>
    %262 = math.exp %261 : vector<1x128xf32>
    %263 = arith.mulf %260, %238 : vector<1x128xf32>
    %264 = arith.mulf %262, %242 : vector<1x128xf32>
    %265 = arith.addf %263, %264 : vector<1x128xf32>
    %266 = arith.mulf %260, %240 : vector<1x128xf32>
    %267 = arith.addf %266, %262 : vector<1x128xf32>
    %268 = vector.extract_strided_slice %103 {offsets = [6, 0], sizes = [1, 128], strides = [1, 1]} : vector<8x128xf32> to vector<1x128xf32>
    %269 = vector.extract_strided_slice %105 {offsets = [6, 0], sizes = [1, 128], strides = [1, 1]} : vector<8x128xf32> to vector<1x128xf32>
    %270 = arith.addf %96, %268 : vector<1x128xf32>
    %271 = arith.maximumf %257, %270 : vector<1x128xf32>
    %272 = arith.subf %257, %271 : vector<1x128xf32>
    %273 = math.exp %272 : vector<1x128xf32>
    %274 = arith.addf %96, %268 : vector<1x128xf32>
    %275 = arith.subf %274, %271 : vector<1x128xf32>
    %276 = math.exp %275 : vector<1x128xf32>
    %277 = arith.mulf %273, %265 : vector<1x128xf32>
    %278 = arith.mulf %276, %269 : vector<1x128xf32>
    %279 = arith.addf %277, %278 : vector<1x128xf32>
    %280 = arith.mulf %273, %267 : vector<1x128xf32>
    %281 = arith.addf %280, %276 : vector<1x128xf32>
    %282 = arith.divf %279, %281 : vector<1x128xf32>
    %283 = arith.addf %95, %257 : vector<1x128xf32>
    %284 = arith.maximumf %283, %268 : vector<1x128xf32>
    %285 = arith.addf %95, %257 : vector<1x128xf32>
    %286 = arith.subf %285, %284 : vector<1x128xf32>
    %287 = math.exp %286 : vector<1x128xf32>
    %288 = arith.subf %268, %284 : vector<1x128xf32>
    %289 = math.exp %288 : vector<1x128xf32>
    %290 = arith.mulf %287, %265 : vector<1x128xf32>
    %291 = arith.mulf %289, %269 : vector<1x128xf32>
    %292 = arith.addf %290, %291 : vector<1x128xf32>
    %293 = arith.mulf %287, %267 : vector<1x128xf32>
    %294 = arith.addf %293, %289 : vector<1x128xf32>
    %295 = vector.extract_strided_slice %103 {offsets = [7, 0], sizes = [1, 128], strides = [1, 1]} : vector<8x128xf32> to vector<1x128xf32>
    %296 = vector.extract_strided_slice %105 {offsets = [7, 0], sizes = [1, 128], strides = [1, 1]} : vector<8x128xf32> to vector<1x128xf32>
    %297 = arith.addf %96, %295 : vector<1x128xf32>
    %298 = arith.maximumf %284, %297 : vector<1x128xf32>
    %299 = arith.subf %284, %298 : vector<1x128xf32>
    %300 = math.exp %299 : vector<1x128xf32>
    %301 = arith.addf %96, %295 : vector<1x128xf32>
    %302 = arith.subf %301, %298 : vector<1x128xf32>
    %303 = math.exp %302 : vector<1x128xf32>
    %304 = arith.mulf %300, %292 : vector<1x128xf32>
    %305 = arith.mulf %303, %296 : vector<1x128xf32>
    %306 = arith.addf %304, %305 : vector<1x128xf32>
    %307 = arith.mulf %300, %294 : vector<1x128xf32>
    %308 = arith.addf %307, %303 : vector<1x128xf32>
    %309 = arith.divf %306, %308 : vector<1x128xf32>
    %310 = arith.addf %95, %284 : vector<1x128xf32>
    %311 = arith.maximumf %310, %295 : vector<1x128xf32>
    %312 = arith.addf %95, %284 : vector<1x128xf32>
    %313 = arith.subf %312, %311 : vector<1x128xf32>
    %314 = math.exp %313 : vector<1x128xf32>
    %315 = arith.subf %295, %311 : vector<1x128xf32>
    %316 = math.exp %315 : vector<1x128xf32>
    %317 = arith.mulf %314, %292 : vector<1x128xf32>
    %318 = arith.mulf %316, %296 : vector<1x128xf32>
    %319 = arith.addf %317, %318 : vector<1x128xf32>
    %320 = arith.mulf %314, %294 : vector<1x128xf32>
    %321 = arith.addf %320, %316 : vector<1x128xf32>
    %322 = tpu.concatenate %120, %147, %174, %201, %228, %255, %282, %309 in 0 : vector<1x128xf32>, vector<1x128xf32>, vector<1x128xf32>, vector<1x128xf32>, vector<1x128xf32>, vector<1x128xf32>, vector<1x128xf32>, vector<1x128xf32> -> vector<8x128xf32>
    %323 = arith.index_cast %101 : i32 to index
    %c0_49 = arith.constant 0 : index
    %324 = vector.load %arg13[%323, %c0_49] : memref<8x128xf32, #tpu.memory_space<vmem>>, vector<8x128xf32>
    tpu.vector_store %arg13[%323, %c0_49], %322 {strides = array<i32>} : memref<8x128xf32, #tpu.memory_space<vmem>>, vector<8x128xf32>,
    %c1_i32_50 = arith.constant 1 : i32
    %c0_51 = arith.constant 0 : index
    %c0_52 = arith.constant 0 : index
    %325 = vector.load %arg12[%c0_51, %c0_52] : memref<8x128xf32, #tpu.memory_space<vmem>>, vector<8x128xf32>
    %c0_53 = arith.constant 0 : index
    %c0_54 = arith.constant 0 : index
    %326 = vector.load %arg13[%c0_53, %c0_54] : memref<8x128xf32, #tpu.memory_space<vmem>>, vector<8x128xf32>
    %327 = arith.mulf %325, %326 : vector<8x128xf32>
    %c0_55 = arith.constant 0 : index
    %c0_56 = arith.constant 0 : index
    %328 = vector.load %arg6[%c0_55, %c0_56] : memref<128x128xf32, #tpu.memory_space<vmem>>, vector<128x128xf32>
    %cst_57 = arith.constant dense<0.000000e+00> : vector<8x128xf32>
    %329 = tpu.matmul %327, %328, %cst_57 {dimension_numbers = #tpu.dot_dimension_numbers<[1], [0], [0], [1], [0, 0, 1, 1], [], []>} : vector<8x128xf32>, vector<128x128xf32>, vector<8x128xf32> -> vector<8x128xf32>
    %c0_58 = arith.constant 0 : index
    %c0_59 = arith.constant 0 : index
    %330 = vector.load %arg12[%c0_58, %c0_59] : memref<8x128xf32, #tpu.memory_space<vmem>>, vector<8x128xf32>
    tpu.vector_store %arg12[%c0_58, %c0_59], %329 {strides = array<i32>} : memref<8x128xf32, #tpu.memory_space<vmem>>, vector<8x128xf32>,
    %cst_60 = arith.constant 0.000000e+00 : f32
    %331 = vector.broadcast %cst_60 : f32 to vector<1x128xf32>
    %c0_i32_61 = arith.constant 0 : i32
    %c8_i32_62 = arith.constant 8 : i32
    %332 = arith.muli %c0_i32_61, %c8_i32_62 : i32
    %333 = tpu.assume_multiple %332, 8 : i32
    %334 = arith.index_cast %333 : i32 to index
    %c0_63 = arith.constant 0 : index
    %335 = vector.load %arg12[%334, %c0_63] : memref<8x128xf32, #tpu.memory_space<vmem>>, vector<8x128xf32>
    %336 = vector.extract_strided_slice %335 {offsets = [0, 0], sizes = [1, 128], strides = [1, 1]} : vector<8x128xf32> to vector<1x128xf32>
    %337 = arith.subf %336, %331 : vector<1x128xf32>
    %cst_64 = arith.constant 5.000000e-01 : f32
    %338 = vector.broadcast %cst_64 : f32 to vector<1x128xf32>
    %339 = arith.mulf %337, %338 : vector<1x128xf32>
    %340 = arith.addf %331, %339 : vector<1x128xf32>
    %cst_65 = arith.constant 1.000000e+00 : f32
    %341 = vector.broadcast %cst_65 : f32 to vector<1x128xf32>
    %342 = arith.cmpf oge, %340, %341 : vector<1x128xf32>
    %343 = arith.extui %342 : vector<1x128xi1> to vector<1x128xi32>
    %344 = arith.sitofp %343 : vector<1x128xi32> to vector<1x128xf32>
    %cst_66 = arith.constant 1.000000e+00 : f32
    %345 = vector.broadcast %cst_66 : f32 to vector<1x128xf32>
    %346 = arith.subf %345, %344 : vector<1x128xf32>
    %347 = arith.mulf %346, %340 : vector<1x128xf32>
    %348 = vector.extract_strided_slice %335 {offsets = [1, 0], sizes = [1, 128], strides = [1, 1]} : vector<8x128xf32> to vector<1x128xf32>
    %349 = arith.subf %348, %347 : vector<1x128xf32>
    %cst_67 = arith.constant 5.000000e-01 : f32
    %350 = vector.broadcast %cst_67 : f32 to vector<1x128xf32>
    %351 = arith.mulf %349, %350 : vector<1x128xf32>
    %352 = arith.addf %347, %351 : vector<1x128xf32>
    %cst_68 = arith.constant 1.000000e+00 : f32
    %353 = vector.broadcast %cst_68 : f32 to vector<1x128xf32>
    %354 = arith.cmpf oge, %352, %353 : vector<1x128xf32>
    %355 = arith.extui %354 : vector<1x128xi1> to vector<1x128xi32>
    %356 = arith.sitofp %355 : vector<1x128xi32> to vector<1x128xf32>
    %cst_69 = arith.constant 1.000000e+00 : f32
    %357 = vector.broadcast %cst_69 : f32 to vector<1x128xf32>
    %358 = arith.subf %357, %356 : vector<1x128xf32>
    %359 = arith.mulf %358, %352 : vector<1x128xf32>
    %360 = vector.extract_strided_slice %335 {offsets = [2, 0], sizes = [1, 128], strides = [1, 1]} : vector<8x128xf32> to vector<1x128xf32>
    %361 = arith.subf %360, %359 : vector<1x128xf32>
    %cst_70 = arith.constant 5.000000e-01 : f32
    %362 = vector.broadcast %cst_70 : f32 to vector<1x128xf32>
    %363 = arith.mulf %361, %362 : vector<1x128xf32>
    %364 = arith.addf %359, %363 : vector<1x128xf32>
    %cst_71 = arith.constant 1.000000e+00 : f32
    %365 = vector.broadcast %cst_71 : f32 to vector<1x128xf32>
    %366 = arith.cmpf oge, %364, %365 : vector<1x128xf32>
    %367 = arith.extui %366 : vector<1x128xi1> to vector<1x128xi32>
    %368 = arith.sitofp %367 : vector<1x128xi32> to vector<1x128xf32>
    %cst_72 = arith.constant 1.000000e+00 : f32
    %369 = vector.broadcast %cst_72 : f32 to vector<1x128xf32>
    %370 = arith.subf %369, %368 : vector<1x128xf32>
    %371 = arith.mulf %370, %364 : vector<1x128xf32>
    %372 = vector.extract_strided_slice %335 {offsets = [3, 0], sizes = [1, 128], strides = [1, 1]} : vector<8x128xf32> to vector<1x128xf32>
    %373 = arith.subf %372, %371 : vector<1x128xf32>
    %cst_73 = arith.constant 5.000000e-01 : f32
    %374 = vector.broadcast %cst_73 : f32 to vector<1x128xf32>
    %375 = arith.mulf %373, %374 : vector<1x128xf32>
    %376 = arith.addf %371, %375 : vector<1x128xf32>
    %cst_74 = arith.constant 1.000000e+00 : f32
    %377 = vector.broadcast %cst_74 : f32 to vector<1x128xf32>
    %378 = arith.cmpf oge, %376, %377 : vector<1x128xf32>
    %379 = arith.extui %378 : vector<1x128xi1> to vector<1x128xi32>
    %380 = arith.sitofp %379 : vector<1x128xi32> to vector<1x128xf32>
    %cst_75 = arith.constant 1.000000e+00 : f32
    %381 = vector.broadcast %cst_75 : f32 to vector<1x128xf32>
    %382 = arith.subf %381, %380 : vector<1x128xf32>
    %383 = arith.mulf %382, %376 : vector<1x128xf32>
    %384 = vector.extract_strided_slice %335 {offsets = [4, 0], sizes = [1, 128], strides = [1, 1]} : vector<8x128xf32> to vector<1x128xf32>
    %385 = arith.subf %384, %383 : vector<1x128xf32>
    %cst_76 = arith.constant 5.000000e-01 : f32
    %386 = vector.broadcast %cst_76 : f32 to vector<1x128xf32>
    %387 = arith.mulf %385, %386 : vector<1x128xf32>
    %388 = arith.addf %383, %387 : vector<1x128xf32>
    %cst_77 = arith.constant 1.000000e+00 : f32
    %389 = vector.broadcast %cst_77 : f32 to vector<1x128xf32>
    %390 = arith.cmpf oge, %388, %389 : vector<1x128xf32>
    %391 = arith.extui %390 : vector<1x128xi1> to vector<1x128xi32>
    %392 = arith.sitofp %391 : vector<1x128xi32> to vector<1x128xf32>
    %cst_78 = arith.constant 1.000000e+00 : f32
    %393 = vector.broadcast %cst_78 : f32 to vector<1x128xf32>
    %394 = arith.subf %393, %392 : vector<1x128xf32>
    %395 = arith.mulf %394, %388 : vector<1x128xf32>
    %396 = vector.extract_strided_slice %335 {offsets = [5, 0], sizes = [1, 128], strides = [1, 1]} : vector<8x128xf32> to vector<1x128xf32>
    %397 = arith.subf %396, %395 : vector<1x128xf32>
    %cst_79 = arith.constant 5.000000e-01 : f32
    %398 = vector.broadcast %cst_79 : f32 to vector<1x128xf32>
    %399 = arith.mulf %397, %398 : vector<1x128xf32>
    %400 = arith.addf %395, %399 : vector<1x128xf32>
    %cst_80 = arith.constant 1.000000e+00 : f32
    %401 = vector.broadcast %cst_80 : f32 to vector<1x128xf32>
    %402 = arith.cmpf oge, %400, %401 : vector<1x128xf32>
    %403 = arith.extui %402 : vector<1x128xi1> to vector<1x128xi32>
    %404 = arith.sitofp %403 : vector<1x128xi32> to vector<1x128xf32>
    %cst_81 = arith.constant 1.000000e+00 : f32
    %405 = vector.broadcast %cst_81 : f32 to vector<1x128xf32>
    %406 = arith.subf %405, %404 : vector<1x128xf32>
    %407 = arith.mulf %406, %400 : vector<1x128xf32>
    %408 = vector.extract_strided_slice %335 {offsets = [6, 0], sizes = [1, 128], strides = [1, 1]} : vector<8x128xf32> to vector<1x128xf32>
    %409 = arith.subf %408, %407 : vector<1x128xf32>
    %cst_82 = arith.constant 5.000000e-01 : f32
    %410 = vector.broadcast %cst_82 : f32 to vector<1x128xf32>
    %411 = arith.mulf %409, %410 : vector<1x128xf32>
    %412 = arith.addf %407, %411 : vector<1x128xf32>
    %cst_83 = arith.constant 1.000000e+00 : f32
    %413 = vector.broadcast %cst_83 : f32 to vector<1x128xf32>
    %414 = arith.cmpf oge, %412, %413 : vector<1x128xf32>
    %415 = arith.extui %414 : vector<1x128xi1> to vector<1x128xi32>
    %416 = arith.sitofp %415 : vector<1x128xi32> to vector<1x128xf32>
    %cst_84 = arith.constant 1.000000e+00 : f32
    %417 = vector.broadcast %cst_84 : f32 to vector<1x128xf32>
    %418 = arith.subf %417, %416 : vector<1x128xf32>
    %419 = arith.mulf %418, %412 : vector<1x128xf32>
    %420 = vector.extract_strided_slice %335 {offsets = [7, 0], sizes = [1, 128], strides = [1, 1]} : vector<8x128xf32> to vector<1x128xf32>
    %421 = arith.subf %420, %419 : vector<1x128xf32>
    %cst_85 = arith.constant 5.000000e-01 : f32
    %422 = vector.broadcast %cst_85 : f32 to vector<1x128xf32>
    %423 = arith.mulf %421, %422 : vector<1x128xf32>
    %424 = arith.addf %419, %423 : vector<1x128xf32>
    %cst_86 = arith.constant 1.000000e+00 : f32
    %425 = vector.broadcast %cst_86 : f32 to vector<1x128xf32>
    %426 = arith.cmpf oge, %424, %425 : vector<1x128xf32>
    %427 = arith.extui %426 : vector<1x128xi1> to vector<1x128xi32>
    %428 = arith.sitofp %427 : vector<1x128xi32> to vector<1x128xf32>
    %cst_87 = arith.constant 1.000000e+00 : f32
    %429 = vector.broadcast %cst_87 : f32 to vector<1x128xf32>
    %430 = arith.subf %429, %428 : vector<1x128xf32>
    %431 = arith.mulf %430, %424 : vector<1x128xf32>
    %432 = tpu.concatenate %344, %356, %368, %380, %392, %404, %416, %428 in 0 : vector<1x128xf32>, vector<1x128xf32>, vector<1x128xf32>, vector<1x128xf32>, vector<1x128xf32>, vector<1x128xf32>, vector<1x128xf32>, vector<1x128xf32> -> vector<8x128xf32>
    %433 = arith.index_cast %333 : i32 to index
    %c0_88 = arith.constant 0 : index
    %434 = vector.load %arg12[%433, %c0_88] : memref<8x128xf32, #tpu.memory_space<vmem>>, vector<8x128xf32>
    tpu.vector_store %arg12[%433, %c0_88], %432 {strides = array<i32>} : memref<8x128xf32, #tpu.memory_space<vmem>>, vector<8x128xf32>,
    %c1_i32_89 = arith.constant 1 : i32
    %c0_90 = arith.constant 0 : index
    %c0_91 = arith.constant 0 : index
    %435 = vector.load %arg11[%c0_90, %c0_91] : memref<8x128xf32, #tpu.memory_space<vmem>>, vector<8x128xf32>
    %c0_92 = arith.constant 0 : index
    %c0_93 = arith.constant 0 : index
    %436 = vector.load %arg12[%c0_92, %c0_93] : memref<8x128xf32, #tpu.memory_space<vmem>>, vector<8x128xf32>
    %437 = arith.addf %435, %436 : vector<8x128xf32>
    %c0_94 = arith.constant 0 : index
    %c0_95 = arith.constant 0 : index
    %438 = vector.load %arg11[%c0_94, %c0_95] : memref<8x128xf32, #tpu.memory_space<vmem>>, vector<8x128xf32>
    tpu.vector_store %arg11[%c0_94, %c0_95], %437 {strides = array<i32>} : memref<8x128xf32, #tpu.memory_space<vmem>>, vector<8x128xf32>,
    %c0_96 = arith.constant 0 : index
    %c0_97 = arith.constant 0 : index
    %439 = vector.load %arg11[%c0_96, %c0_97] : memref<8x128xf32, #tpu.memory_space<vmem>>, vector<8x128xf32>
    %cst_98 = arith.constant dense<0.000000e+00> : vector<8xf32>
    %440 = vector.multi_reduction <add>, %439, %cst_98 [1] : vector<8x128xf32> to vector<8xf32>
    %441 = vector.shape_cast %440 : vector<8xf32> to vector<8x1xf32>
    %cst_99 = arith.constant 1.280000e+02 : f32
    %442 = vector.broadcast %cst_99 : f32 to vector<8x1xf32>
    %443 = arith.divf %441, %442 : vector<8x1xf32>
    %444 = vector.broadcast %443 : vector<8x1xf32> to vector<8x128xf32>
    %445 = arith.subf %439, %444 : vector<8x128xf32>
    %446 = arith.mulf %445, %445 : vector<8x128xf32>
    %cst_100 = arith.constant dense<0.000000e+00> : vector<8xf32>
    %447 = vector.multi_reduction <add>, %446, %cst_100 [1] : vector<8x128xf32> to vector<8xf32>
    %448 = vector.shape_cast %447 : vector<8xf32> to vector<8x1xf32>
    %cst_101 = arith.constant 1.280000e+02 : f32
    %449 = vector.broadcast %cst_101 : f32 to vector<8x1xf32>
    %450 = arith.divf %448, %449 : vector<8x1xf32>
    %451 = vector.broadcast %443 : vector<8x1xf32> to vector<8x128xf32>
    %452 = arith.subf %439, %451 : vector<8x128xf32>
    %cst_102 = arith.constant 9.99999974E-6 : f32
    %453 = vector.broadcast %cst_102 : f32 to vector<8x1xf32>
    %454 = arith.addf %450, %453 : vector<8x1xf32>
    %455 = math.rsqrt %454 : vector<8x1xf32>
    %456 = vector.broadcast %455 : vector<8x1xf32> to vector<8x128xf32>
    %457 = arith.mulf %452, %456 : vector<8x128xf32>
    %c4 = arith.constant 4 : index
    %c0_103 = arith.constant 0 : index
    %458 = vector.load %arg2[%c4, %c0_103] : memref<16x128xf32, #tpu.memory_space<vmem>>, vector<1x128xf32>
    %459 = vector.broadcast %458 : vector<1x128xf32> to vector<8x128xf32>
    %460 = arith.mulf %457, %459 : vector<8x128xf32>
    %c5 = arith.constant 5 : index
    %c0_104 = arith.constant 0 : index
    %461 = vector.load %arg2[%c5, %c0_104] : memref<16x128xf32, #tpu.memory_space<vmem>>, vector<1x128xf32>
    %462 = vector.broadcast %461 : vector<1x128xf32> to vector<8x128xf32>
    %463 = arith.addf %460, %462 : vector<8x128xf32>
    %c1_i32_105 = arith.constant 1 : i32
    %464 = tpu.dynamic_rotate %463 by %c1_i32_105 dim 0 : vector<8x128xf32>, i32 -> vector<8x128xf32>
    %cst_106 = arith.constant 0.000000e+00 : f32
    %465 = vector.broadcast %cst_106 : f32 to vector<8x128xf32>
    %466 = arith.select %2, %465, %464 : vector<8x128xi1>, vector<8x128xf32>
    %c9 = arith.constant 9 : index
    %c0_107 = arith.constant 0 : index
    %467 = vector.load %arg2[%c9, %c0_107] : memref<16x128xf32, #tpu.memory_space<vmem>>, vector<1x128xf32>
    %468 = vector.broadcast %467 : vector<1x128xf32> to vector<8x128xf32>
    %469 = arith.mulf %468, %463 : vector<8x128xf32>
    %cst_108 = arith.constant 1.000000e+00 : f32
    %470 = vector.broadcast %cst_108 : f32 to vector<1x128xf32>
    %471 = arith.subf %470, %467 : vector<1x128xf32>
    %472 = vector.broadcast %471 : vector<1x128xf32> to vector<8x128xf32>
    %473 = arith.mulf %472, %466 : vector<8x128xf32>
    %474 = arith.addf %469, %473 : vector<8x128xf32>
    %c0_109 = arith.constant 0 : index
    %c0_110 = arith.constant 0 : index
    %475 = vector.load %arg13[%c0_109, %c0_110] : memref<8x128xf32, #tpu.memory_space<vmem>>, vector<8x128xf32>
    tpu.vector_store %arg13[%c0_109, %c0_110], %474 {strides = array<i32>} : memref<8x128xf32, #tpu.memory_space<vmem>>, vector<8x128xf32>,
    %c10 = arith.constant 10 : index
    %c0_111 = arith.constant 0 : index
    %476 = vector.load %arg2[%c10, %c0_111] : memref<16x128xf32, #tpu.memory_space<vmem>>, vector<1x128xf32>
    %477 = vector.broadcast %476 : vector<1x128xf32> to vector<8x128xf32>
    %478 = arith.mulf %477, %463 : vector<8x128xf32>
    %cst_112 = arith.constant 1.000000e+00 : f32
    %479 = vector.broadcast %cst_112 : f32 to vector<1x128xf32>
    %480 = arith.subf %479, %476 : vector<1x128xf32>
    %481 = vector.broadcast %480 : vector<1x128xf32> to vector<8x128xf32>
    %482 = arith.mulf %481, %466 : vector<8x128xf32>
    %483 = arith.addf %478, %482 : vector<8x128xf32>
    %c0_113 = arith.constant 0 : index
    %c0_114 = arith.constant 0 : index
    %484 = vector.load %arg14[%c0_113, %c0_114] : memref<8x128xf32, #tpu.memory_space<vmem>>, vector<8x128xf32>
    tpu.vector_store %arg14[%c0_113, %c0_114], %483 {strides = array<i32>} : memref<8x128xf32, #tpu.memory_space<vmem>>, vector<8x128xf32>,
    %c0_i32_115 = arith.constant 0 : i32
    %c8_i32_116 = arith.constant 8 : i32
    %485 = arith.muli %c0_i32_115, %c8_i32_116 : i32
    %486 = tpu.assume_multiple %485, 8 : i32
    %487 = arith.index_cast %486 : i32 to index
    %c0_117 = arith.constant 0 : index
    %488 = vector.load %arg13[%487, %c0_117] : memref<8x128xf32, #tpu.memory_space<vmem>>, vector<8x128xf32>
    %489 = arith.index_cast %486 : i32 to index
    %c0_118 = arith.constant 0 : index
    %490 = vector.load %arg14[%489, %c0_118] : memref<8x128xf32, #tpu.memory_space<vmem>>, vector<8x128xf32>
    %c0_119 = arith.constant 0 : index
    %c0_120 = arith.constant 0 : index
    %491 = vector.load %arg7[%c0_119, %c0_120] : memref<128x512xf32, #tpu.memory_space<vmem>>, vector<128x512xf32>
    %cst_121 = arith.constant dense<0.000000e+00> : vector<8x512xf32>
    %492 = tpu.matmul %488, %491, %cst_121 {dimension_numbers = #tpu.dot_dimension_numbers<[1], [0], [0], [1], [0, 0, 1, 1], [], []>} : vector<8x128xf32>, vector<128x512xf32>, vector<8x512xf32> -> vector<8x512xf32>
    %cst_122 = arith.constant 0.000000e+00 : f32
    %493 = vector.broadcast %cst_122 : f32 to vector<8x512xf32>
    %494 = arith.maximumf %492, %493 : vector<8x512xf32>
    %495 = arith.mulf %494, %494 : vector<8x512xf32>
    %c0_123 = arith.constant 0 : index
    %c0_124 = arith.constant 0 : index
    %496 = vector.load %arg8[%c0_123, %c0_124] : memref<512x128xf32, #tpu.memory_space<vmem>>, vector<512x128xf32>
    %cst_125 = arith.constant dense<0.000000e+00> : vector<8x128xf32>
    %497 = tpu.matmul %495, %496, %cst_125 {dimension_numbers = #tpu.dot_dimension_numbers<[1], [0], [0], [1], [0, 0, 1, 1], [], []>} : vector<8x512xf32>, vector<512x128xf32>, vector<8x128xf32> -> vector<8x128xf32>
    %c0_126 = arith.constant 0 : index
    %c0_127 = arith.constant 0 : index
    %498 = vector.load %arg9[%c0_126, %c0_127] : memref<128x128xf32, #tpu.memory_space<vmem>>, vector<128x128xf32>
    %cst_128 = arith.constant dense<0.000000e+00> : vector<8x128xf32>
    %499 = tpu.matmul %490, %498, %cst_128 {dimension_numbers = #tpu.dot_dimension_numbers<[1], [0], [0], [1], [0, 0, 1, 1], [], []>} : vector<8x128xf32>, vector<128x128xf32>, vector<8x128xf32> -> vector<8x128xf32>
    %500 = arith.negf %499 : vector<8x128xf32>
    %501 = math.exp %500 : vector<8x128xf32>
    %cst_129 = arith.constant 1.000000e+00 : f32
    %502 = vector.broadcast %cst_129 : f32 to vector<8x128xf32>
    %503 = arith.addf %502, %501 : vector<8x128xf32>
    %504 = arith.divf %502, %503 : vector<8x128xf32>
    %505 = arith.mulf %504, %497 : vector<8x128xf32>
    %506 = arith.index_cast %486 : i32 to index
    %c0_130 = arith.constant 0 : index
    %507 = vector.load %arg12[%506, %c0_130] : memref<8x128xf32, #tpu.memory_space<vmem>>, vector<8x128xf32>
    tpu.vector_store %arg12[%506, %c0_130], %505 {strides = array<i32>} : memref<8x128xf32, #tpu.memory_space<vmem>>, vector<8x128xf32>,
    %c1_i32_131 = arith.constant 1 : i32
    %cst_132 = arith.constant 0.000000e+00 : f32
    %508 = vector.broadcast %cst_132 : f32 to vector<1x128xf32>
    %c0_i32_133 = arith.constant 0 : i32
    %c8_i32_134 = arith.constant 8 : i32
    %509 = arith.muli %c0_i32_133, %c8_i32_134 : i32
    %510 = tpu.assume_multiple %509, 8 : i32
    %511 = arith.index_cast %510 : i32 to index
    %c0_135 = arith.constant 0 : index
    %512 = vector.load %arg12[%511, %c0_135] : memref<8x128xf32, #tpu.memory_space<vmem>>, vector<8x128xf32>
    %513 = vector.extract_strided_slice %512 {offsets = [0, 0], sizes = [1, 128], strides = [1, 1]} : vector<8x128xf32> to vector<1x128xf32>
    %514 = arith.subf %513, %508 : vector<1x128xf32>
    %cst_136 = arith.constant 5.000000e-01 : f32
    %515 = vector.broadcast %cst_136 : f32 to vector<1x128xf32>
    %516 = arith.mulf %514, %515 : vector<1x128xf32>
    %517 = arith.addf %508, %516 : vector<1x128xf32>
    %cst_137 = arith.constant 1.000000e+00 : f32
    %518 = vector.broadcast %cst_137 : f32 to vector<1x128xf32>
    %519 = arith.cmpf oge, %517, %518 : vector<1x128xf32>
    %520 = arith.extui %519 : vector<1x128xi1> to vector<1x128xi32>
    %521 = arith.sitofp %520 : vector<1x128xi32> to vector<1x128xf32>
    %cst_138 = arith.constant 1.000000e+00 : f32
    %522 = vector.broadcast %cst_138 : f32 to vector<1x128xf32>
    %523 = arith.subf %522, %521 : vector<1x128xf32>
    %524 = arith.mulf %523, %517 : vector<1x128xf32>
    %525 = vector.extract_strided_slice %512 {offsets = [1, 0], sizes = [1, 128], strides = [1, 1]} : vector<8x128xf32> to vector<1x128xf32>
    %526 = arith.subf %525, %524 : vector<1x128xf32>
    %cst_139 = arith.constant 5.000000e-01 : f32
    %527 = vector.broadcast %cst_139 : f32 to vector<1x128xf32>
    %528 = arith.mulf %526, %527 : vector<1x128xf32>
    %529 = arith.addf %524, %528 : vector<1x128xf32>
    %cst_140 = arith.constant 1.000000e+00 : f32
    %530 = vector.broadcast %cst_140 : f32 to vector<1x128xf32>
    %531 = arith.cmpf oge, %529, %530 : vector<1x128xf32>
    %532 = arith.extui %531 : vector<1x128xi1> to vector<1x128xi32>
    %533 = arith.sitofp %532 : vector<1x128xi32> to vector<1x128xf32>
    %cst_141 = arith.constant 1.000000e+00 : f32
    %534 = vector.broadcast %cst_141 : f32 to vector<1x128xf32>
    %535 = arith.subf %534, %533 : vector<1x128xf32>
    %536 = arith.mulf %535, %529 : vector<1x128xf32>
    %537 = vector.extract_strided_slice %512 {offsets = [2, 0], sizes = [1, 128], strides = [1, 1]} : vector<8x128xf32> to vector<1x128xf32>
    %538 = arith.subf %537, %536 : vector<1x128xf32>
    %cst_142 = arith.constant 5.000000e-01 : f32
    %539 = vector.broadcast %cst_142 : f32 to vector<1x128xf32>
    %540 = arith.mulf %538, %539 : vector<1x128xf32>
    %541 = arith.addf %536, %540 : vector<1x128xf32>
    %cst_143 = arith.constant 1.000000e+00 : f32
    %542 = vector.broadcast %cst_143 : f32 to vector<1x128xf32>
    %543 = arith.cmpf oge, %541, %542 : vector<1x128xf32>
    %544 = arith.extui %543 : vector<1x128xi1> to vector<1x128xi32>
    %545 = arith.sitofp %544 : vector<1x128xi32> to vector<1x128xf32>
    %cst_144 = arith.constant 1.000000e+00 : f32
    %546 = vector.broadcast %cst_144 : f32 to vector<1x128xf32>
    %547 = arith.subf %546, %545 : vector<1x128xf32>
    %548 = arith.mulf %547, %541 : vector<1x128xf32>
    %549 = vector.extract_strided_slice %512 {offsets = [3, 0], sizes = [1, 128], strides = [1, 1]} : vector<8x128xf32> to vector<1x128xf32>
    %550 = arith.subf %549, %548 : vector<1x128xf32>
    %cst_145 = arith.constant 5.000000e-01 : f32
    %551 = vector.broadcast %cst_145 : f32 to vector<1x128xf32>
    %552 = arith.mulf %550, %551 : vector<1x128xf32>
    %553 = arith.addf %548, %552 : vector<1x128xf32>
    %cst_146 = arith.constant 1.000000e+00 : f32
    %554 = vector.broadcast %cst_146 : f32 to vector<1x128xf32>
    %555 = arith.cmpf oge, %553, %554 : vector<1x128xf32>
    %556 = arith.extui %555 : vector<1x128xi1> to vector<1x128xi32>
    %557 = arith.sitofp %556 : vector<1x128xi32> to vector<1x128xf32>
    %cst_147 = arith.constant 1.000000e+00 : f32
    %558 = vector.broadcast %cst_147 : f32 to vector<1x128xf32>
    %559 = arith.subf %558, %557 : vector<1x128xf32>
    %560 = arith.mulf %559, %553 : vector<1x128xf32>
    %561 = vector.extract_strided_slice %512 {offsets = [4, 0], sizes = [1, 128], strides = [1, 1]} : vector<8x128xf32> to vector<1x128xf32>
    %562 = arith.subf %561, %560 : vector<1x128xf32>
    %cst_148 = arith.constant 5.000000e-01 : f32
    %563 = vector.broadcast %cst_148 : f32 to vector<1x128xf32>
    %564 = arith.mulf %562, %563 : vector<1x128xf32>
    %565 = arith.addf %560, %564 : vector<1x128xf32>
    %cst_149 = arith.constant 1.000000e+00 : f32
    %566 = vector.broadcast %cst_149 : f32 to vector<1x128xf32>
    %567 = arith.cmpf oge, %565, %566 : vector<1x128xf32>
    %568 = arith.extui %567 : vector<1x128xi1> to vector<1x128xi32>
    %569 = arith.sitofp %568 : vector<1x128xi32> to vector<1x128xf32>
    %cst_150 = arith.constant 1.000000e+00 : f32
    %570 = vector.broadcast %cst_150 : f32 to vector<1x128xf32>
    %571 = arith.subf %570, %569 : vector<1x128xf32>
    %572 = arith.mulf %571, %565 : vector<1x128xf32>
    %573 = vector.extract_strided_slice %512 {offsets = [5, 0], sizes = [1, 128], strides = [1, 1]} : vector<8x128xf32> to vector<1x128xf32>
    %574 = arith.subf %573, %572 : vector<1x128xf32>
    %cst_151 = arith.constant 5.000000e-01 : f32
    %575 = vector.broadcast %cst_151 : f32 to vector<1x128xf32>
    %576 = arith.mulf %574, %575 : vector<1x128xf32>
    %577 = arith.addf %572, %576 : vector<1x128xf32>
    %cst_152 = arith.constant 1.000000e+00 : f32
    %578 = vector.broadcast %cst_152 : f32 to vector<1x128xf32>
    %579 = arith.cmpf oge, %577, %578 : vector<1x128xf32>
    %580 = arith.extui %579 : vector<1x128xi1> to vector<1x128xi32>
    %581 = arith.sitofp %580 : vector<1x128xi32> to vector<1x128xf32>
    %cst_153 = arith.constant 1.000000e+00 : f32
    %582 = vector.broadcast %cst_153 : f32 to vector<1x128xf32>
    %583 = arith.subf %582, %581 : vector<1x128xf32>
    %584 = arith.mulf %583, %577 : vector<1x128xf32>
    %585 = vector.extract_strided_slice %512 {offsets = [6, 0], sizes = [1, 128], strides = [1, 1]} : vector<8x128xf32> to vector<1x128xf32>
    %586 = arith.subf %585, %584 : vector<1x128xf32>
    %cst_154 = arith.constant 5.000000e-01 : f32
    %587 = vector.broadcast %cst_154 : f32 to vector<1x128xf32>
    %588 = arith.mulf %586, %587 : vector<1x128xf32>
    %589 = arith.addf %584, %588 : vector<1x128xf32>
    %cst_155 = arith.constant 1.000000e+00 : f32
    %590 = vector.broadcast %cst_155 : f32 to vector<1x128xf32>
    %591 = arith.cmpf oge, %589, %590 : vector<1x128xf32>
    %592 = arith.extui %591 : vector<1x128xi1> to vector<1x128xi32>
    %593 = arith.sitofp %592 : vector<1x128xi32> to vector<1x128xf32>
    %cst_156 = arith.constant 1.000000e+00 : f32
    %594 = vector.broadcast %cst_156 : f32 to vector<1x128xf32>
    %595 = arith.subf %594, %593 : vector<1x128xf32>
    %596 = arith.mulf %595, %589 : vector<1x128xf32>
    %597 = vector.extract_strided_slice %512 {offsets = [7, 0], sizes = [1, 128], strides = [1, 1]} : vector<8x128xf32> to vector<1x128xf32>
    %598 = arith.subf %597, %596 : vector<1x128xf32>
    %cst_157 = arith.constant 5.000000e-01 : f32
    %599 = vector.broadcast %cst_157 : f32 to vector<1x128xf32>
    %600 = arith.mulf %598, %599 : vector<1x128xf32>
    %601 = arith.addf %596, %600 : vector<1x128xf32>
    %cst_158 = arith.constant 1.000000e+00 : f32
    %602 = vector.broadcast %cst_158 : f32 to vector<1x128xf32>
    %603 = arith.cmpf oge, %601, %602 : vector<1x128xf32>
    %604 = arith.extui %603 : vector<1x128xi1> to vector<1x128xi32>
    %605 = arith.sitofp %604 : vector<1x128xi32> to vector<1x128xf32>
    %cst_159 = arith.constant 1.000000e+00 : f32
    %606 = vector.broadcast %cst_159 : f32 to vector<1x128xf32>
    %607 = arith.subf %606, %605 : vector<1x128xf32>
    %608 = arith.mulf %607, %601 : vector<1x128xf32>
    %609 = tpu.concatenate %521, %533, %545, %557, %569, %581, %593, %605 in 0 : vector<1x128xf32>, vector<1x128xf32>, vector<1x128xf32>, vector<1x128xf32>, vector<1x128xf32>, vector<1x128xf32>, vector<1x128xf32>, vector<1x128xf32> -> vector<8x128xf32>
    %610 = arith.index_cast %510 : i32 to index
    %c0_160 = arith.constant 0 : index
    %611 = vector.load %arg12[%610, %c0_160] : memref<8x128xf32, #tpu.memory_space<vmem>>, vector<8x128xf32>
    tpu.vector_store %arg12[%610, %c0_160], %609 {strides = array<i32>} : memref<8x128xf32, #tpu.memory_space<vmem>>, vector<8x128xf32>,
    %c1_i32_161 = arith.constant 1 : i32
    %c0_162 = arith.constant 0 : index
    %c0_163 = arith.constant 0 : index
    %612 = vector.load %arg11[%c0_162, %c0_163] : memref<8x128xf32, #tpu.memory_space<vmem>>, vector<8x128xf32>
    %c0_164 = arith.constant 0 : index
    %c0_165 = arith.constant 0 : index
    %613 = vector.load %arg12[%c0_164, %c0_165] : memref<8x128xf32, #tpu.memory_space<vmem>>, vector<8x128xf32>
    %614 = arith.addf %612, %613 : vector<8x128xf32>
    %c0_166 = arith.constant 0 : index
    %c0_167 = arith.constant 0 : index
    %c0_168 = arith.constant 0 : index
    %615 = vector.load %arg10[%c0_166, %c0_167, %c0_168] : memref<1x8x128xf32, #tpu.memory_space<vmem>>, vector<1x8x128xf32>
    %616 = vector.shape_cast %615 : vector<1x8x128xf32> to vector<8x128xf32>
    %617 = vector.shape_cast %614 : vector<8x128xf32> to vector<1x8x128xf32>
    tpu.vector_store %arg10[%c0_166, %c0_167, %c0_168], %617 {strides = array<i32>} : memref<1x8x128xf32, #tpu.memory_space<vmem>>, vector<1x8x128xf32>,
    return
  }
  func.func @transform_0(%arg0: i32) -> (i32, i32, i32) {
    %c0_i32 = arith.constant 0 : i32
    %c0_i32_0 = arith.constant 0 : i32
    %c0_i32_1 = arith.constant 0 : i32
    return %arg0, %c0_i32, %c0_i32_0 : i32, i32, i32
  }
  func.func @transform_1(%arg0: i32) -> (i32, i32) {
    %c0_i32 = arith.constant 0 : i32
    %c0_i32_0 = arith.constant 0 : i32
    %c0_i32_1 = arith.constant 0 : i32
    return %c0_i32, %c0_i32_0 : i32, i32
  }
  func.func @transform_2(%arg0: i32) -> (i32, i32) {
    %c0_i32 = arith.constant 0 : i32
    %c0_i32_0 = arith.constant 0 : i32
    %c0_i32_1 = arith.constant 0 : i32
    return %c0_i32, %c0_i32_0 : i32, i32
  }
  func.func @transform_3(%arg0: i32) -> (i32, i32) {
    %c0_i32 = arith.constant 0 : i32
    %c0_i32_0 = arith.constant 0 : i32
    %c0_i32_1 = arith.constant 0 : i32
    return %c0_i32, %c0_i32_0 : i32, i32
  }
  func.func @transform_4(%arg0: i32) -> (i32, i32) {
    %c0_i32 = arith.constant 0 : i32
    %c0_i32_0 = arith.constant 0 : i32
    %c0_i32_1 = arith.constant 0 : i32
    return %c0_i32, %c0_i32_0 : i32, i32
  }
  func.func @transform_5(%arg0: i32) -> (i32, i32) {
    %c0_i32 = arith.constant 0 : i32
    %c0_i32_0 = arith.constant 0 : i32
    %c0_i32_1 = arith.constant 0 : i32
    return %c0_i32, %c0_i32_0 : i32, i32
  }
  func.func @transform_6(%arg0: i32) -> (i32, i32) {
    %c0_i32 = arith.constant 0 : i32
    %c0_i32_0 = arith.constant 0 : i32
    %c0_i32_1 = arith.constant 0 : i32
    return %c0_i32, %c0_i32_0 : i32, i32
  }
  func.func @transform_7(%arg0: i32) -> (i32, i32) {
    %c0_i32 = arith.constant 0 : i32
    %c0_i32_0 = arith.constant 0 : i32
    %c0_i32_1 = arith.constant 0 : i32
    return %c0_i32, %c0_i32_0 : i32, i32
  }
  func.func @transform_8(%arg0: i32) -> (i32, i32) {
    %c0_i32 = arith.constant 0 : i32
    %c0_i32_0 = arith.constant 0 : i32
    %c0_i32_1 = arith.constant 0 : i32
    return %c0_i32, %c0_i32_0 : i32, i32
  }
  func.func @transform_9(%arg0: i32) -> (i32, i32, i32) {
    %c0_i32 = arith.constant 0 : i32
    %c0_i32_0 = arith.constant 0 : i32
    %c0_i32_1 = arith.constant 0 : i32
    return %arg0, %c0_i32, %c0_i32_0 : i32, i32, i32
  }
}

module attributes {stable_mosaic.version = 11 : i64} {
  func.func @kernel(%arg0: i32, %arg1: memref<1x8x128xf32, #tpu.memory_space<vmem>>, %arg2: memref<16x128xf32, #tpu.memory_space<vmem>>, %arg3: memref<128x128xf32, #tpu.memory_space<vmem>>, %arg4: memref<128x128xf32, #tpu.memory_space<vmem>>, %arg5: memref<128x128xf32, #tpu.memory_space<vmem>>, %arg6: memref<128x128xf32, #tpu.memory_space<vmem>>, %arg7: memref<128x512xf32, #tpu.memory_space<vmem>>, %arg8: memref<512x128xf32, #tpu.memory_space<vmem>>, %arg9: memref<128x128xf32, #tpu.memory_space<vmem>>, %arg10: memref<1x8x128xf32, #tpu.memory_space<vmem>>, %arg11: memref<8x128xf32, #tpu.memory_space<vmem>>, %arg12: memref<8x128xf32, #tpu.memory_space<vmem>>, %arg13: memref<8x128xf32, #tpu.memory_space<vmem>>, %arg14: memref<8x128xf32, #tpu.memory_space<vmem>>) attributes {dimension_semantics = [#tpu.dimension_semantics<parallel>], iteration_bounds = array<i64: 2>, scalar_prefetch = 0 : i64, scratch_operands = 4 : i64, tpu.core_type = #tpu.core_type<tc>, window_params = [{transform_indices = @transform_0, window_bounds = array<i64: 1, 8, 128>}, {pipeline_mode = #tpu.pipeline_mode<synchronous>, transform_indices = @transform_1, window_bounds = array<i64: 16, 128>}, {pipeline_mode = #tpu.pipeline_mode<synchronous>, transform_indices = @transform_2, window_bounds = array<i64: 128, 128>}, {pipeline_mode = #tpu.pipeline_mode<synchronous>, transform_indices = @transform_3, window_bounds = array<i64: 128, 128>}, {pipeline_mode = #tpu.pipeline_mode<synchronous>, transform_indices = @transform_4, window_bounds = array<i64: 128, 128>}, {pipeline_mode = #tpu.pipeline_mode<synchronous>, transform_indices = @transform_5, window_bounds = array<i64: 128, 128>}, {pipeline_mode = #tpu.pipeline_mode<synchronous>, transform_indices = @transform_6, window_bounds = array<i64: 128, 512>}, {pipeline_mode = #tpu.pipeline_mode<synchronous>, transform_indices = @transform_7, window_bounds = array<i64: 512, 128>}, {pipeline_mode = #tpu.pipeline_mode<synchronous>, transform_indices = @transform_8, window_bounds = array<i64: 128, 128>}, {transform_indices = @transform_9, window_bounds = array<i64: 1, 8, 128>}]} {
    %0 = tpu.iota {dimensions = array<i32: 0>} : vector<8x128xi32>
    %c0_i32 = arith.constant 0 : i32
    %1 = vector.broadcast %c0_i32 : i32 to vector<8x128xi32>
    %2 = arith.cmpi eq, %0, %1 : vector<8x128xi32>
    %c0 = arith.constant 0 : index
    %c0_0 = arith.constant 0 : index
    %c0_1 = arith.constant 0 : index
    %3 = vector.load %arg1[%c0, %c0_0, %c0_1] : memref<1x8x128xf32, #tpu.memory_space<vmem>>, vector<1x8x128xf32>
    %4 = vector.shape_cast %3 : vector<1x8x128xf32> to vector<8x128xf32>
    %cst = arith.constant dense<0.000000e+00> : vector<8xf32>
    %5 = vector.multi_reduction <add>, %4, %cst [1] : vector<8x128xf32> to vector<8xf32>
    %6 = vector.shape_cast %5 : vector<8xf32> to vector<8x1xf32>
    %cst_2 = arith.constant 1.280000e+02 : f32
    %7 = vector.broadcast %cst_2 : f32 to vector<8x1xf32>
    %8 = arith.divf %6, %7 : vector<8x1xf32>
    %9 = vector.broadcast %8 : vector<8x1xf32> to vector<8x128xf32>
    %10 = arith.subf %4, %9 : vector<8x128xf32>
    %11 = arith.mulf %10, %10 : vector<8x128xf32>
    %cst_3 = arith.constant dense<0.000000e+00> : vector<8xf32>
    %12 = vector.multi_reduction <add>, %11, %cst_3 [1] : vector<8x128xf32> to vector<8xf32>
    %13 = vector.shape_cast %12 : vector<8xf32> to vector<8x1xf32>
    %cst_4 = arith.constant 1.280000e+02 : f32
    %14 = vector.broadcast %cst_4 : f32 to vector<8x1xf32>
    %15 = arith.divf %13, %14 : vector<8x1xf32>
    %16 = vector.broadcast %8 : vector<8x1xf32> to vector<8x128xf32>
    %17 = arith.subf %4, %16 : vector<8x128xf32>
    %cst_5 = arith.constant 9.99999974E-6 : f32
    %18 = vector.broadcast %cst_5 : f32 to vector<8x1xf32>
    %19 = arith.addf %15, %18 : vector<8x1xf32>
    %20 = math.rsqrt %19 : vector<8x1xf32>
    %21 = vector.broadcast %20 : vector<8x1xf32> to vector<8x128xf32>
    %22 = arith.mulf %17, %21 : vector<8x128xf32>
    %c0_6 = arith.constant 0 : index
    %c0_7 = arith.constant 0 : index
    %23 = vector.load %arg2[%c0_6, %c0_7] : memref<16x128xf32, #tpu.memory_space<vmem>>, vector<1x128xf32>
    %24 = vector.broadcast %23 : vector<1x128xf32> to vector<8x128xf32>
    %25 = arith.mulf %22, %24 : vector<8x128xf32>
    %c1 = arith.constant 1 : index
    %c0_8 = arith.constant 0 : index
    %26 = vector.load %arg2[%c1, %c0_8] : memref<16x128xf32, #tpu.memory_space<vmem>>, vector<1x128xf32>
    %27 = vector.broadcast %26 : vector<1x128xf32> to vector<8x128xf32>
    %28 = arith.addf %25, %27 : vector<8x128xf32>
    %c0_9 = arith.constant 0 : index
    %c0_10 = arith.constant 0 : index
    %29 = vector.load %arg11[%c0_9, %c0_10] : memref<8x128xf32, #tpu.memory_space<vmem>>, vector<8x128xf32>
    tpu.vector_store %arg11[%c0_9, %c0_10], %28 {strides = array<i32>} : memref<8x128xf32, #tpu.memory_space<vmem>>, vector<8x128xf32>,
    %cst_11 = arith.constant dense<0.000000e+00> : vector<8xf32>
    %30 = vector.multi_reduction <add>, %28, %cst_11 [1] : vector<8x128xf32> to vector<8xf32>
    %31 = vector.shape_cast %30 : vector<8xf32> to vector<8x1xf32>
    %cst_12 = arith.constant 1.280000e+02 : f32
    %32 = vector.broadcast %cst_12 : f32 to vector<8x1xf32>
    %33 = arith.divf %31, %32 : vector<8x1xf32>
    %34 = vector.broadcast %33 : vector<8x1xf32> to vector<8x128xf32>
    %35 = arith.subf %28, %34 : vector<8x128xf32>
    %36 = arith.mulf %35, %35 : vector<8x128xf32>
    %cst_13 = arith.constant dense<0.000000e+00> : vector<8xf32>
    %37 = vector.multi_reduction <add>, %36, %cst_13 [1] : vector<8x128xf32> to vector<8xf32>
    %38 = vector.shape_cast %37 : vector<8xf32> to vector<8x1xf32>
    %cst_14 = arith.constant 1.280000e+02 : f32
    %39 = vector.broadcast %cst_14 : f32 to vector<8x1xf32>
    %40 = arith.divf %38, %39 : vector<8x1xf32>
    %41 = vector.broadcast %33 : vector<8x1xf32> to vector<8x128xf32>
    %42 = arith.subf %28, %41 : vector<8x128xf32>
    %cst_15 = arith.constant 9.99999974E-6 : f32
    %43 = vector.broadcast %cst_15 : f32 to vector<8x1xf32>
    %44 = arith.addf %40, %43 : vector<8x1xf32>
    %45 = math.rsqrt %44 : vector<8x1xf32>
    %46 = vector.broadcast %45 : vector<8x1xf32> to vector<8x128xf32>
    %47 = arith.mulf %42, %46 : vector<8x128xf32>
    %c2 = arith.constant 2 : index
    %c0_16 = arith.constant 0 : index
    %48 = vector.load %arg2[%c2, %c0_16] : memref<16x128xf32, #tpu.memory_space<vmem>>, vector<1x128xf32>
    %49 = vector.broadcast %48 : vector<1x128xf32> to vector<8x128xf32>
    %50 = arith.mulf %47, %49 : vector<8x128xf32>
    %c3 = arith.constant 3 : index
    %c0_17 = arith.constant 0 : index
    %51 = vector.load %arg2[%c3, %c0_17] : memref<16x128xf32, #tpu.memory_space<vmem>>, vector<1x128xf32>
    %52 = vector.broadcast %51 : vector<1x128xf32> to vector<8x128xf32>
    %53 = arith.addf %50, %52 : vector<8x128xf32>
    %c1_i32 = arith.constant 1 : i32
    %54 = tpu.dynamic_rotate %53 by %c1_i32 dim 0 : vector<8x128xf32>, i32 -> vector<8x128xf32>
    %cst_18 = arith.constant 0.000000e+00 : f32
    %55 = vector.broadcast %cst_18 : f32 to vector<8x128xf32>
    %56 = arith.select %2, %55, %54 : vector<8x128xi1>, vector<8x128xf32>
    %c6 = arith.constant 6 : index
    %c0_19 = arith.constant 0 : index
    %57 = vector.load %arg2[%c6, %c0_19] : memref<16x128xf32, #tpu.memory_space<vmem>>, vector<1x128xf32>
    %58 = vector.broadcast %57 : vector<1x128xf32> to vector<8x128xf32>
    %59 = arith.mulf %58, %53 : vector<8x128xf32>
    %cst_20 = arith.constant 1.000000e+00 : f32
    %60 = vector.broadcast %cst_20 : f32 to vector<1x128xf32>
    %61 = arith.subf %60, %57 : vector<1x128xf32>
    %62 = vector.broadcast %61 : vector<1x128xf32> to vector<8x128xf32>
    %63 = arith.mulf %62, %56 : vector<8x128xf32>
    %64 = arith.addf %59, %63 : vector<8x128xf32>
    %c0_21 = arith.constant 0 : index
    %c0_22 = arith.constant 0 : index
    %65 = vector.load %arg3[%c0_21, %c0_22] : memref<128x128xf32, #tpu.memory_space<vmem>>, vector<128x128xf32>
    %cst_23 = arith.constant dense<0.000000e+00> : vector<8x128xf32>
    %66 = tpu.matmul %64, %65, %cst_23 {dimension_numbers = #tpu.dot_dimension_numbers<[1], [0], [0], [1], [0, 0, 1, 1], [], []>} : vector<8x128xf32>, vector<128x128xf32>, vector<8x128xf32> -> vector<8x128xf32>
    %c0_24 = arith.constant 0 : index
    %c0_25 = arith.constant 0 : index
    %67 = vector.load %arg13[%c0_24, %c0_25] : memref<8x128xf32, #tpu.memory_space<vmem>>, vector<8x128xf32>
    tpu.vector_store %arg13[%c0_24, %c0_25], %66 {strides = array<i32>} : memref<8x128xf32, #tpu.memory_space<vmem>>, vector<8x128xf32>,
    %c7 = arith.constant 7 : index
    %c0_26 = arith.constant 0 : index
    %68 = vector.load %arg2[%c7, %c0_26] : memref<16x128xf32, #tpu.memory_space<vmem>>, vector<1x128xf32>
    %69 = vector.broadcast %68 : vector<1x128xf32> to vector<8x128xf32>
    %70 = arith.mulf %69, %53 : vector<8x128xf32>
    %cst_27 = arith.constant 1.000000e+00 : f32
    %71 = vector.broadcast %cst_27 : f32 to vector<1x128xf32>
    %72 = arith.subf %71, %68 : vector<1x128xf32>
    %73 = vector.broadcast %72 : vector<1x128xf32> to vector<8x128xf32>
    %74 = arith.mulf %73, %56 : vector<8x128xf32>
    %75 = arith.addf %70, %74 : vector<8x128xf32>
    %c0_28 = arith.constant 0 : index
    %c0_29 = arith.constant 0 : index
    %76 = vector.load %arg4[%c0_28, %c0_29] : memref<128x128xf32, #tpu.memory_space<vmem>>, vector<128x128xf32>
    %cst_30 = arith.constant dense<0.000000e+00> : vector<8x128xf32>
    %77 = tpu.matmul %75, %76, %cst_30 {dimension_numbers = #tpu.dot_dimension_numbers<[1], [0], [0], [1], [0, 0, 1, 1], [], []>} : vector<8x128xf32>, vector<128x128xf32>, vector<8x128xf32> -> vector<8x128xf32>
    %c0_31 = arith.constant 0 : index
    %c0_32 = arith.constant 0 : index
    %78 = vector.load %arg14[%c0_31, %c0_32] : memref<8x128xf32, #tpu.memory_space<vmem>>, vector<8x128xf32>
    tpu.vector_store %arg14[%c0_31, %c0_32], %77 {strides = array<i32>} : memref<8x128xf32, #tpu.memory_space<vmem>>, vector<8x128xf32>,
    %c8 = arith.constant 8 : index
    %c0_33 = arith.constant 0 : index
    %79 = vector.load %arg2[%c8, %c0_33] : memref<16x128xf32, #tpu.memory_space<vmem>>, vector<1x128xf32>
    %80 = vector.broadcast %79 : vector<1x128xf32> to vector<8x128xf32>
    %81 = arith.mulf %80, %53 : vector<8x128xf32>
    %cst_34 = arith.constant 1.000000e+00 : f32
    %82 = vector.broadcast %cst_34 : f32 to vector<1x128xf32>
    %83 = arith.subf %82, %79 : vector<1x128xf32>
    %84 = vector.broadcast %83 : vector<1x128xf32> to vector<8x128xf32>
    %85 = arith.mulf %84, %56 : vector<8x128xf32>
    %86 = arith.addf %81, %85 : vector<8x128xf32>
    %c0_35 = arith.constant 0 : index
    %c0_36 = arith.constant 0 : index
    %87 = vector.load %arg5[%c0_35, %c0_36] : memref<128x128xf32, #tpu.memory_space<vmem>>, vector<128x128xf32>
    %cst_37 = arith.constant dense<0.000000e+00> : vector<8x128xf32>
    %88 = tpu.matmul %86, %87, %cst_37 {dimension_numbers = #tpu.dot_dimension_numbers<[1], [0], [0], [1], [0, 0, 1, 1], [], []>} : vector<8x128xf32>, vector<128x128xf32>, vector<8x128xf32> -> vector<8x128xf32>
    %89 = arith.negf %88 : vector<8x128xf32>
    %90 = math.exp %89 : vector<8x128xf32>
    %cst_38 = arith.constant 1.000000e+00 : f32
    %91 = vector.broadcast %cst_38 : f32 to vector<8x128xf32>
    %92 = arith.addf %91, %90 : vector<8x128xf32>
    %93 = arith.divf %91, %92 : vector<8x128xf32>
    %c0_39 = arith.constant 0 : index
    %c0_40 = arith.constant 0 : index
    %94 = vector.load %arg12[%c0_39, %c0_40] : memref<8x128xf32, #tpu.memory_space<vmem>>, vector<8x128xf32>
    tpu.vector_store %arg12[%c0_39, %c0_40], %93 {strides = array<i32>} : memref<8x128xf32, #tpu.memory_space<vmem>>, vector<8x128xf32>,
    %c11 = arith.constant 11 : index
    %c0_41 = arith.constant 0 : index
    %95 = vector.load %arg2[%c11, %c0_41] : memref<16x128xf32, #tpu.memory_space<vmem>>, vector<1x128xf32>
    %c12 = arith.constant 12 : index
    %c0_42 = arith.constant 0 : index
    %96 = vector.load %arg2[%c12, %c0_42] : memref<16x128xf32, #tpu.memory_space<vmem>>, vector<1x128xf32>
    %cst_43 = arith.constant 0.000000e+00 : f32
    %97 = vector.broadcast %cst_43 : f32 to vector<1x128xf32>
    %cst_44 = arith.constant 0.000000e+00 : f32
    %98 = vector.broadcast %cst_44 : f32 to vector<1x128xf32>
    %cst_45 = arith.constant -9.99999968E+37 : f32
    %99 = vector.broadcast %cst_45 : f32 to vector<1x128xf32>
    %c0_i32_46 = arith.constant 0 : i32
    %c8_i32 = arith.constant 8 : i32
    %100 = arith.muli %c0_i32_46, %c8_i32 : i32
    %101 = tpu.assume_multiple %100, 8 : i32
    %102 = arith.index_cast %101 : i32 to index
    %c0_47 = arith.constant 0 : index
    %103 = vector.load %arg13[%102, %c0_47] : memref<8x128xf32, #tpu.memory_space<vmem>>, vector<8x128xf32>
    %104 = arith.index_cast %101 : i32 to index
    %c0_48 = arith.constant 0 : index
    %105 = vector.load %arg14[%104, %c0_48] : memref<8x128xf32, #tpu.memory_space<vmem>>, vector<8x128xf32>
    %106 = vector.extract_strided_slice %103 {offsets = [0, 0], sizes = [1, 128], strides = [1, 1]} : vector<8x128xf32> to vector<1x128xf32>
    %107 = vector.extract_strided_slice %105 {offsets = [0, 0], sizes = [1, 128], strides = [1, 1]} : vector<8x128xf32> to vector<1x128xf32>
    %108 = arith.addf %96, %106 : vector<1x128xf32>
    %109 = arith.maximumf %99, %108 : vector<1x128xf32>
    %110 = arith.subf %99, %109 : vector<1x128xf32>
    %111 = math.exp %110 : vector<1x128xf32>
    %112 = arith.addf %96, %106 : vector<1x128xf32>
    %113 = arith.subf %112, %109 : vector<1x128xf32>
    %114 = math.exp %113 : vector<1x128xf32>
    %115 = arith.mulf %111, %97 : vector<1x128xf32>
    %116 = arith.mulf %114, %107 : vector<1x128xf32>
    %117 = arith.addf %115, %116 : vector<1x128xf32>
    %118 = arith.mulf %111, %98 : vector<1x128xf32>
    %119 = arith.addf %118, %114 : vector<1x128xf32>
    %120 = arith.divf %117, %119 : vector<1x128xf32>
    %121 = arith.addf %95, %99 : vector<1x128xf32>
    %122 = arith.maximumf %121, %106 : vector<1x128xf32>
    %123 = arith.addf %95, %99 : vector<1x128xf32>
    %124 = arith.subf %123, %122 : vector<1x128xf32>
    %125 = math.exp %124 : vector<1x128xf32>
    %126 = arith.subf %106, %122 : vector<1x128xf32>
    %127 = math.exp %126 : vector<1x128xf32>
    %128 = arith.mulf %125, %97 : vector<1x128xf32>
    %129 = arith.mulf %127, %107 : vector<1x128xf32>
    %130 = arith.addf %128, %129 : vector<1x128xf32>
    %131 = arith.mulf %125, %98 : vector<1x128xf32>
    %132 = arith.addf %131, %127 : vector<1x128xf32>
    %133 = vector.extract_strided_slice %103 {offsets = [1, 0], sizes = [1, 128], strides = [1, 1]} : vector<8x128xf32> to vector<1x128xf32>
    %134 = vector.extract_strided_slice %105 {offsets = [1, 0], sizes = [1, 128], strides = [1, 1]} : vector<8x128xf32> to vector<1x128xf32>
    %135 = arith.addf %96, %133 : vector<1x128xf32>
    %136 = arith.maximumf %122, %135 : vector<1x128xf32>
    %137 = arith.subf %122, %136 : vector<1x128xf32>
    %138 = math.exp %137 : vector<1x128xf32>
    %139 = arith.addf %96, %133 : vector<1x128xf32>
    %140 = arith.subf %139, %136 : vector<1x128xf32>
    %141 = math.exp %140 : vector<1x128xf32>
    %142 = arith.mulf %138, %130 : vector<1x128xf32>
    %143 = arith.mulf %141, %134 : vector<1x128xf32>
    %144 = arith.addf %142, %143 : vector<1x128xf32>
    %145 = arith.mulf %138, %132 : vector<1x128xf32>
    %146 = arith.addf %145, %141 : vector<1x128xf32>
    %147 = arith.divf %144, %146 : vector<1x128xf32>
    %148 = arith.addf %95, %122 : vector<1x128xf32>
    %149 = arith.maximumf %148, %133 : vector<1x128xf32>
    %150 = arith.addf %95, %122 : vector<1x128xf32>
    %151 = arith.subf %150, %149 : vector<1x128xf32>
    %152 = math.exp %151 : vector<1x128xf32>
    %153 = arith.subf %133, %149 : vector<1x128xf32>
    %154 = math.exp %153 : vector<1x128xf32>
    %155 = arith.mulf %152, %130 : vector<1x128xf32>
    %156 = arith.mulf %154, %134 : vector<1x128xf32>
    %157 = arith.addf %155, %156 : vector<1x128xf32>
    %158 = arith.mulf %152, %132 : vector<1x128xf32>
    %159 = arith.addf %158, %154 : vector<1x128xf32>
    %160 = vector.extract_strided_slice %103 {offsets = [2, 0], sizes = [1, 128], strides = [1, 1]} : vector<8x128xf32> to vector<1x128xf32>
    %161 = vector.extract_strided_slice %105 {offsets = [2, 0], sizes = [1, 128], strides = [1, 1]} : vector<8x128xf32> to vector<1x128xf32>
    %162 = arith.addf %96, %160 : vector<1x128xf32>
    %163 = arith.maximumf %149, %162 : vector<1x128xf32>
    %164 = arith.subf %149, %163 : vector<1x128xf32>
    %165 = math.exp %164 : vector<1x128xf32>
    %166 = arith.addf %96, %160 : vector<1x128xf32>
    %167 = arith.subf %166, %163 : vector<1x128xf32>
    %168 = math.exp %167 : vector<1x128xf32>
    %169 = arith.mulf %165, %157 : vector<1x128xf32>
    %170 = arith.mulf %168, %161 : vector<1x128xf32>
    %171 = arith.addf %169, %170 : vector<1x128xf32>
    %172 = arith.mulf %165, %159 : vector<1x128xf32>
    %173 = arith.addf %172, %168 : vector<1x128xf32>
    %174 = arith.divf %171, %173 : vector<1x128xf32>
    %175 = arith.addf %95, %149 : vector<1x128xf32>
    %176 = arith.maximumf %175, %160 : vector<1x128xf32>
    %177 = arith.addf %95, %149 : vector<1x128xf32>
    %178 = arith.subf %177, %176 : vector<1x128xf32>
    %179 = math.exp %178 : vector<1x128xf32>
    %180 = arith.subf %160, %176 : vector<1x128xf32>
    %181 = math.exp %180 : vector<1x128xf32>
    %182 = arith.mulf %179, %157 : vector<1x128xf32>
    %183 = arith.mulf %181, %161 : vector<1x128xf32>
    %184 = arith.addf %182, %183 : vector<1x128xf32>
    %185 = arith.mulf %179, %159 : vector<1x128xf32>
    %186 = arith.addf %185, %181 : vector<1x128xf32>
    %187 = vector.extract_strided_slice %103 {offsets = [3, 0], sizes = [1, 128], strides = [1, 1]} : vector<8x128xf32> to vector<1x128xf32>
    %188 = vector.extract_strided_slice %105 {offsets = [3, 0], sizes = [1, 128], strides = [1, 1]} : vector<8x128xf32> to vector<1x128xf32>
    %189 = arith.addf %96, %187 : vector<1x128xf32>
    %190 = arith.maximumf %176, %189 : vector<1x128xf32>
    %191 = arith.subf %176, %190 : vector<1x128xf32>
    %192 = math.exp %191 : vector<1x128xf32>
    %193 = arith.addf %96, %187 : vector<1x128xf32>
    %194 = arith.subf %193, %190 : vector<1x128xf32>
    %195 = math.exp %194 : vector<1x128xf32>
    %196 = arith.mulf %192, %184 : vector<1x128xf32>
    %197 = arith.mulf %195, %188 : vector<1x128xf32>
    %198 = arith.addf %196, %197 : vector<1x128xf32>
    %199 = arith.mulf %192, %186 : vector<1x128xf32>
    %200 = arith.addf %199, %195 : vector<1x128xf32>
    %201 = arith.divf %198, %200 : vector<1x128xf32>
    %202 = arith.addf %95, %176 : vector<1x128xf32>
    %203 = arith.maximumf %202, %187 : vector<1x128xf32>
    %204 = arith.addf %95, %176 : vector<1x128xf32>
    %205 = arith.subf %204, %203 : vector<1x128xf32>
    %206 = math.exp %205 : vector<1x128xf32>
    %207 = arith.subf %187, %203 : vector<1x128xf32>
    %208 = math.exp %207 : vector<1x128xf32>
    %209 = arith.mulf %206, %184 : vector<1x128xf32>
    %210 = arith.mulf %208, %188 : vector<1x128xf32>
    %211 = arith.addf %209, %210 : vector<1x128xf32>
    %212 = arith.mulf %206, %186 : vector<1x128xf32>
    %213 = arith.addf %212, %208 : vector<1x128xf32>
    %214 = vector.extract_strided_slice %103 {offsets = [4, 0], sizes = [1, 128], strides = [1, 1]} : vector<8x128xf32> to vector<1x128xf32>
    %215 = vector.extract_strided_slice %105 {offsets = [4, 0], sizes = [1, 128], strides = [1, 1]} : vector<8x128xf32> to vector<1x128xf32>
    %216 = arith.addf %96, %214 : vector<1x128xf32>
    %217 = arith.maximumf %203, %216 : vector<1x128xf32>
    %218 = arith.subf %203, %217 : vector<1x128xf32>
    %219 = math.exp %218 : vector<1x128xf32>
    %220 = arith.addf %96, %214 : vector<1x128xf32>
    %221 = arith.subf %220, %217 : vector<1x128xf32>
    %222 = math.exp %221 : vector<1x128xf32>
    %223 = arith.mulf %219, %211 : vector<1x128xf32>
    %224 = arith.mulf %222, %215 : vector<1x128xf32>
    %225 = arith.addf %223, %224 : vector<1x128xf32>
    %226 = arith.mulf %219, %213 : vector<1x128xf32>
    %227 = arith.addf %226, %222 : vector<1x128xf32>
    %228 = arith.divf %225, %227 : vector<1x128xf32>
    %229 = arith.addf %95, %203 : vector<1x128xf32>
    %230 = arith.maximumf %229, %214 : vector<1x128xf32>
    %231 = arith.addf %95, %203 : vector<1x128xf32>
    %232 = arith.subf %231, %230 : vector<1x128xf32>
    %233 = math.exp %232 : vector<1x128xf32>
    %234 = arith.subf %214, %230 : vector<1x128xf32>
    %235 = math.exp %234 : vector<1x128xf32>
    %236 = arith.mulf %233, %211 : vector<1x128xf32>
    %237 = arith.mulf %235, %215 : vector<1x128xf32>
    %238 = arith.addf %236, %237 : vector<1x128xf32>
    %239 = arith.mulf %233, %213 : vector<1x128xf32>
    %240 = arith.addf %239, %235 : vector<1x128xf32>
    %241 = vector.extract_strided_slice %103 {offsets = [5, 0], sizes = [1, 128], strides = [1, 1]} : vector<8x128xf32> to vector<1x128xf32>
    %242 = vector.extract_strided_slice %105 {offsets = [5, 0], sizes = [1, 128], strides = [1, 1]} : vector<8x128xf32> to vector<1x128xf32>
    %243 = arith.addf %96, %241 : vector<1x128xf32>
    %244 = arith.maximumf %230, %243 : vector<1x128xf32>
    %245 = arith.subf %230, %244 : vector<1x128xf32>
    %246 = math.exp %245 : vector<1x128xf32>
    %247 = arith.addf %96, %241 : vector<1x128xf32>
    %248 = arith.subf %247, %244 : vector<1x128xf32>
    %249 = math.exp %248 : vector<1x128xf32>
    %250 = arith.mulf %246, %238 : vector<1x128xf32>
    %251 = arith.mulf %249, %242 : vector<1x128xf32>
    %252 = arith.addf %250, %251 : vector<1x128xf32>
    %253 = arith.mulf %246, %240 : vector<1x128xf32>
    %254 = arith.addf %253, %249 : vector<1x128xf32>
    %255 = arith.divf %252, %254 : vector<1x128xf32>
    %256 = arith.addf %95, %230 : vector<1x128xf32>
    %257 = arith.maximumf %256, %241 : vector<1x128xf32>
    %258 = arith.addf %95, %230 : vector<1x128xf32>
    %259 = arith.subf %258, %257 : vector<1x128xf32>
    %260 = math.exp %259 : vector<1x128xf32>
    %261 = arith.subf %241, %257 : vector<1x128xf32>
    %262 = math.exp %261 : vector<1x128xf32>
    %263 = arith.mulf %260, %238 : vector<1x128xf32>
    %264 = arith.mulf %262, %242 : vector<1x128xf32>
    %265 = arith.addf %263, %264 : vector<1x128xf32>
    %266 = arith.mulf %260, %240 : vector<1x128xf32>
    %267 = arith.addf %266, %262 : vector<1x128xf32>
    %268 = vector.extract_strided_slice %103 {offsets = [6, 0], sizes = [1, 128], strides = [1, 1]} : vector<8x128xf32> to vector<1x128xf32>
    %269 = vector.extract_strided_slice %105 {offsets = [6, 0], sizes = [1, 128], strides = [1, 1]} : vector<8x128xf32> to vector<1x128xf32>
    %270 = arith.addf %96, %268 : vector<1x128xf32>
    %271 = arith.maximumf %257, %270 : vector<1x128xf32>
    %272 = arith.subf %257, %271 : vector<1x128xf32>
    %273 = math.exp %272 : vector<1x128xf32>
    %274 = arith.addf %96, %268 : vector<1x128xf32>
    %275 = arith.subf %274, %271 : vector<1x128xf32>
    %276 = math.exp %275 : vector<1x128xf32>
    %277 = arith.mulf %273, %265 : vector<1x128xf32>
    %278 = arith.mulf %276, %269 : vector<1x128xf32>
    %279 = arith.addf %277, %278 : vector<1x128xf32>
    %280 = arith.mulf %273, %267 : vector<1x128xf32>
    %281 = arith.addf %280, %276 : vector<1x128xf32>
    %282 = arith.divf %279, %281 : vector<1x128xf32>
    %283 = arith.addf %95, %257 : vector<1x128xf32>
    %284 = arith.maximumf %283, %268 : vector<1x128xf32>
    %285 = arith.addf %95, %257 : vector<1x128xf32>
    %286 = arith.subf %285, %284 : vector<1x128xf32>
    %287 = math.exp %286 : vector<1x128xf32>
    %288 = arith.subf %268, %284 : vector<1x128xf32>
    %289 = math.exp %288 : vector<1x128xf32>
    %290 = arith.mulf %287, %265 : vector<1x128xf32>
    %291 = arith.mulf %289, %269 : vector<1x128xf32>
    %292 = arith.addf %290, %291 : vector<1x128xf32>
    %293 = arith.mulf %287, %267 : vector<1x128xf32>
    %294 = arith.addf %293, %289 : vector<1x128xf32>
    %295 = vector.extract_strided_slice %103 {offsets = [7, 0], sizes = [1, 128], strides = [1, 1]} : vector<8x128xf32> to vector<1x128xf32>
    %296 = vector.extract_strided_slice %105 {offsets = [7, 0], sizes = [1, 128], strides = [1, 1]} : vector<8x128xf32> to vector<1x128xf32>
    %297 = arith.addf %96, %295 : vector<1x128xf32>
    %298 = arith.maximumf %284, %297 : vector<1x128xf32>
    %299 = arith.subf %284, %298 : vector<1x128xf32>
    %300 = math.exp %299 : vector<1x128xf32>
    %301 = arith.addf %96, %295 : vector<1x128xf32>
    %302 = arith.subf %301, %298 : vector<1x128xf32>
    %303 = math.exp %302 : vector<1x128xf32>
    %304 = arith.mulf %300, %292 : vector<1x128xf32>
    %305 = arith.mulf %303, %296 : vector<1x128xf32>
    %306 = arith.addf %304, %305 : vector<1x128xf32>
    %307 = arith.mulf %300, %294 : vector<1x128xf32>
    %308 = arith.addf %307, %303 : vector<1x128xf32>
    %309 = arith.divf %306, %308 : vector<1x128xf32>
    %310 = arith.addf %95, %284 : vector<1x128xf32>
    %311 = arith.maximumf %310, %295 : vector<1x128xf32>
    %312 = arith.addf %95, %284 : vector<1x128xf32>
    %313 = arith.subf %312, %311 : vector<1x128xf32>
    %314 = math.exp %313 : vector<1x128xf32>
    %315 = arith.subf %295, %311 : vector<1x128xf32>
    %316 = math.exp %315 : vector<1x128xf32>
    %317 = arith.mulf %314, %292 : vector<1x128xf32>
    %318 = arith.mulf %316, %296 : vector<1x128xf32>
    %319 = arith.addf %317, %318 : vector<1x128xf32>
    %320 = arith.mulf %314, %294 : vector<1x128xf32>
    %321 = arith.addf %320, %316 : vector<1x128xf32>
    %322 = tpu.concatenate %120, %147, %174, %201, %228, %255, %282, %309 in 0 : vector<1x128xf32>, vector<1x128xf32>, vector<1x128xf32>, vector<1x128xf32>, vector<1x128xf32>, vector<1x128xf32>, vector<1x128xf32>, vector<1x128xf32> -> vector<8x128xf32>
    %323 = arith.index_cast %101 : i32 to index
    %c0_49 = arith.constant 0 : index
    %324 = vector.load %arg13[%323, %c0_49] : memref<8x128xf32, #tpu.memory_space<vmem>>, vector<8x128xf32>
    tpu.vector_store %arg13[%323, %c0_49], %322 {strides = array<i32>} : memref<8x128xf32, #tpu.memory_space<vmem>>, vector<8x128xf32>,
    %c1_i32_50 = arith.constant 1 : i32
    %c0_51 = arith.constant 0 : index
    %c0_52 = arith.constant 0 : index
    %325 = vector.load %arg12[%c0_51, %c0_52] : memref<8x128xf32, #tpu.memory_space<vmem>>, vector<8x128xf32>
    %c0_53 = arith.constant 0 : index
    %c0_54 = arith.constant 0 : index
    %326 = vector.load %arg13[%c0_53, %c0_54] : memref<8x128xf32, #tpu.memory_space<vmem>>, vector<8x128xf32>
    %327 = arith.mulf %325, %326 : vector<8x128xf32>
    %c0_55 = arith.constant 0 : index
    %c0_56 = arith.constant 0 : index
    %328 = vector.load %arg6[%c0_55, %c0_56] : memref<128x128xf32, #tpu.memory_space<vmem>>, vector<128x128xf32>
    %cst_57 = arith.constant dense<0.000000e+00> : vector<8x128xf32>
    %329 = tpu.matmul %327, %328, %cst_57 {dimension_numbers = #tpu.dot_dimension_numbers<[1], [0], [0], [1], [0, 0, 1, 1], [], []>} : vector<8x128xf32>, vector<128x128xf32>, vector<8x128xf32> -> vector<8x128xf32>
    %c0_58 = arith.constant 0 : index
    %c0_59 = arith.constant 0 : index
    %330 = vector.load %arg12[%c0_58, %c0_59] : memref<8x128xf32, #tpu.memory_space<vmem>>, vector<8x128xf32>
    tpu.vector_store %arg12[%c0_58, %c0_59], %329 {strides = array<i32>} : memref<8x128xf32, #tpu.memory_space<vmem>>, vector<8x128xf32>,
    %cst_60 = arith.constant 0.000000e+00 : f32
    %331 = vector.broadcast %cst_60 : f32 to vector<1x128xf32>
    %c0_i32_61 = arith.constant 0 : i32
    %c8_i32_62 = arith.constant 8 : i32
    %332 = arith.muli %c0_i32_61, %c8_i32_62 : i32
    %333 = tpu.assume_multiple %332, 8 : i32
    %334 = arith.index_cast %333 : i32 to index
    %c0_63 = arith.constant 0 : index
    %335 = vector.load %arg12[%334, %c0_63] : memref<8x128xf32, #tpu.memory_space<vmem>>, vector<8x128xf32>
    %336 = vector.extract_strided_slice %335 {offsets = [0, 0], sizes = [1, 128], strides = [1, 1]} : vector<8x128xf32> to vector<1x128xf32>
    %337 = arith.subf %336, %331 : vector<1x128xf32>
    %cst_64 = arith.constant 5.000000e-01 : f32
    %338 = vector.broadcast %cst_64 : f32 to vector<1x128xf32>
    %339 = arith.mulf %337, %338 : vector<1x128xf32>
    %340 = arith.addf %331, %339 : vector<1x128xf32>
    %cst_65 = arith.constant 1.000000e+00 : f32
    %341 = vector.broadcast %cst_65 : f32 to vector<1x128xf32>
    %342 = arith.cmpf oge, %340, %341 : vector<1x128xf32>
    %343 = arith.extui %342 : vector<1x128xi1> to vector<1x128xi32>
    %344 = arith.sitofp %343 : vector<1x128xi32> to vector<1x128xf32>
    %cst_66 = arith.constant 1.000000e+00 : f32
    %345 = vector.broadcast %cst_66 : f32 to vector<1x128xf32>
    %346 = arith.subf %345, %344 : vector<1x128xf32>
    %347 = arith.mulf %346, %340 : vector<1x128xf32>
    %348 = vector.extract_strided_slice %335 {offsets = [1, 0], sizes = [1, 128], strides = [1, 1]} : vector<8x128xf32> to vector<1x128xf32>
    %349 = arith.subf %348, %347 : vector<1x128xf32>
    %cst_67 = arith.constant 5.000000e-01 : f32
    %350 = vector.broadcast %cst_67 : f32 to vector<1x128xf32>
    %351 = arith.mulf %349, %350 : vector<1x128xf32>
    %352 = arith.addf %347, %351 : vector<1x128xf32>
    %cst_68 = arith.constant 1.000000e+00 : f32
    %353 = vector.broadcast %cst_68 : f32 to vector<1x128xf32>
    %354 = arith.cmpf oge, %352, %353 : vector<1x128xf32>
    %355 = arith.extui %354 : vector<1x128xi1> to vector<1x128xi32>
    %356 = arith.sitofp %355 : vector<1x128xi32> to vector<1x128xf32>
    %cst_69 = arith.constant 1.000000e+00 : f32
    %357 = vector.broadcast %cst_69 : f32 to vector<1x128xf32>
    %358 = arith.subf %357, %356 : vector<1x128xf32>
    %359 = arith.mulf %358, %352 : vector<1x128xf32>
    %360 = vector.extract_strided_slice %335 {offsets = [2, 0], sizes = [1, 128], strides = [1, 1]} : vector<8x128xf32> to vector<1x128xf32>
    %361 = arith.subf %360, %359 : vector<1x128xf32>
    %cst_70 = arith.constant 5.000000e-01 : f32
    %362 = vector.broadcast %cst_70 : f32 to vector<1x128xf32>
    %363 = arith.mulf %361, %362 : vector<1x128xf32>
    %364 = arith.addf %359, %363 : vector<1x128xf32>
    %cst_71 = arith.constant 1.000000e+00 : f32
    %365 = vector.broadcast %cst_71 : f32 to vector<1x128xf32>
    %366 = arith.cmpf oge, %364, %365 : vector<1x128xf32>
    %367 = arith.extui %366 : vector<1x128xi1> to vector<1x128xi32>
    %368 = arith.sitofp %367 : vector<1x128xi32> to vector<1x128xf32>
    %cst_72 = arith.constant 1.000000e+00 : f32
    %369 = vector.broadcast %cst_72 : f32 to vector<1x128xf32>
    %370 = arith.subf %369, %368 : vector<1x128xf32>
    %371 = arith.mulf %370, %364 : vector<1x128xf32>
    %372 = vector.extract_strided_slice %335 {offsets = [3, 0], sizes = [1, 128], strides = [1, 1]} : vector<8x128xf32> to vector<1x128xf32>
    %373 = arith.subf %372, %371 : vector<1x128xf32>
    %cst_73 = arith.constant 5.000000e-01 : f32
    %374 = vector.broadcast %cst_73 : f32 to vector<1x128xf32>
    %375 = arith.mulf %373, %374 : vector<1x128xf32>
    %376 = arith.addf %371, %375 : vector<1x128xf32>
    %cst_74 = arith.constant 1.000000e+00 : f32
    %377 = vector.broadcast %cst_74 : f32 to vector<1x128xf32>
    %378 = arith.cmpf oge, %376, %377 : vector<1x128xf32>
    %379 = arith.extui %378 : vector<1x128xi1> to vector<1x128xi32>
    %380 = arith.sitofp %379 : vector<1x128xi32> to vector<1x128xf32>
    %cst_75 = arith.constant 1.000000e+00 : f32
    %381 = vector.broadcast %cst_75 : f32 to vector<1x128xf32>
    %382 = arith.subf %381, %380 : vector<1x128xf32>
    %383 = arith.mulf %382, %376 : vector<1x128xf32>
    %384 = vector.extract_strided_slice %335 {offsets = [4, 0], sizes = [1, 128], strides = [1, 1]} : vector<8x128xf32> to vector<1x128xf32>
    %385 = arith.subf %384, %383 : vector<1x128xf32>
    %cst_76 = arith.constant 5.000000e-01 : f32
    %386 = vector.broadcast %cst_76 : f32 to vector<1x128xf32>
    %387 = arith.mulf %385, %386 : vector<1x128xf32>
    %388 = arith.addf %383, %387 : vector<1x128xf32>
    %cst_77 = arith.constant 1.000000e+00 : f32
    %389 = vector.broadcast %cst_77 : f32 to vector<1x128xf32>
    %390 = arith.cmpf oge, %388, %389 : vector<1x128xf32>
    %391 = arith.extui %390 : vector<1x128xi1> to vector<1x128xi32>
    %392 = arith.sitofp %391 : vector<1x128xi32> to vector<1x128xf32>
    %cst_78 = arith.constant 1.000000e+00 : f32
    %393 = vector.broadcast %cst_78 : f32 to vector<1x128xf32>
    %394 = arith.subf %393, %392 : vector<1x128xf32>
    %395 = arith.mulf %394, %388 : vector<1x128xf32>
    %396 = vector.extract_strided_slice %335 {offsets = [5, 0], sizes = [1, 128], strides = [1, 1]} : vector<8x128xf32> to vector<1x128xf32>
    %397 = arith.subf %396, %395 : vector<1x128xf32>
    %cst_79 = arith.constant 5.000000e-01 : f32
    %398 = vector.broadcast %cst_79 : f32 to vector<1x128xf32>
    %399 = arith.mulf %397, %398 : vector<1x128xf32>
    %400 = arith.addf %395, %399 : vector<1x128xf32>
    %cst_80 = arith.constant 1.000000e+00 : f32
    %401 = vector.broadcast %cst_80 : f32 to vector<1x128xf32>
    %402 = arith.cmpf oge, %400, %401 : vector<1x128xf32>
    %403 = arith.extui %402 : vector<1x128xi1> to vector<1x128xi32>
    %404 = arith.sitofp %403 : vector<1x128xi32> to vector<1x128xf32>
    %cst_81 = arith.constant 1.000000e+00 : f32
    %405 = vector.broadcast %cst_81 : f32 to vector<1x128xf32>
    %406 = arith.subf %405, %404 : vector<1x128xf32>
    %407 = arith.mulf %406, %400 : vector<1x128xf32>
    %408 = vector.extract_strided_slice %335 {offsets = [6, 0], sizes = [1, 128], strides = [1, 1]} : vector<8x128xf32> to vector<1x128xf32>
    %409 = arith.subf %408, %407 : vector<1x128xf32>
    %cst_82 = arith.constant 5.000000e-01 : f32
    %410 = vector.broadcast %cst_82 : f32 to vector<1x128xf32>
    %411 = arith.mulf %409, %410 : vector<1x128xf32>
    %412 = arith.addf %407, %411 : vector<1x128xf32>
    %cst_83 = arith.constant 1.000000e+00 : f32
    %413 = vector.broadcast %cst_83 : f32 to vector<1x128xf32>
    %414 = arith.cmpf oge, %412, %413 : vector<1x128xf32>
    %415 = arith.extui %414 : vector<1x128xi1> to vector<1x128xi32>
    %416 = arith.sitofp %415 : vector<1x128xi32> to vector<1x128xf32>
    %cst_84 = arith.constant 1.000000e+00 : f32
    %417 = vector.broadcast %cst_84 : f32 to vector<1x128xf32>
    %418 = arith.subf %417, %416 : vector<1x128xf32>
    %419 = arith.mulf %418, %412 : vector<1x128xf32>
    %420 = vector.extract_strided_slice %335 {offsets = [7, 0], sizes = [1, 128], strides = [1, 1]} : vector<8x128xf32> to vector<1x128xf32>
    %421 = arith.subf %420, %419 : vector<1x128xf32>
    %cst_85 = arith.constant 5.000000e-01 : f32
    %422 = vector.broadcast %cst_85 : f32 to vector<1x128xf32>
    %423 = arith.mulf %421, %422 : vector<1x128xf32>
    %424 = arith.addf %419, %423 : vector<1x128xf32>
    %cst_86 = arith.constant 1.000000e+00 : f32
    %425 = vector.broadcast %cst_86 : f32 to vector<1x128xf32>
    %426 = arith.cmpf oge, %424, %425 : vector<1x128xf32>
    %427 = arith.extui %426 : vector<1x128xi1> to vector<1x128xi32>
    %428 = arith.sitofp %427 : vector<1x128xi32> to vector<1x128xf32>
    %cst_87 = arith.constant 1.000000e+00 : f32
    %429 = vector.broadcast %cst_87 : f32 to vector<1x128xf32>
    %430 = arith.subf %429, %428 : vector<1x128xf32>
    %431 = arith.mulf %430, %424 : vector<1x128xf32>
    %432 = tpu.concatenate %344, %356, %368, %380, %392, %404, %416, %428 in 0 : vector<1x128xf32>, vector<1x128xf32>, vector<1x128xf32>, vector<1x128xf32>, vector<1x128xf32>, vector<1x128xf32>, vector<1x128xf32>, vector<1x128xf32> -> vector<8x128xf32>
    %433 = arith.index_cast %333 : i32 to index
    %c0_88 = arith.constant 0 : index
    %434 = vector.load %arg12[%433, %c0_88] : memref<8x128xf32, #tpu.memory_space<vmem>>, vector<8x128xf32>
    tpu.vector_store %arg12[%433, %c0_88], %432 {strides = array<i32>} : memref<8x128xf32, #tpu.memory_space<vmem>>, vector<8x128xf32>,
    %c1_i32_89 = arith.constant 1 : i32
    %c0_90 = arith.constant 0 : index
    %c0_91 = arith.constant 0 : index
    %435 = vector.load %arg11[%c0_90, %c0_91] : memref<8x128xf32, #tpu.memory_space<vmem>>, vector<8x128xf32>
    %c0_92 = arith.constant 0 : index
    %c0_93 = arith.constant 0 : index
    %436 = vector.load %arg12[%c0_92, %c0_93] : memref<8x128xf32, #tpu.memory_space<vmem>>, vector<8x128xf32>
    %437 = arith.addf %435, %436 : vector<8x128xf32>
    %c0_94 = arith.constant 0 : index
    %c0_95 = arith.constant 0 : index
    %438 = vector.load %arg11[%c0_94, %c0_95] : memref<8x128xf32, #tpu.memory_space<vmem>>, vector<8x128xf32>
    tpu.vector_store %arg11[%c0_94, %c0_95], %437 {strides = array<i32>} : memref<8x128xf32, #tpu.memory_space<vmem>>, vector<8x128xf32>,
    %c0_96 = arith.constant 0 : index
    %c0_97 = arith.constant 0 : index
    %439 = vector.load %arg11[%c0_96, %c0_97] : memref<8x128xf32, #tpu.memory_space<vmem>>, vector<8x128xf32>
    %cst_98 = arith.constant dense<0.000000e+00> : vector<8xf32>
    %440 = vector.multi_reduction <add>, %439, %cst_98 [1] : vector<8x128xf32> to vector<8xf32>
    %441 = vector.shape_cast %440 : vector<8xf32> to vector<8x1xf32>
    %cst_99 = arith.constant 1.280000e+02 : f32
    %442 = vector.broadcast %cst_99 : f32 to vector<8x1xf32>
    %443 = arith.divf %441, %442 : vector<8x1xf32>
    %444 = vector.broadcast %443 : vector<8x1xf32> to vector<8x128xf32>
    %445 = arith.subf %439, %444 : vector<8x128xf32>
    %446 = arith.mulf %445, %445 : vector<8x128xf32>
    %cst_100 = arith.constant dense<0.000000e+00> : vector<8xf32>
    %447 = vector.multi_reduction <add>, %446, %cst_100 [1] : vector<8x128xf32> to vector<8xf32>
    %448 = vector.shape_cast %447 : vector<8xf32> to vector<8x1xf32>
    %cst_101 = arith.constant 1.280000e+02 : f32
    %449 = vector.broadcast %cst_101 : f32 to vector<8x1xf32>
    %450 = arith.divf %448, %449 : vector<8x1xf32>
    %451 = vector.broadcast %443 : vector<8x1xf32> to vector<8x128xf32>
    %452 = arith.subf %439, %451 : vector<8x128xf32>
    %cst_102 = arith.constant 9.99999974E-6 : f32
    %453 = vector.broadcast %cst_102 : f32 to vector<8x1xf32>
    %454 = arith.addf %450, %453 : vector<8x1xf32>
    %455 = math.rsqrt %454 : vector<8x1xf32>
    %456 = vector.broadcast %455 : vector<8x1xf32> to vector<8x128xf32>
    %457 = arith.mulf %452, %456 : vector<8x128xf32>
    %c4 = arith.constant 4 : index
    %c0_103 = arith.constant 0 : index
    %458 = vector.load %arg2[%c4, %c0_103] : memref<16x128xf32, #tpu.memory_space<vmem>>, vector<1x128xf32>
    %459 = vector.broadcast %458 : vector<1x128xf32> to vector<8x128xf32>
    %460 = arith.mulf %457, %459 : vector<8x128xf32>
    %c5 = arith.constant 5 : index
    %c0_104 = arith.constant 0 : index
    %461 = vector.load %arg2[%c5, %c0_104] : memref<16x128xf32, #tpu.memory_space<vmem>>, vector<1x128xf32>
    %462 = vector.broadcast %461 : vector<1x128xf32> to vector<8x128xf32>
    %463 = arith.addf %460, %462 : vector<8x128xf32>
    %c1_i32_105 = arith.constant 1 : i32
    %464 = tpu.dynamic_rotate %463 by %c1_i32_105 dim 0 : vector<8x128xf32>, i32 -> vector<8x128xf32>
    %cst_106 = arith.constant 0.000000e+00 : f32
    %465 = vector.broadcast %cst_106 : f32 to vector<8x128xf32>
    %466 = arith.select %2, %465, %464 : vector<8x128xi1>, vector<8x128xf32>
    %c9 = arith.constant 9 : index
    %c0_107 = arith.constant 0 : index
    %467 = vector.load %arg2[%c9, %c0_107] : memref<16x128xf32, #tpu.memory_space<vmem>>, vector<1x128xf32>
    %468 = vector.broadcast %467 : vector<1x128xf32> to vector<8x128xf32>
    %469 = arith.mulf %468, %463 : vector<8x128xf32>
    %cst_108 = arith.constant 1.000000e+00 : f32
    %470 = vector.broadcast %cst_108 : f32 to vector<1x128xf32>
    %471 = arith.subf %470, %467 : vector<1x128xf32>
    %472 = vector.broadcast %471 : vector<1x128xf32> to vector<8x128xf32>
    %473 = arith.mulf %472, %466 : vector<8x128xf32>
    %474 = arith.addf %469, %473 : vector<8x128xf32>
    %c0_109 = arith.constant 0 : index
    %c0_110 = arith.constant 0 : index
    %475 = vector.load %arg13[%c0_109, %c0_110] : memref<8x128xf32, #tpu.memory_space<vmem>>, vector<8x128xf32>
    tpu.vector_store %arg13[%c0_109, %c0_110], %474 {strides = array<i32>} : memref<8x128xf32, #tpu.memory_space<vmem>>, vector<8x128xf32>,
    %c10 = arith.constant 10 : index
    %c0_111 = arith.constant 0 : index
    %476 = vector.load %arg2[%c10, %c0_111] : memref<16x128xf32, #tpu.memory_space<vmem>>, vector<1x128xf32>
    %477 = vector.broadcast %476 : vector<1x128xf32> to vector<8x128xf32>
    %478 = arith.mulf %477, %463 : vector<8x128xf32>
    %cst_112 = arith.constant 1.000000e+00 : f32
    %479 = vector.broadcast %cst_112 : f32 to vector<1x128xf32>
    %480 = arith.subf %479, %476 : vector<1x128xf32>
    %481 = vector.broadcast %480 : vector<1x128xf32> to vector<8x128xf32>
    %482 = arith.mulf %481, %466 : vector<8x128xf32>
    %483 = arith.addf %478, %482 : vector<8x128xf32>
    %c0_113 = arith.constant 0 : index
    %c0_114 = arith.constant 0 : index
    %484 = vector.load %arg14[%c0_113, %c0_114] : memref<8x128xf32, #tpu.memory_space<vmem>>, vector<8x128xf32>
    tpu.vector_store %arg14[%c0_113, %c0_114], %483 {strides = array<i32>} : memref<8x128xf32, #tpu.memory_space<vmem>>, vector<8x128xf32>,
    %c0_i32_115 = arith.constant 0 : i32
    %c8_i32_116 = arith.constant 8 : i32
    %485 = arith.muli %c0_i32_115, %c8_i32_116 : i32
    %486 = tpu.assume_multiple %485, 8 : i32
    %487 = arith.index_cast %486 : i32 to index
    %c0_117 = arith.constant 0 : index
    %488 = vector.load %arg13[%487, %c0_117] : memref<8x128xf32, #tpu.memory_space<vmem>>, vector<8x128xf32>
    %489 = arith.index_cast %486 : i32 to index
    %c0_118 = arith.constant 0 : index
    %490 = vector.load %arg14[%489, %c0_118] : memref<8x128xf32, #tpu.memory_space<vmem>>, vector<8x128xf32>
    %c0_119 = arith.constant 0 : index
    %c0_120 = arith.constant 0 : index
    %491 = vector.load %arg7[%c0_119, %c0_120] : memref<128x512xf32, #tpu.memory_space<vmem>>, vector<128x512xf32>
    %cst_121 = arith.constant dense<0.000000e+00> : vector<8x512xf32>
    %492 = tpu.matmul %488, %491, %cst_121 {dimension_numbers = #tpu.dot_dimension_numbers<[1], [0], [0], [1], [0, 0, 1, 1], [], []>} : vector<8x128xf32>, vector<128x512xf32>, vector<8x512xf32> -> vector<8x512xf32>
    %cst_122 = arith.constant 0.000000e+00 : f32
    %493 = vector.broadcast %cst_122 : f32 to vector<8x512xf32>
    %494 = arith.maximumf %492, %493 : vector<8x512xf32>
    %495 = arith.mulf %494, %494 : vector<8x512xf32>
    %c0_123 = arith.constant 0 : index
    %c0_124 = arith.constant 0 : index
    %496 = vector.load %arg8[%c0_123, %c0_124] : memref<512x128xf32, #tpu.memory_space<vmem>>, vector<512x128xf32>
    %cst_125 = arith.constant dense<0.000000e+00> : vector<8x128xf32>
    %497 = tpu.matmul %495, %496, %cst_125 {dimension_numbers = #tpu.dot_dimension_numbers<[1], [0], [0], [1], [0, 0, 1, 1], [], []>} : vector<8x512xf32>, vector<512x128xf32>, vector<8x128xf32> -> vector<8x128xf32>
    %c0_126 = arith.constant 0 : index
    %c0_127 = arith.constant 0 : index
    %498 = vector.load %arg9[%c0_126, %c0_127] : memref<128x128xf32, #tpu.memory_space<vmem>>, vector<128x128xf32>
    %cst_128 = arith.constant dense<0.000000e+00> : vector<8x128xf32>
    %499 = tpu.matmul %490, %498, %cst_128 {dimension_numbers = #tpu.dot_dimension_numbers<[1], [0], [0], [1], [0, 0, 1, 1], [], []>} : vector<8x128xf32>, vector<128x128xf32>, vector<8x128xf32> -> vector<8x128xf32>
    %500 = arith.negf %499 : vector<8x128xf32>
    %501 = math.exp %500 : vector<8x128xf32>
    %cst_129 = arith.constant 1.000000e+00 : f32
    %502 = vector.broadcast %cst_129 : f32 to vector<8x128xf32>
    %503 = arith.addf %502, %501 : vector<8x128xf32>
    %504 = arith.divf %502, %503 : vector<8x128xf32>
    %505 = arith.mulf %504, %497 : vector<8x128xf32>
    %506 = arith.index_cast %486 : i32 to index
    %c0_130 = arith.constant 0 : index
    %507 = vector.load %arg12[%506, %c0_130] : memref<8x128xf32, #tpu.memory_space<vmem>>, vector<8x128xf32>
    tpu.vector_store %arg12[%506, %c0_130], %505 {strides = array<i32>} : memref<8x128xf32, #tpu.memory_space<vmem>>, vector<8x128xf32>,
    %c1_i32_131 = arith.constant 1 : i32
    %cst_132 = arith.constant 0.000000e+00 : f32
    %508 = vector.broadcast %cst_132 : f32 to vector<1x128xf32>
    %c0_i32_133 = arith.constant 0 : i32
    %c8_i32_134 = arith.constant 8 : i32
    %509 = arith.muli %c0_i32_133, %c8_i32_134 : i32
    %510 = tpu.assume_multiple %509, 8 : i32
    %511 = arith.index_cast %510 : i32 to index
    %c0_135 = arith.constant 0 : index
    %512 = vector.load %arg12[%511, %c0_135] : memref<8x128xf32, #tpu.memory_space<vmem>>, vector<8x128xf32>
    %513 = vector.extract_strided_slice %512 {offsets = [0, 0], sizes = [1, 128], strides = [1, 1]} : vector<8x128xf32> to vector<1x128xf32>
    %514 = arith.subf %513, %508 : vector<1x128xf32>
    %cst_136 = arith.constant 5.000000e-01 : f32
    %515 = vector.broadcast %cst_136 : f32 to vector<1x128xf32>
    %516 = arith.mulf %514, %515 : vector<1x128xf32>
    %517 = arith.addf %508, %516 : vector<1x128xf32>
    %cst_137 = arith.constant 1.000000e+00 : f32
    %518 = vector.broadcast %cst_137 : f32 to vector<1x128xf32>
    %519 = arith.cmpf oge, %517, %518 : vector<1x128xf32>
    %520 = arith.extui %519 : vector<1x128xi1> to vector<1x128xi32>
    %521 = arith.sitofp %520 : vector<1x128xi32> to vector<1x128xf32>
    %cst_138 = arith.constant 1.000000e+00 : f32
    %522 = vector.broadcast %cst_138 : f32 to vector<1x128xf32>
    %523 = arith.subf %522, %521 : vector<1x128xf32>
    %524 = arith.mulf %523, %517 : vector<1x128xf32>
    %525 = vector.extract_strided_slice %512 {offsets = [1, 0], sizes = [1, 128], strides = [1, 1]} : vector<8x128xf32> to vector<1x128xf32>
    %526 = arith.subf %525, %524 : vector<1x128xf32>
    %cst_139 = arith.constant 5.000000e-01 : f32
    %527 = vector.broadcast %cst_139 : f32 to vector<1x128xf32>
    %528 = arith.mulf %526, %527 : vector<1x128xf32>
    %529 = arith.addf %524, %528 : vector<1x128xf32>
    %cst_140 = arith.constant 1.000000e+00 : f32
    %530 = vector.broadcast %cst_140 : f32 to vector<1x128xf32>
    %531 = arith.cmpf oge, %529, %530 : vector<1x128xf32>
    %532 = arith.extui %531 : vector<1x128xi1> to vector<1x128xi32>
    %533 = arith.sitofp %532 : vector<1x128xi32> to vector<1x128xf32>
    %cst_141 = arith.constant 1.000000e+00 : f32
    %534 = vector.broadcast %cst_141 : f32 to vector<1x128xf32>
    %535 = arith.subf %534, %533 : vector<1x128xf32>
    %536 = arith.mulf %535, %529 : vector<1x128xf32>
    %537 = vector.extract_strided_slice %512 {offsets = [2, 0], sizes = [1, 128], strides = [1, 1]} : vector<8x128xf32> to vector<1x128xf32>
    %538 = arith.subf %537, %536 : vector<1x128xf32>
    %cst_142 = arith.constant 5.000000e-01 : f32
    %539 = vector.broadcast %cst_142 : f32 to vector<1x128xf32>
    %540 = arith.mulf %538, %539 : vector<1x128xf32>
    %541 = arith.addf %536, %540 : vector<1x128xf32>
    %cst_143 = arith.constant 1.000000e+00 : f32
    %542 = vector.broadcast %cst_143 : f32 to vector<1x128xf32>
    %543 = arith.cmpf oge, %541, %542 : vector<1x128xf32>
    %544 = arith.extui %543 : vector<1x128xi1> to vector<1x128xi32>
    %545 = arith.sitofp %544 : vector<1x128xi32> to vector<1x128xf32>
    %cst_144 = arith.constant 1.000000e+00 : f32
    %546 = vector.broadcast %cst_144 : f32 to vector<1x128xf32>
    %547 = arith.subf %546, %545 : vector<1x128xf32>
    %548 = arith.mulf %547, %541 : vector<1x128xf32>
    %549 = vector.extract_strided_slice %512 {offsets = [3, 0], sizes = [1, 128], strides = [1, 1]} : vector<8x128xf32> to vector<1x128xf32>
    %550 = arith.subf %549, %548 : vector<1x128xf32>
    %cst_145 = arith.constant 5.000000e-01 : f32
    %551 = vector.broadcast %cst_145 : f32 to vector<1x128xf32>
    %552 = arith.mulf %550, %551 : vector<1x128xf32>
    %553 = arith.addf %548, %552 : vector<1x128xf32>
    %cst_146 = arith.constant 1.000000e+00 : f32
    %554 = vector.broadcast %cst_146 : f32 to vector<1x128xf32>
    %555 = arith.cmpf oge, %553, %554 : vector<1x128xf32>
    %556 = arith.extui %555 : vector<1x128xi1> to vector<1x128xi32>
    %557 = arith.sitofp %556 : vector<1x128xi32> to vector<1x128xf32>
    %cst_147 = arith.constant 1.000000e+00 : f32
    %558 = vector.broadcast %cst_147 : f32 to vector<1x128xf32>
    %559 = arith.subf %558, %557 : vector<1x128xf32>
    %560 = arith.mulf %559, %553 : vector<1x128xf32>
    %561 = vector.extract_strided_slice %512 {offsets = [4, 0], sizes = [1, 128], strides = [1, 1]} : vector<8x128xf32> to vector<1x128xf32>
    %562 = arith.subf %561, %560 : vector<1x128xf32>
    %cst_148 = arith.constant 5.000000e-01 : f32
    %563 = vector.broadcast %cst_148 : f32 to vector<1x128xf32>
    %564 = arith.mulf %562, %563 : vector<1x128xf32>
    %565 = arith.addf %560, %564 : vector<1x128xf32>
    %cst_149 = arith.constant 1.000000e+00 : f32
    %566 = vector.broadcast %cst_149 : f32 to vector<1x128xf32>
    %567 = arith.cmpf oge, %565, %566 : vector<1x128xf32>
    %568 = arith.extui %567 : vector<1x128xi1> to vector<1x128xi32>
    %569 = arith.sitofp %568 : vector<1x128xi32> to vector<1x128xf32>
    %cst_150 = arith.constant 1.000000e+00 : f32
    %570 = vector.broadcast %cst_150 : f32 to vector<1x128xf32>
    %571 = arith.subf %570, %569 : vector<1x128xf32>
    %572 = arith.mulf %571, %565 : vector<1x128xf32>
    %573 = vector.extract_strided_slice %512 {offsets = [5, 0], sizes = [1, 128], strides = [1, 1]} : vector<8x128xf32> to vector<1x128xf32>
    %574 = arith.subf %573, %572 : vector<1x128xf32>
    %cst_151 = arith.constant 5.000000e-01 : f32
    %575 = vector.broadcast %cst_151 : f32 to vector<1x128xf32>
    %576 = arith.mulf %574, %575 : vector<1x128xf32>
    %577 = arith.addf %572, %576 : vector<1x128xf32>
    %cst_152 = arith.constant 1.000000e+00 : f32
    %578 = vector.broadcast %cst_152 : f32 to vector<1x128xf32>
    %579 = arith.cmpf oge, %577, %578 : vector<1x128xf32>
    %580 = arith.extui %579 : vector<1x128xi1> to vector<1x128xi32>
    %581 = arith.sitofp %580 : vector<1x128xi32> to vector<1x128xf32>
    %cst_153 = arith.constant 1.000000e+00 : f32
    %582 = vector.broadcast %cst_153 : f32 to vector<1x128xf32>
    %583 = arith.subf %582, %581 : vector<1x128xf32>
    %584 = arith.mulf %583, %577 : vector<1x128xf32>
    %585 = vector.extract_strided_slice %512 {offsets = [6, 0], sizes = [1, 128], strides = [1, 1]} : vector<8x128xf32> to vector<1x128xf32>
    %586 = arith.subf %585, %584 : vector<1x128xf32>
    %cst_154 = arith.constant 5.000000e-01 : f32
    %587 = vector.broadcast %cst_154 : f32 to vector<1x128xf32>
    %588 = arith.mulf %586, %587 : vector<1x128xf32>
    %589 = arith.addf %584, %588 : vector<1x128xf32>
    %cst_155 = arith.constant 1.000000e+00 : f32
    %590 = vector.broadcast %cst_155 : f32 to vector<1x128xf32>
    %591 = arith.cmpf oge, %589, %590 : vector<1x128xf32>
    %592 = arith.extui %591 : vector<1x128xi1> to vector<1x128xi32>
    %593 = arith.sitofp %592 : vector<1x128xi32> to vector<1x128xf32>
    %cst_156 = arith.constant 1.000000e+00 : f32
    %594 = vector.broadcast %cst_156 : f32 to vector<1x128xf32>
    %595 = arith.subf %594, %593 : vector<1x128xf32>
    %596 = arith.mulf %595, %589 : vector<1x128xf32>
    %597 = vector.extract_strided_slice %512 {offsets = [7, 0], sizes = [1, 128], strides = [1, 1]} : vector<8x128xf32> to vector<1x128xf32>
    %598 = arith.subf %597, %596 : vector<1x128xf32>
    %cst_157 = arith.constant 5.000000e-01 : f32
    %599 = vector.broadcast %cst_157 : f32 to vector<1x128xf32>
    %600 = arith.mulf %598, %599 : vector<1x128xf32>
    %601 = arith.addf %596, %600 : vector<1x128xf32>
    %cst_158 = arith.constant 1.000000e+00 : f32
    %602 = vector.broadcast %cst_158 : f32 to vector<1x128xf32>
    %603 = arith.cmpf oge, %601, %602 : vector<1x128xf32>
    %604 = arith.extui %603 : vector<1x128xi1> to vector<1x128xi32>
    %605 = arith.sitofp %604 : vector<1x128xi32> to vector<1x128xf32>
    %cst_159 = arith.constant 1.000000e+00 : f32
    %606 = vector.broadcast %cst_159 : f32 to vector<1x128xf32>
    %607 = arith.subf %606, %605 : vector<1x128xf32>
    %608 = arith.mulf %607, %601 : vector<1x128xf32>
    %609 = tpu.concatenate %521, %533, %545, %557, %569, %581, %593, %605 in 0 : vector<1x128xf32>, vector<1x128xf32>, vector<1x128xf32>, vector<1x128xf32>, vector<1x128xf32>, vector<1x128xf32>, vector<1x128xf32>, vector<1x128xf32> -> vector<8x128xf32>
    %610 = arith.index_cast %510 : i32 to index
    %c0_160 = arith.constant 0 : index
    %611 = vector.load %arg12[%610, %c0_160] : memref<8x128xf32, #tpu.memory_space<vmem>>, vector<8x128xf32>
    tpu.vector_store %arg12[%610, %c0_160], %609 {strides = array<i32>} : memref<8x128xf32, #tpu.memory_space<vmem>>, vector<8x128xf32>,
    %c1_i32_161 = arith.constant 1 : i32
    %c0_162 = arith.constant 0 : index
    %c0_163 = arith.constant 0 : index
    %612 = vector.load %arg11[%c0_162, %c0_163] : memref<8x128xf32, #tpu.memory_space<vmem>>, vector<8x128xf32>
    %c0_164 = arith.constant 0 : index
    %c0_165 = arith.constant 0 : index
    %613 = vector.load %arg12[%c0_164, %c0_165] : memref<8x128xf32, #tpu.memory_space<vmem>>, vector<8x128xf32>
    %614 = arith.addf %612, %613 : vector<8x128xf32>
    %c0_166 = arith.constant 0 : index
    %c0_167 = arith.constant 0 : index
    %c0_168 = arith.constant 0 : index
    %615 = vector.load %arg10[%c0_166, %c0_167, %c0_168] : memref<1x8x128xf32, #tpu.memory_space<vmem>>, vector<1x8x128xf32>
    %616 = vector.shape_cast %615 : vector<1x8x128xf32> to vector<8x128xf32>
    %617 = vector.shape_cast %614 : vector<8x128xf32> to vector<1x8x128xf32>
    tpu.vector_store %arg10[%c0_166, %c0_167, %c0_168], %617 {strides = array<i32>} : memref<1x8x128xf32, #tpu.memory_space<vmem>>, vector<1x8x128xf32>,
    return
  }
  func.func @transform_0(%arg0: i32) -> (i32, i32, i32) {
    %c0_i32 = arith.constant 0 : i32
    %c0_i32_0 = arith.constant 0 : i32
    %c0_i32_1 = arith.constant 0 : i32
    return %arg0, %c0_i32, %c0_i32_0 : i32, i32, i32
  }
  func.func @transform_1(%arg0: i32) -> (i32, i32) {
    %c0_i32 = arith.constant 0 : i32
    %c0_i32_0 = arith.constant 0 : i32
    %c0_i32_1 = arith.constant 0 : i32
    return %c0_i32, %c0_i32_0 : i32, i32
  }
  func.func @transform_2(%arg0: i32) -> (i32, i32) {
    %c0_i32 = arith.constant 0 : i32
    %c0_i32_0 = arith.constant 0 : i32
    %c0_i32_1 = arith.constant 0 : i32
    return %c0_i32, %c0_i32_0 : i32, i32
  }
  func.func @transform_3(%arg0: i32) -> (i32, i32) {
    %c0_i32 = arith.constant 0 : i32
    %c0_i32_0 = arith.constant 0 : i32
    %c0_i32_1 = arith.constant 0 : i32
    return %c0_i32, %c0_i32_0 : i32, i32
  }
  func.func @transform_4(%arg0: i32) -> (i32, i32) {
    %c0_i32 = arith.constant 0 : i32
    %c0_i32_0 = arith.constant 0 : i32
    %c0_i32_1 = arith.constant 0 : i32
    return %c0_i32, %c0_i32_0 : i32, i32
  }
  func.func @transform_5(%arg0: i32) -> (i32, i32) {
    %c0_i32 = arith.constant 0 : i32
    %c0_i32_0 = arith.constant 0 : i32
    %c0_i32_1 = arith.constant 0 : i32
    return %c0_i32, %c0_i32_0 : i32, i32
  }
  func.func @transform_6(%arg0: i32) -> (i32, i32) {
    %c0_i32 = arith.constant 0 : i32
    %c0_i32_0 = arith.constant 0 : i32
    %c0_i32_1 = arith.constant 0 : i32
    return %c0_i32, %c0_i32_0 : i32, i32
  }
  func.func @transform_7(%arg0: i32) -> (i32, i32) {
    %c0_i32 = arith.constant 0 : i32
    %c0_i32_0 = arith.constant 0 : i32
    %c0_i32_1 = arith.constant 0 : i32
    return %c0_i32, %c0_i32_0 : i32, i32
  }
  func.func @transform_8(%arg0: i32) -> (i32, i32) {
    %c0_i32 = arith.constant 0 : i32
    %c0_i32_0 = arith.constant 0 : i32
    %c0_i32_1 = arith.constant 0 : i32
    return %c0_i32, %c0_i32_0 : i32, i32
  }
  func.func @transform_9(%arg0: i32) -> (i32, i32, i32) {
    %c0_i32 = arith.constant 0 : i32
    %c0_i32_0 = arith.constant 0 : i32
    %c0_i32_1 = arith.constant 0 : i32
    return %arg0, %c0_i32, %c0_i32_0 : i32, i32, i32
  }
}

</mosaic_0001>

<llo_original>
// kernel: tpu_custom_call.1
$region0: #{tpu_custom_call.1}
  #allocation0 [shape = 'u32[]', space=smem, size = 0x4, offset = 0x4, fixed_abs, tag = 'smem constant byte address 0x4 - core index']
  #allocation1 [shape = 'u32[72,128]{1,0:T(1,128)}', space=vmem, size = 0x9000, scoped, tag = 'internal scratch']
  #allocation2 [shape = 'f32[8,128]{1,0:T(8,128)}', space=vmem, size = 0x1000, scoped, tag = 'scratch operand']
  #allocation3 [shape = 'f32[8,128]{1,0:T(8,128)}', space=vmem, size = 0x1000, scoped, tag = 'scratch operand']
  #allocation4 [shape = 'f32[8,128]{1,0:T(8,128)}', space=vmem, size = 0x1000, scoped, tag = 'scratch operand']
  #allocation5 [shape = 'f32[8,128]{1,0:T(8,128)}', space=vmem, size = 0x1000, scoped, tag = 'scratch operand']
  %s0 = inlined_call_operand.hbm [shape: f32[2,8,128], index: 0, kind: input, shape index: {}]
  %s1 = inlined_call_operand.hbm [shape: f32[16,128], index: 1, kind: input, shape index: {}]
  %s2 = inlined_call_operand.hbm [shape: f32[128,128], index: 2, kind: input, shape index: {}]
  %s3 = inlined_call_operand.hbm [shape: f32[128,128], index: 3, kind: input, shape index: {}]
  %s4 = inlined_call_operand.hbm [shape: f32[128,128], index: 4, kind: input, shape index: {}]
  %s5 = inlined_call_operand.hbm [shape: f32[128,128], index: 5, kind: input, shape index: {}]
  %s6 = inlined_call_operand.hbm [shape: f32[128,512], index: 6, kind: input, shape index: {}]
  %s7 = inlined_call_operand.hbm [shape: f32[512,128], index: 7, kind: input, shape index: {}]
  %s8 = inlined_call_operand.hbm [shape: f32[128,128], index: 8, kind: input, shape index: {}]
  %s9 = inlined_call_operand.hbm [shape: f32[2,8,128], index: 9, kind: output, shape index: {}]
  %s10 = sld [smem:[#allocation0]]
  $region105: #{tpu_custom_call.1} parent=0
    _
  %s12 = ssub.s32 1, %s10
  %s13 = scalar_select 0, %s12, %s10
  $region1: #{tpu_custom_call.1} parent=0
    #allocation6 [shape = 'u8[8192]{0}', space=vmem, size = 0x2000, scoped, tag = 'input window, operand 0']
    #allocation7 [shape = 's32[2]{0}', space=sflag, size = 0x8, scoped, tag = 'scoped memory for tpu_custom_call.1']
    #allocation8 [shape = 's32[2]{0}', space=sflag, size = 0x8, scoped, tag = 'scoped memory for tpu_custom_call.1']
    #allocation9 [shape = 'u8[8192]{0}', space=vmem, size = 0x2000, scoped, tag = 'input window, operand 1, single buffered']
    #allocation10 [shape = 's32[1]{0}', space=sflag, size = 0x4, scoped, tag = 'scoped memory for tpu_custom_call.1']
    #allocation11 [shape = 'u8[65536]{0}', space=vmem, size = 0x10000, scoped, tag = 'input window, operand 2, single buffered']
    #allocation12 [shape = 'u8[65536]{0}', space=vmem, size = 0x10000, scoped, tag = 'input window, operand 3, single buffered']
    #allocation13 [shape = 's32[1]{0}', space=sflag, size = 0x4, scoped, tag = 'scoped memory for tpu_custom_call.1']
    #allocation14 [shape = 'u8[65536]{0}', space=vmem, size = 0x10000, scoped, tag = 'input window, operand 4, single buffered']
    #allocation15 [shape = 'u8[65536]{0}', space=vmem, size = 0x10000, scoped, tag = 'input window, operand 5, single buffered']
    #allocation16 [shape = 's32[1]{0}', space=sflag, size = 0x4, scoped, tag = 'scoped memory for tpu_custom_call.1']
    #allocation17 [shape = 'u8[262144]{0}', space=vmem, size = 0x40000, scoped, tag = 'input window, operand 6, single buffered']
    #allocation18 [shape = 'u8[262144]{0}', space=vmem, size = 0x40000, scoped, tag = 'input window, operand 7, single buffered']
    #allocation19 [shape = 's32[1]{0}', space=sflag, size = 0x4, scoped, tag = 'scoped memory for tpu_custom_call.1']
    #allocation20 [shape = 'u8[65536]{0}', space=vmem, size = 0x10000, scoped, tag = 'input window, operand 8, single buffered']
    #allocation21 [shape = 'u8[8192]{0}', space=vmem, size = 0x2000, scoped, tag = 'output window, operand 0']
    %14 = vsyncpa [#allocation7], 0
    %s15 = scalar_lea.sflag [#allocation7], 1
    %16 = vsyncpa %s15, 0
    %17 = vsyncpa [#allocation10], 0
    %18 = vsyncpa [#allocation13], 0
    %19 = vsyncpa [#allocation16], 0
    %20 = vsyncpa [#allocation19], 0
    %21 = vsyncpa [#allocation8], 0
    %s22 = scalar_lea.sflag [#allocation8], 1
    %23 = vsyncpa %s22, 0
    loop: start=0, step=1, limit=4
    $region2: #{tpu_custom_call.1} parent=1 // loop_pre_header
      _
    $region3: #{tpu_custom_call.1} parent=1 // loop_header
      %s25 = sphi 0, %s29
      %p26 = scmp.ge.s32.totalorder %s25, 4
      %s35 = sphi 0, %s37
      %s38 = sphi 0, %s35
      %s39 = sphi 0, %s38
      %s55 = sphi 0, %s39
      %s59 = sphi 0, %s59
      %s61 = sphi 0, %s59
      %s62 = sphi 0, %s61
      %s76 = sphi 0, %s62
      %s80 = sphi 0, %s80
      %s82 = sphi 0, %s80
      %s83 = sphi 0, %s82
      %s97 = sphi 0, %s83
      %s101 = sphi 0, %s101
      %s103 = sphi 0, %s101
      %s104 = sphi 0, %s103
      %s118 = sphi 0, %s104
      %s122 = sphi 0, %s122
      %s124 = sphi 0, %s122
      %s125 = sphi 0, %s124
      %s139 = sphi 0, %s125
      %s143 = sphi 0, %s143
      %s145 = sphi 0, %s143
      %s146 = sphi 0, %s145
      %s160 = sphi 0, %s146
      %s164 = sphi 0, %s164
      %s166 = sphi 0, %s164
      %s167 = sphi 0, %s166
      %s181 = sphi 0, %s167
      %s185 = sphi 0, %s185
      %s187 = sphi 0, %s185
      %s188 = sphi 0, %s187
      %s202 = sphi 0, %s188
      %s206 = sphi 0, %s206
      %s208 = sphi 0, %s206
      %s209 = sphi 0, %s208
      %s223 = sphi 0, %s209
      %s229 = sphi 0, %s231
      %s232 = sphi 0, %s229
      %s233 = sphi 0, %s232
      %s249 = sphi 0, %s233
    $region4: #{tpu_custom_call.1} parent=1 // loop_header_branch
      %28 = sbr.rel (%p26) target = $region8
    $region5: #{tpu_custom_call.1} parent=1 // loop_body
      %s30 = ssub.s32 %s25, 1
      %s31 = ssub.s32 %s25, 2
      %s32 = sadd.s32 %s25, 1
      %s33 = ssub.s32 %s25, %s32
      %p34 = scmp.eq.s32.totalorder %s33, 0
      %s36 = sadd.s32 %s35, 1
      %s37 = scalar_select %p34, %s35, %s36
      %p40 = pneg %p34
      %p41 = scmp.eq.s32.totalorder %s25, 1
      %p42 = por %p40, %p41
      %p43 = scmp.ne.s32.totalorder %s35, %s38
      %p44 = scmp.eq.s32.totalorder %s25, 0
      %p45 = por %p43, %p44
      %p46 = scmp.ne.s32.totalorder %s35, %s38
      %p47 = scmp.eq.s32.totalorder %s30, 1
      %p48 = por %p46, %p47
      %p49 = scmp.ne.s32.totalorder %s38, %s39
      %p50 = scmp.eq.s32.totalorder %s30, 0
      %p51 = por %p49, %p50
      %p52 = scmp.ne.s32.totalorder %s38, %s39
      %p53 = scmp.eq.s32.totalorder %s31, 1
      %p54 = por %p52, %p53
      %p56 = scmp.ne.s32.totalorder %s39, %s55
      %p57 = scmp.eq.s32.totalorder %s31, 0
      %p58 = por %p56, %p57
      %s60 = sadd.s32 %s59, 1
      %p63 = scmp.eq.s32.totalorder %s25, 1
      %p64 = scmp.ne.s32.totalorder %s59, %s61
      %p65 = scmp.eq.s32.totalorder %s25, 0
      %p66 = por %p64, %p65
      %p67 = scmp.ne.s32.totalorder %s59, %s61
      %p68 = scmp.eq.s32.totalorder %s30, 1
      %p69 = por %p67, %p68
      %p70 = scmp.ne.s32.totalorder %s61, %s62
      %p71 = scmp.eq.s32.totalorder %s30, 0
      %p72 = por %p70, %p71
      %p73 = scmp.ne.s32.totalorder %s61, %s62
      %p74 = scmp.eq.s32.totalorder %s31, 1
      %p75 = por %p73, %p74
      %p77 = scmp.ne.s32.totalorder %s62, %s76
      %p78 = scmp.eq.s32.totalorder %s31, 0
      %p79 = por %p77, %p78
      %s81 = sadd.s32 %s80, 1
      %p84 = scmp.eq.s32.totalorder %s25, 1
      %p85 = scmp.ne.s32.totalorder %s80, %s82
      %p86 = scmp.eq.s32.totalorder %s25, 0
      %p87 = por %p85, %p86
      %p88 = scmp.ne.s32.totalorder %s80, %s82
      %p89 = scmp.eq.s32.totalorder %s30, 1
      %p90 = por %p88, %p89
      %p91 = scmp.ne.s32.totalorder %s82, %s83
      %p92 = scmp.eq.s32.totalorder %s30, 0
      %p93 = por %p91, %p92
      %p94 = scmp.ne.s32.totalorder %s82, %s83
      %p95 = scmp.eq.s32.totalorder %s31, 1
      %p96 = por %p94, %p95
      %p98 = scmp.ne.s32.totalorder %s83, %s97
      %p99 = scmp.eq.s32.totalorder %s31, 0
      %p100 = por %p98, %p99
      %s102 = sadd.s32 %s101, 1
      %p105 = scmp.eq.s32.totalorder %s25, 1
      %p106 = scmp.ne.s32.totalorder %s101, %s103
      %p107 = scmp.eq.s32.totalorder %s25, 0
      %p108 = por %p106, %p107
      %p109 = scmp.ne.s32.totalorder %s101, %s103
      %p110 = scmp.eq.s32.totalorder %s30, 1
      %p111 = por %p109, %p110
      %p112 = scmp.ne.s32.totalorder %s103, %s104
      %p113 = scmp.eq.s32.totalorder %s30, 0
      %p114 = por %p112, %p113
      %p115 = scmp.ne.s32.totalorder %s103, %s104
      %p116 = scmp.eq.s32.totalorder %s31, 1
      %p117 = por %p115, %p116
      %p119 = scmp.ne.s32.totalorder %s104, %s118
      %p120 = scmp.eq.s32.totalorder %s31, 0
      %p121 = por %p119, %p120
      %s123 = sadd.s32 %s122, 1
      %p126 = scmp.eq.s32.totalorder %s25, 1
      %p127 = scmp.ne.s32.totalorder %s122, %s124
      %p128 = scmp.eq.s32.totalorder %s25, 0
      %p129 = por %p127, %p128
      %p130 = scmp.ne.s32.totalorder %s122, %s124
      %p131 = scmp.eq.s32.totalorder %s30, 1
      %p132 = por %p130, %p131
      %p133 = scmp.ne.s32.totalorder %s124, %s125
      %p134 = scmp.eq.s32.totalorder %s30, 0
      %p135 = por %p133, %p134
      %p136 = scmp.ne.s32.totalorder %s124, %s125
      %p137 = scmp.eq.s32.totalorder %s31, 1
      %p138 = por %p136, %p137
      %p140 = scmp.ne.s32.totalorder %s125, %s139
      %p141 = scmp.eq.s32.totalorder %s31, 0
      %p142 = por %p140, %p141
      %s144 = sadd.s32 %s143, 1
      %p147 = scmp.eq.s32.totalorder %s25, 1
      %p148 = scmp.ne.s32.totalorder %s143, %s145
      %p149 = scmp.eq.s32.totalorder %s25, 0
      %p150 = por %p148, %p149
      %p151 = scmp.ne.s32.totalorder %s143, %s145
      %p152 = scmp.eq.s32.totalorder %s30, 1
      %p153 = por %p151, %p152
      %p154 = scmp.ne.s32.totalorder %s145, %s146
      %p155 = scmp.eq.s32.totalorder %s30, 0
      %p156 = por %p154, %p155
      %p157 = scmp.ne.s32.totalorder %s145, %s146
      %p158 = scmp.eq.s32.totalorder %s31, 1
      %p159 = por %p157, %p158
      %p161 = scmp.ne.s32.totalorder %s146, %s160
      %p162 = scmp.eq.s32.totalorder %s31, 0
      %p163 = por %p161, %p162
      %s165 = sadd.s32 %s164, 1
      %p168 = scmp.eq.s32.totalorder %s25, 1
      %p169 = scmp.ne.s32.totalorder %s164, %s166
      %p170 = scmp.eq.s32.totalorder %s25, 0
      %p171 = por %p169, %p170
      %p172 = scmp.ne.s32.totalorder %s164, %s166
      %p173 = scmp.eq.s32.totalorder %s30, 1
      %p174 = por %p172, %p173
      %p175 = scmp.ne.s32.totalorder %s166, %s167
      %p176 = scmp.eq.s32.totalorder %s30, 0
      %p177 = por %p175, %p176
      %p178 = scmp.ne.s32.totalorder %s166, %s167
      %p179 = scmp.eq.s32.totalorder %s31, 1
      %p180 = por %p178, %p179
      %p182 = scmp.ne.s32.totalorder %s167, %s181
      %p183 = scmp.eq.s32.totalorder %s31, 0
      %p184 = por %p182, %p183
      %s186 = sadd.s32 %s185, 1
      %p189 = scmp.eq.s32.totalorder %s25, 1
      %p190 = scmp.ne.s32.totalorder %s185, %s187
      %p191 = scmp.eq.s32.totalorder %s25, 0
      %p192 = por %p190, %p191
      %p193 = scmp.ne.s32.totalorder %s185, %s187
      %p194 = scmp.eq.s32.totalorder %s30, 1
      %p195 = por %p193, %p194
      %p196 = scmp.ne.s32.totalorder %s187, %s188
      %p197 = scmp.eq.s32.totalorder %s30, 0
      %p198 = por %p196, %p197
      %p199 = scmp.ne.s32.totalorder %s187, %s188
      %p200 = scmp.eq.s32.totalorder %s31, 1
      %p201 = por %p199, %p200
      %p203 = scmp.ne.s32.totalorder %s188, %s202
      %p204 = scmp.eq.s32.totalorder %s31, 0
      %p205 = por %p203, %p204
      %s207 = sadd.s32 %s206, 1
      %p210 = scmp.eq.s32.totalorder %s25, 1
      %p211 = scmp.ne.s32.totalorder %s206, %s208
      %p212 = scmp.eq.s32.totalorder %s25, 0
      %p213 = por %p211, %p212
      %p214 = scmp.ne.s32.totalorder %s206, %s208
      %p215 = scmp.eq.s32.totalorder %s30, 1
      %p216 = por %p214, %p215
      %p217 = scmp.ne.s32.totalorder %s208, %s209
      %p218 = scmp.eq.s32.totalorder %s30, 0
      %p219 = por %p217, %p218
      %p220 = scmp.ne.s32.totalorder %s208, %s209
      %p221 = scmp.eq.s32.totalorder %s31, 1
      %p222 = por %p220, %p221
      %p224 = scmp.ne.s32.totalorder %s209, %s223
      %p225 = scmp.eq.s32.totalorder %s31, 0
      %p226 = por %p224, %p225
      %s227 = ssub.s32 %s25, %s32
      %p228 = scmp.eq.s32.totalorder %s227, 0
      %s230 = sadd.s32 %s229, 1
      %s231 = scalar_select %p228, %s229, %s230
      %p234 = pneg %p228
      %p235 = scmp.eq.s32.totalorder %s25, 1
      %p236 = por %p234, %p235
      %p237 = scmp.ne.s32.totalorder %s229, %s232
      %p238 = scmp.eq.s32.totalorder %s25, 0
      %p239 = por %p237, %p238
      %p240 = scmp.ne.s32.totalorder %s229, %s232
      %p241 = scmp.eq.s32.totalorder %s30, 1
      %p242 = por %p240, %p241
      %p243 = scmp.ne.s32.totalorder %s232, %s233
      %p244 = scmp.eq.s32.totalorder %s30, 0
      %p245 = por %p243, %p244
      %p246 = scmp.ne.s32.totalorder %s232, %s233
      %p247 = scmp.eq.s32.totalorder %s31, 1
      %p248 = por %p246, %p247
      %p250 = scmp.ne.s32.totalorder %s233, %s249
      %p251 = scmp.eq.s32.totalorder %s31, 0
      %p252 = por %p250, %p251
      %p253 = scmp.le.s32.totalorder 1, %s25
      %p254 = scmp.lt.s32.totalorder %s25, 3
      %p255 = pnand %p253, %p254
      %p256 = pneg %p255
      // Predicated region
      $region9: #{tpu_custom_call.1} parent=5 // pred_check
        _
      $region10: #{tpu_custom_call.1} parent=5 // pred_check_branch
        %258 = sbr.rel (%p255) target = $region12
      $region11: #{tpu_custom_call.1} parent=5 // pred_region
        %s259 = ssub.s32 %s25, 1
        // Predicated region
        $region13: #{tpu_custom_call.1} parent=11 // pred_check
          %p260 = pneg %p72
        $region14: #{tpu_custom_call.1} parent=11 // pred_check_branch
          %262 = sbr.rel (%p260) target = $region16
        $region15: #{tpu_custom_call.1} parent=11 // pred_region
          %264 = vsyncadd [#allocation10], 0
          %s265 = sshll.u32 %s1, 4
          %s266 = int_to_ptr.hbm [resolvable:$true] %s265
          %s267 = sshll.u32 [#allocation9], 4
          %s268 = int_to_ptr.vmem [resolvable:$true] %s267
          %273 = dma.hbm_to_vmem [thread:$0]  %s266, 256, %s268, [#allocation10], 128, 128, 8
        $region16: #{tpu_custom_call.1} parent=11 // pred_fallthru
          _
        // Predicated region
        $region17: #{tpu_custom_call.1} parent=11 // pred_check
          %p274 = pneg %p93
        $region18: #{tpu_custom_call.1} parent=11 // pred_check_branch
          %276 = sbr.rel (%p274) target = $region20
        $region19: #{tpu_custom_call.1} parent=11 // pred_region
          %278 = vsyncadd [#allocation10], 0
          %s279 = sshll.u32 %s2, 4
          %s280 = int_to_ptr.hbm [resolvable:$true] %s279
          %s281 = sshll.u32 [#allocation11], 4
          %s282 = int_to_ptr.vmem [resolvable:$true] %s281
          %287 = dma.hbm_to_vmem [thread:$0]  %s280, 2048, %s282, [#allocation10], 128, 128, 8
        $region20: #{tpu_custom_call.1} parent=11 // pred_fallthru
          _
        // Predicated region
        $region21: #{tpu_custom_call.1} parent=11 // pred_check
          %p288 = pneg %p114
        $region22: #{tpu_custom_call.1} parent=11 // pred_check_branch
          %290 = sbr.rel (%p288) target = $region24
        $region23: #{tpu_custom_call.1} parent=11 // pred_region
          %292 = vsyncadd [#allocation13], 0
          %s293 = sshll.u32 %s3, 4
          %s294 = int_to_ptr.hbm [resolvable:$true] %s293
          %s295 = sshll.u32 [#allocation12], 4
          %s296 = int_to_ptr.vmem [resolvable:$true] %s295
          %301 = dma.hbm_to_vmem [thread:$0]  %s294, 2048, %s296, [#allocation13], 128, 128, 8
        $region24: #{tpu_custom_call.1} parent=11 // pred_fallthru
          _
        // Predicated region
        $region25: #{tpu_custom_call.1} parent=11 // pred_check
          %p302 = pneg %p135
        $region26: #{tpu_custom_call.1} parent=11 // pred_check_branch
          %304 = sbr.rel (%p302) target = $region28
        $region27: #{tpu_custom_call.1} parent=11 // pred_region
          %306 = vsyncadd [#allocation13], 0
          %s307 = sshll.u32 %s4, 4
          %s308 = int_to_ptr.hbm [resolvable:$true] %s307
          %s309 = sshll.u32 [#allocation14], 4
          %s310 = int_to_ptr.vmem [resolvable:$true] %s309
          %315 = dma.hbm_to_vmem [thread:$0]  %s308, 2048, %s310, [#allocation13], 128, 128, 8
        $region28: #{tpu_custom_call.1} parent=11 // pred_fallthru
          _
        // Predicated region
        $region29: #{tpu_custom_call.1} parent=11 // pred_check
          %p316 = pneg %p156
        $region30: #{tpu_custom_call.1} parent=11 // pred_check_branch
          %318 = sbr.rel (%p316) target = $region32
        $region31: #{tpu_custom_call.1} parent=11 // pred_region
          %320 = vsyncadd [#allocation16], 0
          %s321 = sshll.u32 %s5, 4
          %s322 = int_to_ptr.hbm [resolvable:$true] %s321
          %s323 = sshll.u32 [#allocation15], 4
          %s324 = int_to_ptr.vmem [resolvable:$true] %s323
          %329 = dma.hbm_to_vmem [thread:$0]  %s322, 2048, %s324, [#allocation16], 128, 128, 8
        $region32: #{tpu_custom_call.1} parent=11 // pred_fallthru
          _
        // Predicated region
        $region33: #{tpu_custom_call.1} parent=11 // pred_check
          %p330 = pneg %p177
        $region34: #{tpu_custom_call.1} parent=11 // pred_check_branch
          %332 = sbr.rel (%p330) target = $region36
        $region35: #{tpu_custom_call.1} parent=11 // pred_region
          %334 = vsyncadd [#allocation16], 0
          %s335 = sshll.u32 %s6, 4
          %s336 = int_to_ptr.hbm [resolvable:$true] %s335
          %s337 = sshll.u32 [#allocation17], 4
          %s338 = int_to_ptr.vmem [resolvable:$true] %s337
          %343 = dma.hbm_to_vmem [thread:$0]  %s336, 8192, %s338, [#allocation16], 512, 512, 32
        $region36: #{tpu_custom_call.1} parent=11 // pred_fallthru
          _
        // Predicated region
        $region37: #{tpu_custom_call.1} parent=11 // pred_check
          %p344 = pneg %p198
        $region38: #{tpu_custom_call.1} parent=11 // pred_check_branch
          %346 = sbr.rel (%p344) target = $region40
        $region39: #{tpu_custom_call.1} parent=11 // pred_region
          %348 = vsyncadd [#allocation19], 0
          %s349 = sshll.u32 %s7, 4
          %s350 = int_to_ptr.hbm [resolvable:$true] %s349
          %s351 = sshll.u32 [#allocation18], 4
          %s352 = int_to_ptr.vmem [resolvable:$true] %s351
          %357 = dma.hbm_to_vmem [thread:$0]  %s350, 8192, %s352, [#allocation19], 128, 128, 8
        $region40: #{tpu_custom_call.1} parent=11 // pred_fallthru
          _
        // Predicated region
        $region41: #{tpu_custom_call.1} parent=11 // pred_check
          %p358 = pneg %p219
        $region42: #{tpu_custom_call.1} parent=11 // pred_check_branch
          %360 = sbr.rel (%p358) target = $region44
        $region43: #{tpu_custom_call.1} parent=11 // pred_region
          %362 = vsyncadd [#allocation19], 0
          %s363 = sshll.u32 %s8, 4
          %s364 = int_to_ptr.hbm [resolvable:$true] %s363
          %s365 = sshll.u32 [#allocation20], 4
          %s366 = int_to_ptr.vmem [resolvable:$true] %s365
          %371 = dma.hbm_to_vmem [thread:$0]  %s364, 2048, %s366, [#allocation19], 128, 128, 8
        $region44: #{tpu_custom_call.1} parent=11 // pred_fallthru
          _
      $region12: #{tpu_custom_call.1} parent=5 // pred_fallthru
        _
      %p372 = scmp.lt.s32.totalorder %s25, 2
      // Predicated region
      $region45: #{tpu_custom_call.1} parent=5 // pred_check
        %p373 = pneg %p372
      $region46: #{tpu_custom_call.1} parent=5 // pred_check_branch
        %375 = sbr.rel (%p373) target = $region48
      $region47: #{tpu_custom_call.1} parent=5 // pred_region
        // Predicated region
        $region49: #{tpu_custom_call.1} parent=47 // pred_check
          %p376 = pneg %p45
        $region50: #{tpu_custom_call.1} parent=47 // pred_check_branch
          %378 = sbr.rel (%p376) target = $region52
        $region51: #{tpu_custom_call.1} parent=47 // pred_region
          %s379 = sand.u32 %s35, 1
          %s380 = scalar_lea.sflag [#allocation7], %s379
          %s381 = sand.u32 %s35, 1
          %s382 = smul.addr %s381, 8
          %s383 = scalar_lea.vmem [#allocation6], %s382
          %385 = vsyncadd %s380, 0
          %s386 = smul.addr %s25, 8
          %s387 = scalar_lea.hbm %s0, %s386
          %s389 = sshll.u32 %s387, 4
          %s390 = int_to_ptr.hbm [resolvable:$true] %s389
          %s391 = sshll.u32 %s383, 4
          %s392 = int_to_ptr.vmem [resolvable:$true] %s391
          %394 = dma.hbm_to_vmem [thread:$0]  %s390, 128, %s392, %s380
        $region52: #{tpu_custom_call.1} parent=47 // pred_fallthru
          _
      $region48: #{tpu_custom_call.1} parent=5 // pred_fallthru
        _
      %p395 = scmp.le.s32.totalorder 1, %s25
      %p396 = scmp.lt.s32.totalorder %s25, 3
      %p397 = pnand %p395, %p396
      %p398 = pneg %p397
      // Predicated region
      $region53: #{tpu_custom_call.1} parent=5 // pred_check
        _
      $region54: #{tpu_custom_call.1} parent=5 // pred_check_branch
        %400 = sbr.rel (%p397) target = $region56
      $region55: #{tpu_custom_call.1} parent=5 // pred_region
        %s401 = ssub.s32 %s25, 1
        %s402 = sand.u32 %s38, 1
        %s403 = scalar_lea.sflag [#allocation7], %s402
        %s404 = sand.u32 %s38, 1
        %s405 = smul.addr %s404, 8
        %s406 = scalar_lea.vmem [#allocation6], %s405
        // Predicated region
        $region57: #{tpu_custom_call.1} parent=55 // pred_check
          %p407 = pneg %p51
        $region58: #{tpu_custom_call.1} parent=55 // pred_check_branch
          %409 = sbr.rel (%p407) target = $region60
        $region59: #{tpu_custom_call.1} parent=55 // pred_region
          %411 = dma.done %s403, 128
        $region60: #{tpu_custom_call.1} parent=55 // pred_fallthru
          _
        // Predicated region
        $region61: #{tpu_custom_call.1} parent=55 // pred_check
          %p412 = pneg %p72
        $region62: #{tpu_custom_call.1} parent=55 // pred_check_branch
          %414 = sbr.rel (%p412) target = $region64
        $region63: #{tpu_custom_call.1} parent=55 // pred_region
          %416 = dma.done [#allocation10], 256
        $region64: #{tpu_custom_call.1} parent=55 // pred_fallthru
          _
        // Predicated region
        $region65: #{tpu_custom_call.1} parent=55 // pred_check
          %p417 = pneg %p93
        $region66: #{tpu_custom_call.1} parent=55 // pred_check_branch
          %419 = sbr.rel (%p417) target = $region68
        $region67: #{tpu_custom_call.1} parent=55 // pred_region
          %421 = dma.done [#allocation10], 2048
        $region68: #{tpu_custom_call.1} parent=55 // pred_fallthru
          _
        // Predicated region
        $region69: #{tpu_custom_call.1} parent=55 // pred_check
          %p422 = pneg %p114
        $region70: #{tpu_custom_call.1} parent=55 // pred_check_branch
          %424 = sbr.rel (%p422) target = $region72
        $region71: #{tpu_custom_call.1} parent=55 // pred_region
          %426 = dma.done [#allocation13], 2048
        $region72: #{tpu_custom_call.1} parent=55 // pred_fallthru
          _
        // Predicated region
        $region73: #{tpu_custom_call.1} parent=55 // pred_check
          %p427 = pneg %p135
        $region74: #{tpu_custom_call.1} parent=55 // pred_check_branch
          %429 = sbr.rel (%p427) target = $region76
        $region75: #{tpu_custom_call.1} parent=55 // pred_region
          %431 = dma.done [#allocation13], 2048
        $region76: #{tpu_custom_call.1} parent=55 // pred_fallthru
          _
        // Predicated region
        $region77: #{tpu_custom_call.1} parent=55 // pred_check
          %p432 = pneg %p156
        $region78: #{tpu_custom_call.1} parent=55 // pred_check_branch
          %434 = sbr.rel (%p432) target = $region80
        $region79: #{tpu_custom_call.1} parent=55 // pred_region
          %436 = dma.done [#allocation16], 2048
        $region80: #{tpu_custom_call.1} parent=55 // pred_fallthru
          _
        // Predicated region
        $region81: #{tpu_custom_call.1} parent=55 // pred_check
          %p437 = pneg %p177
        $region82: #{tpu_custom_call.1} parent=55 // pred_check_branch
          %439 = sbr.rel (%p437) target = $region84
        $region83: #{tpu_custom_call.1} parent=55 // pred_region
          %441 = dma.done [#allocation16], 8192
        $region84: #{tpu_custom_call.1} parent=55 // pred_fallthru
          _
        // Predicated region
        $region85: #{tpu_custom_call.1} parent=55 // pred_check
          %p442 = pneg %p198
        $region86: #{tpu_custom_call.1} parent=55 // pred_check_branch
          %444 = sbr.rel (%p442) target = $region88
        $region87: #{tpu_custom_call.1} parent=55 // pred_region
          %446 = dma.done [#allocation19], 8192
        $region88: #{tpu_custom_call.1} parent=55 // pred_fallthru
          _
        // Predicated region
        $region89: #{tpu_custom_call.1} parent=55 // pred_check
          %p447 = pneg %p219
        $region90: #{tpu_custom_call.1} parent=55 // pred_check_branch
          %449 = sbr.rel (%p447) target = $region92
        $region91: #{tpu_custom_call.1} parent=55 // pred_region
          %451 = dma.done [#allocation19], 2048
        $region92: #{tpu_custom_call.1} parent=55 // pred_fallthru
          _
        %s452 = sand.u32 %s38, 1
        %s453 = scalar_lea.sflag [#allocation7], %s452
        %s454 = sand.u32 %s38, 1
        %s455 = smul.addr %s454, 8
        %s456 = scalar_lea.vmem [#allocation6], %s455
        %p457 = pneg %p51
        %p458 = pneg %p48
        %p459 = pneg %p72
        %p460 = pneg %p69
        %p461 = pneg %p93
        %p462 = pneg %p90
        %p463 = pneg %p114
        %p464 = pneg %p111
        %p465 = pneg %p135
        %p466 = pneg %p132
        %p467 = pneg %p156
        %p468 = pneg %p153
        %p469 = pneg %p177
        %p470 = pneg %p174
        %p471 = pneg %p198
        %p472 = pneg %p195
        %p473 = pneg %p219
        %p474 = pneg %p216
        %p475 = pneg %p245
        %p476 = pneg %p242
        %s477 = sand.u32 %s232, 1
        %s478 = scalar_lea.sflag [#allocation8], %s477
        %s479 = sand.u32 %s232, 1
        %s480 = smul.addr %s479, 8
        %s481 = scalar_lea.vmem [#allocation21], %s480
        %v482 = vlaneseq
        %v483 = vshrl.u32 %v482, 7
        %vm484 = vcmp.eq.s32.totalorder %v483, 0
        %v485 = vld [vmem:[%s406] sm:$0xff]
        %486 = vadd.xlane.f32.xlu0 %v485
        %v487 = vpop.xlane.xlu0 %486
        %v488 = vrcp.pop 128.0
        %v489 = vmul.f32 128.0, %v488
        %v490 = vsub.f32 1.0, %v489
        %v491 = vmul.f32 %v488, %v490
        %v492 = vadd.f32 %v488, %v491
        %vm493 = vweird.f32 %v488
        %v494 = vsel %vm493, %v488, %v492
        %v495 = vmul.f32 %v487, %v494
        %v496 = vsub.f32 %v485, %v495
        %v497 = vmul.f32 %v496, %v496
        %498 = vadd.xlane.f32.xlu0 %v497
        %v499 = vpop.xlane.xlu0 %498
        %v500 = vmul.f32 %v499, %v494
        %v501 = vadd.f32 %v500, 1e-05
        %v502 = vrsqrt.pop %v501
        %v503 = vmul.f32 %v502, %v501
        %v504 = vmul.f32 %v503, %v502
        %v505 = vmul.f32 0.5, %v504
        %v506 = vsub.f32 1.5, %v505
        %v507 = vmul.f32 %v502, %v506
        %vm508 = vweird.f32 %v501
        %vm509 = vweird.f32 %v502
        %vm510 = vmor %vm508, %vm509
        %v511 = vsel %vm510, %v502, %v507
        %v512 = vmul.f32 %v496, %v511
        %v513 = vld [vmem:[#allocation9] sm:$0x1]
        %v514 = vperm.slane %v513, 0
        %v515 = vmul.f32 %v512, %v514
        %v516 = vld [vmem:[#allocation9 + $0x1] sm:$0x1]
        %v517 = vperm.slane %v516, 0
        %v518 = vadd.f32 %v515, %v517
        %519 = vst [vmem:[#allocation2] sm:$0xff] %v518
        %520 = vadd.xlane.f32.xlu0 %v518
        %v521 = vpop.xlane.xlu0 %520
        %v522 = vmul.f32 %v521, %v494
        %v523 = vsub.f32 %v518, %v522
        %v524 = vmul.f32 %v523, %v523
        %525 = vadd.xlane.f32.xlu0 %v524
        %v526 = vpop.xlane.xlu0 %525
        %v527 = vmul.f32 %v526, %v494
        %v528 = vadd.f32 %v527, 1e-05
        %v529 = vrsqrt.pop %v528
        %v530 = vmul.f32 %v529, %v528
        %v531 = vmul.f32 %v530, %v529
        %v532 = vmul.f32 0.5, %v531
        %v533 = vsub.f32 1.5, %v532
        %v534 = vmul.f32 %v529, %v533
        %vm535 = vweird.f32 %v528
        %vm536 = vweird.f32 %v529
        %vm537 = vmor %vm535, %vm536
        %v538 = vsel %vm537, %v529, %v534
        %v539 = vmul.f32 %v523, %v538
        %v540 = vld [vmem:[#allocation9 + $0x2] sm:$0x1]
        %v541 = vperm.slane %v540, 0
        %v542 = vmul.f32 %v539, %v541
        %v543 = vld [vmem:[#allocation9 + $0x3] sm:$0x1]
        %v544 = vperm.slane %v543, 0
        %v545 = vadd.f32 %v542, %v544
        %v546 = vrot.slane %v545, 7
        %v547 = vsel %vm484, 0.0, %v546
        %v548 = vld [vmem:[#allocation9 + $0x6] sm:$0x1]
        %v549 = vperm.slane %v548, 0
        %v550 = vmul.f32 %v549, %v545
        %v551 = vsub.f32 1.0, %v548
        %v552 = vperm.slane %v551, 0
        %v553 = vmul.f32 %v552, %v547
        %v554 = vadd.f32 %v550, %v553
        %v555 = vld [vmem:[#allocation11] sm:$0xff]
        %v556 = vld [vmem:[#allocation11 + $0x8] sm:$0xff]
        %v557 = vld [vmem:[#allocation11 + $0x10] sm:$0xff]
        %v558 = vld [vmem:[#allocation11 + $0x18] sm:$0xff]
        %v559 = vld [vmem:[#allocation11 + $0x20] sm:$0xff]
        %v560 = vld [vmem:[#allocation11 + $0x28] sm:$0xff]
        %v561 = vld [vmem:[#allocation11 + $0x30] sm:$0xff]
        %v562 = vld [vmem:[#allocation11 + $0x38] sm:$0xff]
        %v563 = vld [vmem:[#allocation11 + $0x40] sm:$0xff]
        %v564 = vld [vmem:[#allocation11 + $0x48] sm:$0xff]
        %v565 = vld [vmem:[#allocation11 + $0x50] sm:$0xff]
        %v566 = vld [vmem:[#allocation11 + $0x58] sm:$0xff]
        %v567 = vld [vmem:[#allocation11 + $0x60] sm:$0xff]
        %v568 = vld [vmem:[#allocation11 + $0x68] sm:$0xff]
        %v569 = vld [vmem:[#allocation11 + $0x70] sm:$0xff]
        %v570 = vld [vmem:[#allocation11 + $0x78] sm:$0xff]
        %571 = vmatpush.msra.mxu0 %v570
        %572 = vmatpush.msra.mxu0 %v569
        %573 = vmatpush.msra.mxu0 %v568
        %574 = vmatpush.msra.mxu0 %v567
        %575 = vmatpush.msra.mxu0 %v566
        %576 = vmatpush.msra.mxu0 %v565
        %577 = vmatpush.msra.mxu0 %v564
        %578 = vmatpush.msra.mxu0 %v563
        %579 = vmatpush.msra.mxu0 %v562
        %580 = vmatpush.msra.mxu0 %v561
        %581 = vmatpush.msra.mxu0 %v560
        %582 = vmatpush.msra.mxu0 %v559
        %583 = vmatpush.msra.mxu0 %v558
        %584 = vmatpush.msra.mxu0 %v557
        %585 = vmatpush.msra.mxu0 %v556
        %586 = vmatpush.msra.mxu0 %v555
        %587 = vmatmul.f32.gmra.mxu0 %v554
        %v588 = vpop.f32.mrf.mxu0
        %v589 = vadd.f32 0.0, %v588
        %590 = vdwg.mxu0
        %591 = vst [vmem:[#allocation4] sm:$0xff] %v589
        %v592 = vld [vmem:[#allocation9 + $0x7] sm:$0x1]
        %v593 = vperm.slane %v592, 0
        %v594 = vmul.f32 %v593, %v545
        %v595 = vsub.f32 1.0, %v592
        %v596 = vperm.slane %v595, 0
        %v597 = vmul.f32 %v596, %v547
        %v598 = vadd.f32 %v594, %v597
        %v599 = vld [vmem:[#allocation12] sm:$0xff]
        %v600 = vld [vmem:[#allocation12 + $0x8] sm:$0xff]
        %v601 = vld [vmem:[#allocation12 + $0x10] sm:$0xff]
        %v602 = vld [vmem:[#allocation12 + $0x18] sm:$0xff]
        %v603 = vld [vmem:[#allocation12 + $0x20] sm:$0xff]
        %v604 = vld [vmem:[#allocation12 + $0x28] sm:$0xff]
        %v605 = vld [vmem:[#allocation12 + $0x30] sm:$0xff]
        %v606 = vld [vmem:[#allocation12 + $0x38] sm:$0xff]
        %v607 = vld [vmem:[#allocation12 + $0x40] sm:$0xff]
        %v608 = vld [vmem:[#allocation12 + $0x48] sm:$0xff]
        %v609 = vld [vmem:[#allocation12 + $0x50] sm:$0xff]
        %v610 = vld [vmem:[#allocation12 + $0x58] sm:$0xff]
        %v611 = vld [vmem:[#allocation12 + $0x60] sm:$0xff]
        %v612 = vld [vmem:[#allocation12 + $0x68] sm:$0xff]
        %v613 = vld [vmem:[#allocation12 + $0x70] sm:$0xff]
        %v614 = vld [vmem:[#allocation12 + $0x78] sm:$0xff]
        %615 = vmatpush.msra.mxu0 %v614
        %616 = vmatpush.msra.mxu0 %v613
        %617 = vmatpush.msra.mxu0 %v612
        %618 = vmatpush.msra.mxu0 %v611
        %619 = vmatpush.msra.mxu0 %v610
        %620 = vmatpush.msra.mxu0 %v609
        %621 = vmatpush.msra.mxu0 %v608
        %622 = vmatpush.msra.mxu0 %v607
        %623 = vmatpush.msra.mxu0 %v606
        %624 = vmatpush.msra.mxu0 %v605
        %625 = vmatpush.msra.mxu0 %v604
        %626 = vmatpush.msra.mxu0 %v603
        %627 = vmatpush.msra.mxu0 %v602
        %628 = vmatpush.msra.mxu0 %v601
        %629 = vmatpush.msra.mxu0 %v600
        %630 = vmatpush.msra.mxu0 %v599
        %631 = vmatmul.f32.gmra.mxu0 %v598
        %v632 = vpop.f32.mrf.mxu0
        %v633 = vadd.f32 0.0, %v632
        %634 = vdwg.mxu0
        %635 = vst [vmem:[#allocation5] sm:$0xff] %v633
        %v636 = vld [vmem:[#allocation9 + $0x8] sm:$0x1]
        %v637 = vperm.slane %v636, 0
        %v638 = vmul.f32 %v637, %v545
        %v639 = vsub.f32 1.0, %v636
        %v640 = vperm.slane %v639, 0
        %v641 = vmul.f32 %v640, %v547
        %v642 = vadd.f32 %v638, %v641
        %v643 = vld [vmem:[#allocation14] sm:$0xff]
        %v644 = vld [vmem:[#allocation14 + $0x8] sm:$0xff]
        %v645 = vld [vmem:[#allocation14 + $0x10] sm:$0xff]
        %v646 = vld [vmem:[#allocation14 + $0x18] sm:$0xff]
        %v647 = vld [vmem:[#allocation14 + $0x20] sm:$0xff]
        %v648 = vld [vmem:[#allocation14 + $0x28] sm:$0xff]
        %v649 = vld [vmem:[#allocation14 + $0x30] sm:$0xff]
        %v650 = vld [vmem:[#allocation14 + $0x38] sm:$0xff]
        %v651 = vld [vmem:[#allocation14 + $0x40] sm:$0xff]
        %v652 = vld [vmem:[#allocation14 + $0x48] sm:$0xff]
        %v653 = vld [vmem:[#allocation14 + $0x50] sm:$0xff]
        %v654 = vld [vmem:[#allocation14 + $0x58] sm:$0xff]
        %v655 = vld [vmem:[#allocation14 + $0x60] sm:$0xff]
        %v656 = vld [vmem:[#allocation14 + $0x68] sm:$0xff]
        %v657 = vld [vmem:[#allocation14 + $0x70] sm:$0xff]
        %v658 = vld [vmem:[#allocation14 + $0x78] sm:$0xff]
        %659 = vmatpush.msra.mxu0 %v658
        %660 = vmatpush.msra.mxu0 %v657
        %661 = vmatpush.msra.mxu0 %v656
        %662 = vmatpush.msra.mxu0 %v655
        %663 = vmatpush.msra.mxu0 %v654
        %664 = vmatpush.msra.mxu0 %v653
        %665 = vmatpush.msra.mxu0 %v652
        %666 = vmatpush.msra.mxu0 %v651
        %667 = vmatpush.msra.mxu0 %v650
        %668 = vmatpush.msra.mxu0 %v649
        %669 = vmatpush.msra.mxu0 %v648
        %670 = vmatpush.msra.mxu0 %v647
        %671 = vmatpush.msra.mxu0 %v646
        %672 = vmatpush.msra.mxu0 %v645
        %673 = vmatpush.msra.mxu0 %v644
        %674 = vmatpush.msra.mxu0 %v643
        %675 = vmatmul.f32.gmra.mxu0 %v642
        %v676 = vpop.f32.mrf.mxu0
        %v677 = vadd.f32 0.0, %v676
        %678 = vdwg.mxu0
        %v679 = vxor.u32 %v677, 2147483648
        %v680 = vmul.f32 %v679, 1.442695
        %v681 = vpow.pop %v680
        %v682 = vadd.f32 %v681, 1.0
        %v683 = vrcp.pop %v682
        %v684 = vmul.f32 %v682, %v683
        %v685 = vsub.f32 1.0, %v684
        %v686 = vmul.f32 %v683, %v685
        %v687 = vadd.f32 %v683, %v686
        %vm688 = vweird.f32 %v682
        %vm689 = vweird.f32 %v683
        %vm690 = vmor %vm688, %vm689
        %v691 = vsel %vm690, %v683, %v687
        %v692 = vand.u32 2147483647, %v682
        %vm693 = vcmp.eq.f32.partialorder %v692, 8.507059e+37
        %v694 = vand.u32 %v682, 2147483648
        %v695 = vor.u32 1.1754944e-38, %v694
        %v696 = vsel %vm693, %v695, %v691
        %v697 = vmul.f32 1.0, %v696
        %698 = vst [vmem:[#allocation3] sm:$0xff] %v697
        %v699 = vld [vmem:[#allocation9 + $0xb] sm:$0x1]
        %v700 = vld [vmem:[#allocation9 + $0xc] sm:$0x1]
        %v701 = vld [vmem:[#allocation4] sm:$0xff]
        %v702 = vld [vmem:[#allocation5] sm:$0xff]
        %v703 = vadd.f32 %v700, %v701
        %v704 = vmax.f32 %v703, -1e+38
        %v705 = vsub.f32 -1e+38, %v704
        %v706 = vmul.f32 %v705, 1.442695
        %v707 = vpow.pop %v706
        %v708 = vsub.f32 %v703, %v704
        %v709 = vmul.f32 %v708, 1.442695
        %v710 = vpow.pop %v709
        %v711 = vmul.f32 %v707, 0.0
        %v712 = vmul.f32 %v710, %v702
        %v713 = vadd.f32 %v711, %v712
        %v714 = vadd.f32 %v711, %v710
        %v715 = vrcp.pop %v714
        %v716 = vmul.f32 %v714, %v715
        %v717 = vsub.f32 1.0, %v716
        %v718 = vmul.f32 %v715, %v717
        %v719 = vadd.f32 %v715, %v718
        %vm720 = vweird.f32 %v714
        %vm721 = vweird.f32 %v715
        %vm722 = vmor %vm720, %vm721
        %v723 = vsel %vm722, %v715, %v719
        %v724 = vand.u32 2147483647, %v714
        %vm725 = vcmp.eq.f32.partialorder %v724, 8.507059e+37
        %v726 = vand.u32 %v714, 2147483648
        %v727 = vor.u32 1.1754944e-38, %v726
        %v728 = vsel %vm725, %v727, %v723
        %v729 = vmul.f32 %v713, %v728
        %v730 = vadd.f32 %v699, -1e+38
        %v731 = vmax.f32 %v730, %v701
        %v732 = vsub.f32 %v730, %v731
        %v733 = vmul.f32 %v732, 1.442695
        %v734 = vpow.pop %v733
        %v735 = vsub.f32 %v701, %v731
        %v736 = vmul.f32 %v735, 1.442695
        %v737 = vpow.pop %v736
        %v738 = vmul.f32 %v734, 0.0
        %v739 = vmul.f32 %v737, %v702
        %v740 = vadd.f32 %v738, %v739
        %v741 = vadd.f32 %v738, %v737
        %v743 = vrot.slane %v701, 1
        %v745 = vadd.f32 %v700, %v743
        %v746 = vmax.f32 %v731, %v745
        %v747 = vsub.f32 %v731, %v746
        %v748 = vmul.f32 %v747, 1.442695
        %v749 = vpow.pop %v748
        %v750 = vsub.f32 %v745, %v746
        %v751 = vmul.f32 %v750, 1.442695
        %v752 = vpow.pop %v751
        %v753 = vmul.f32 %v749, %v740
        %v755 = vrot.slane %v702, 1
        %v757 = vmul.f32 %v752, %v755
        %v758 = vadd.f32 %v753, %v757
        %v759 = vmul.f32 %v749, %v741
        %v760 = vadd.f32 %v759, %v752
        %v761 = vrcp.pop %v760
        %v762 = vmul.f32 %v760, %v761
        %v763 = vsub.f32 1.0, %v762
        %v764 = vmul.f32 %v761, %v763
        %v765 = vadd.f32 %v761, %v764
        %vm766 = vweird.f32 %v760
        %vm767 = vweird.f32 %v761
        %vm768 = vmor %vm766, %vm767
        %v769 = vsel %vm768, %v761, %v765
        %v770 = vand.u32 2147483647, %v760
        %vm771 = vcmp.eq.f32.partialorder %v770, 8.507059e+37
        %v772 = vand.u32 %v760, 2147483648
        %v773 = vor.u32 1.1754944e-38, %v772
        %v774 = vsel %vm771, %v773, %v769
        %v775 = vmul.f32 %v758, %v774
        %v776 = vadd.f32 %v699, %v731
        %v777 = vmax.f32 %v776, %v743
        %v778 = vsub.f32 %v776, %v777
        %v779 = vmul.f32 %v778, 1.442695
        %v780 = vpow.pop %v779
        %v782 = vrot.slane %v777, 7
        %v784 = vsub.f32 %v701, %v782
        %v785 = vmul.f32 %v784, 1.442695
        %v786 = vpow.pop %v785
        %v787 = vmul.f32 %v780, %v740
        %v788 = vmul.f32 %v786, %v702
        %v790 = vrot.slane %v788, 1
        %v792 = vadd.f32 %v787, %v790
        %v793 = vmul.f32 %v780, %v741
        %v795 = vrot.slane %v786, 1
        %v797 = vadd.f32 %v793, %v795
        %v798 = vrot.slane %v701, 2
        %v800 = vadd.f32 %v700, %v798
        %v801 = vmax.f32 %v777, %v800
        %v802 = vsub.f32 %v777, %v801
        %v803 = vmul.f32 %v802, 1.442695
        %v804 = vpow.pop %v803
        %v805 = vsub.f32 %v800, %v801
        %v806 = vmul.f32 %v805, 1.442695
        %v807 = vpow.pop %v806
        %v808 = vmul.f32 %v804, %v792
        %v809 = vrot.slane %v702, 2
        %v811 = vmul.f32 %v807, %v809
        %v812 = vadd.f32 %v808, %v811
        %v813 = vmul.f32 %v804, %v797
        %v814 = vadd.f32 %v813, %v807
        %v815 = vrcp.pop %v814
        %v816 = vmul.f32 %v814, %v815
        %v817 = vsub.f32 1.0, %v816
        %v818 = vmul.f32 %v815, %v817
        %v819 = vadd.f32 %v815, %v818
        %vm820 = vweird.f32 %v814
        %vm821 = vweird.f32 %v815
        %vm822 = vmor %vm820, %vm821
        %v823 = vsel %vm822, %v815, %v819
        %v824 = vand.u32 2147483647, %v814
        %vm825 = vcmp.eq.f32.partialorder %v824, 8.507059e+37
        %v826 = vand.u32 %v814, 2147483648
        %v827 = vor.u32 1.1754944e-38, %v826
        %v828 = vsel %vm825, %v827, %v823
        %v829 = vmul.f32 %v812, %v828
        %v830 = vadd.f32 %v699, %v777
        %v831 = vmax.f32 %v830, %v798
        %v832 = vsub.f32 %v830, %v831
        %v833 = vmul.f32 %v832, 1.442695
        %v834 = vpow.pop %v833
        %v836 = vrot.slane %v831, 6
        %v838 = vsub.f32 %v701, %v836
        %v839 = vmul.f32 %v838, 1.442695
        %v840 = vpow.pop %v839
        %v841 = vmul.f32 %v834, %v792
        %v842 = vmul.f32 %v840, %v702
        %v844 = vrot.slane %v842, 2
        %v846 = vadd.f32 %v841, %v844
        %v847 = vmul.f32 %v834, %v797
        %v849 = vrot.slane %v840, 2
        %v851 = vadd.f32 %v847, %v849
        %v852 = vrot.slane %v701, 3
        %v854 = vadd.f32 %v700, %v852
        %v855 = vmax.f32 %v831, %v854
        %v856 = vsub.f32 %v831, %v855
        %v857 = vmul.f32 %v856, 1.442695
        %v858 = vpow.pop %v857
        %v859 = vsub.f32 %v854, %v855
        %v860 = vmul.f32 %v859, 1.442695
        %v861 = vpow.pop %v860
        %v862 = vmul.f32 %v858, %v846
        %v863 = vrot.slane %v702, 3
        %v865 = vmul.f32 %v861, %v863
        %v866 = vadd.f32 %v862, %v865
        %v867 = vmul.f32 %v858, %v851
        %v868 = vadd.f32 %v867, %v861
        %v869 = vrcp.pop %v868
        %v870 = vmul.f32 %v868, %v869
        %v871 = vsub.f32 1.0, %v870
        %v872 = vmul.f32 %v869, %v871
        %v873 = vadd.f32 %v869, %v872
        %vm874 = vweird.f32 %v868
        %vm875 = vweird.f32 %v869
        %vm876 = vmor %vm874, %vm875
        %v877 = vsel %vm876, %v869, %v873
        %v878 = vand.u32 2147483647, %v868
        %vm879 = vcmp.eq.f32.partialorder %v878, 8.507059e+37
        %v880 = vand.u32 %v868, 2147483648
        %v881 = vor.u32 1.1754944e-38, %v880
        %v882 = vsel %vm879, %v881, %v877
        %v883 = vmul.f32 %v866, %v882
        %v884 = vadd.f32 %v699, %v831
        %v885 = vmax.f32 %v884, %v852
        %v886 = vsub.f32 %v884, %v885
        %v887 = vmul.f32 %v886, 1.442695
        %v888 = vpow.pop %v887
        %v890 = vrot.slane %v885, 5
        %v892 = vsub.f32 %v701, %v890
        %v893 = vmul.f32 %v892, 1.442695
        %v894 = vpow.pop %v893
        %v895 = vmul.f32 %v888, %v846
        %v896 = vmul.f32 %v894, %v702
        %v898 = vrot.slane %v896, 3
        %v900 = vadd.f32 %v895, %v898
        %v901 = vmul.f32 %v888, %v851
        %v903 = vrot.slane %v894, 3
        %v905 = vadd.f32 %v901, %v903
        %v906 = vrot.slane %v701, 4
        %v908 = vadd.f32 %v700, %v906
        %v909 = vmax.f32 %v885, %v908
        %v910 = vsub.f32 %v885, %v909
        %v911 = vmul.f32 %v910, 1.442695
        %v912 = vpow.pop %v911
        %v913 = vsub.f32 %v908, %v909
        %v914 = vmul.f32 %v913, 1.442695
        %v915 = vpow.pop %v914
        %v916 = vmul.f32 %v912, %v900
        %v917 = vrot.slane %v702, 4
        %v919 = vmul.f32 %v915, %v917
        %v920 = vadd.f32 %v916, %v919
        %v921 = vmul.f32 %v912, %v905
        %v922 = vadd.f32 %v921, %v915
        %v923 = vrcp.pop %v922
        %v924 = vmul.f32 %v922, %v923
        %v925 = vsub.f32 1.0, %v924
        %v926 = vmul.f32 %v923, %v925
        %v927 = vadd.f32 %v923, %v926
        %vm928 = vweird.f32 %v922
        %vm929 = vweird.f32 %v923
        %vm930 = vmor %vm928, %vm929
        %v931 = vsel %vm930, %v923, %v927
        %v932 = vand.u32 2147483647, %v922
        %vm933 = vcmp.eq.f32.partialorder %v932, 8.507059e+37
        %v934 = vand.u32 %v922, 2147483648
        %v935 = vor.u32 1.1754944e-38, %v934
        %v936 = vsel %vm933, %v935, %v931
        %v937 = vmul.f32 %v920, %v936
        %v938 = vadd.f32 %v699, %v885
        %v939 = vmax.f32 %v938, %v906
        %v940 = vsub.f32 %v938, %v939
        %v941 = vmul.f32 %v940, 1.442695
        %v942 = vpow.pop %v941
        %v944 = vrot.slane %v939, 4
        %v946 = vsub.f32 %v701, %v944
        %v947 = vmul.f32 %v946, 1.442695
        %v948 = vpow.pop %v947
        %v949 = vmul.f32 %v942, %v900
        %v950 = vmul.f32 %v948, %v702
        %v952 = vrot.slane %v950, 4
        %v954 = vadd.f32 %v949, %v952
        %v955 = vmul.f32 %v942, %v905
        %v957 = vrot.slane %v948, 4
        %v959 = vadd.f32 %v955, %v957
        %v960 = vrot.slane %v701, 5
        %v962 = vadd.f32 %v700, %v960
        %v963 = vmax.f32 %v939, %v962
        %v964 = vsub.f32 %v939, %v963
        %v965 = vmul.f32 %v964, 1.442695
        %v966 = vpow.pop %v965
        %v967 = vsub.f32 %v962, %v963
        %v968 = vmul.f32 %v967, 1.442695
        %v969 = vpow.pop %v968
        %v970 = vmul.f32 %v966, %v954
        %v971 = vrot.slane %v702, 5
        %v973 = vmul.f32 %v969, %v971
        %v974 = vadd.f32 %v970, %v973
        %v975 = vmul.f32 %v966, %v959
        %v976 = vadd.f32 %v975, %v969
        %v977 = vrcp.pop %v976
        %v978 = vmul.f32 %v976, %v977
        %v979 = vsub.f32 1.0, %v978
        %v980 = vmul.f32 %v977, %v979
        %v981 = vadd.f32 %v977, %v980
        %vm982 = vweird.f32 %v976
        %vm983 = vweird.f32 %v977
        %vm984 = vmor %vm982, %vm983
        %v985 = vsel %vm984, %v977, %v981
        %v986 = vand.u32 2147483647, %v976
        %vm987 = vcmp.eq.f32.partialorder %v986, 8.507059e+37
        %v988 = vand.u32 %v976, 2147483648
        %v989 = vor.u32 1.1754944e-38, %v988
        %v990 = vsel %vm987, %v989, %v985
        %v991 = vmul.f32 %v974, %v990
        %v992 = vadd.f32 %v699, %v939
        %v993 = vmax.f32 %v992, %v960
        %v994 = vsub.f32 %v992, %v993
        %v995 = vmul.f32 %v994, 1.442695
        %v996 = vpow.pop %v995
        %v998 = vrot.slane %v993, 3
        %v1000 = vsub.f32 %v701, %v998
        %v1001 = vmul.f32 %v1000, 1.442695
        %v1002 = vpow.pop %v1001
        %v1003 = vmul.f32 %v996, %v954
        %v1004 = vmul.f32 %v1002, %v702
        %v1006 = vrot.slane %v1004, 5
        %v1008 = vadd.f32 %v1003, %v1006
        %v1009 = vmul.f32 %v996, %v959
        %v1011 = vrot.slane %v1002, 5
        %v1013 = vadd.f32 %v1009, %v1011
        %v1014 = vrot.slane %v701, 6
        %v1016 = vadd.f32 %v700, %v1014
        %v1017 = vmax.f32 %v993, %v1016
        %v1018 = vsub.f32 %v993, %v1017
        %v1019 = vmul.f32 %v1018, 1.442695
        %v1020 = vpow.pop %v1019
        %v1021 = vsub.f32 %v1016, %v1017
        %v1022 = vmul.f32 %v1021, 1.442695
        %v1023 = vpow.pop %v1022
        %v1024 = vmul.f32 %v1020, %v1008
        %v1025 = vrot.slane %v702, 6
        %v1027 = vmul.f32 %v1023, %v1025
        %v1028 = vadd.f32 %v1024, %v1027
        %v1029 = vmul.f32 %v1020, %v1013
        %v1030 = vadd.f32 %v1029, %v1023
        %v1031 = vrcp.pop %v1030
        %v1032 = vmul.f32 %v1030, %v1031
        %v1033 = vsub.f32 1.0, %v1032
        %v1034 = vmul.f32 %v1031, %v1033
        %v1035 = vadd.f32 %v1031, %v1034
        %vm1036 = vweird.f32 %v1030
        %vm1037 = vweird.f32 %v1031
        %vm1038 = vmor %vm1036, %vm1037
        %v1039 = vsel %vm1038, %v1031, %v1035
        %v1040 = vand.u32 2147483647, %v1030
        %vm1041 = vcmp.eq.f32.partialorder %v1040, 8.507059e+37
        %v1042 = vand.u32 %v1030, 2147483648
        %v1043 = vor.u32 1.1754944e-38, %v1042
        %v1044 = vsel %vm1041, %v1043, %v1039
        %v1045 = vmul.f32 %v1028, %v1044
        %v1046 = vadd.f32 %v699, %v993
        %v1047 = vmax.f32 %v1046, %v1014
        %v1048 = vsub.f32 %v1046, %v1047
        %v1049 = vmul.f32 %v1048, 1.442695
        %v1050 = vpow.pop %v1049
        %v1052 = vrot.slane %v1047, 2
        %v1054 = vsub.f32 %v701, %v1052
        %v1055 = vmul.f32 %v1054, 1.442695
        %v1056 = vpow.pop %v1055
        %v1057 = vmul.f32 %v1050, %v1008
        %v1058 = vmul.f32 %v1056, %v702
        %v1060 = vrot.slane %v1058, 6
        %v1062 = vadd.f32 %v1057, %v1060
        %v1063 = vmul.f32 %v1050, %v1013
        %v1065 = vrot.slane %v1056, 6
        %v1067 = vadd.f32 %v1063, %v1065
        %v1068 = vrot.slane %v701, 7
        %v1070 = vadd.f32 %v700, %v1068
        %v1071 = vmax.f32 %v1047, %v1070
        %v1072 = vsub.f32 %v1047, %v1071
        %v1073 = vmul.f32 %v1072, 1.442695
        %v1074 = vpow.pop %v1073
        %v1075 = vsub.f32 %v1070, %v1071
        %v1076 = vmul.f32 %v1075, 1.442695
        %v1077 = vpow.pop %v1076
        %v1078 = vmul.f32 %v1074, %v1062
        %v1079 = vrot.slane %v702, 7
        %v1081 = vmul.f32 %v1077, %v1079
        %v1082 = vadd.f32 %v1078, %v1081
        %v1083 = vmul.f32 %v1074, %v1067
        %v1084 = vadd.f32 %v1083, %v1077
        %v1085 = vrcp.pop %v1084
        %v1086 = vmul.f32 %v1084, %v1085
        %v1087 = vsub.f32 1.0, %v1086
        %v1088 = vmul.f32 %v1085, %v1087
        %v1089 = vadd.f32 %v1085, %v1088
        %vm1090 = vweird.f32 %v1084
        %vm1091 = vweird.f32 %v1085
        %vm1092 = vmor %vm1090, %vm1091
        %v1093 = vsel %vm1092, %v1085, %v1089
        %v1094 = vand.u32 2147483647, %v1084
        %vm1095 = vcmp.eq.f32.partialorder %v1094, 8.507059e+37
        %v1096 = vand.u32 %v1084, 2147483648
        %v1097 = vor.u32 1.1754944e-38, %v1096
        %v1098 = vsel %vm1095, %v1097, %v1093
        %v1099 = vmul.f32 %v1082, %v1098
        %v1101 = vrot.slane %v775, 7
        %v1104 = vrot.slane %v829, 6
        %v1107 = vrot.slane %v883, 5
        %v1110 = vrot.slane %v937, 4
        %v1113 = vrot.slane %v991, 3
        %v1116 = vrot.slane %v1045, 2
        %v1119 = vrot.slane %v1099, 1
        %vm1121 = vcmask 1040384
        %v1122 = vsel %vm1121, %v729, %v1101
        %vm1123 = vcmask 1041408
        %v1124 = vsel %vm1123, %v1122, %v1104
        %vm1125 = vcmask 1042432
        %v1126 = vsel %vm1125, %v1124, %v1107
        %vm1127 = vcmask 1043456
        %v1128 = vsel %vm1127, %v1126, %v1110
        %vm1129 = vcmask 1044480
        %v1130 = vsel %vm1129, %v1128, %v1113
        %vm1131 = vcmask 1045504
        %v1132 = vsel %vm1131, %v1130, %v1116
        %vm1133 = vcmask 1046528
        %v1134 = vsel %vm1133, %v1132, %v1119
        %1135 = vst [vmem:[#allocation4] sm:$0xff] %v1134
        %v1136 = vld [vmem:[#allocation3] sm:$0xff]
        %v1137 = vld [vmem:[#allocation4] sm:$0xff]
        %v1138 = vmul.f32 %v1136, %v1137
        %v1139 = vld [vmem:[#allocation15] sm:$0xff]
        %v1140 = vld [vmem:[#allocation15 + $0x8] sm:$0xff]
        %v1141 = vld [vmem:[#allocation15 + $0x10] sm:$0xff]
        %v1142 = vld [vmem:[#allocation15 + $0x18] sm:$0xff]
        %v1143 = vld [vmem:[#allocation15 + $0x20] sm:$0xff]
        %v1144 = vld [vmem:[#allocation15 + $0x28] sm:$0xff]
        %v1145 = vld [vmem:[#allocation15 + $0x30] sm:$0xff]
        %v1146 = vld [vmem:[#allocation15 + $0x38] sm:$0xff]
        %v1147 = vld [vmem:[#allocation15 + $0x40] sm:$0xff]
        %v1148 = vld [vmem:[#allocation15 + $0x48] sm:$0xff]
        %v1149 = vld [vmem:[#allocation15 + $0x50] sm:$0xff]
        %v1150 = vld [vmem:[#allocation15 + $0x58] sm:$0xff]
        %v1151 = vld [vmem:[#allocation15 + $0x60] sm:$0xff]
        %v1152 = vld [vmem:[#allocation15 + $0x68] sm:$0xff]
        %v1153 = vld [vmem:[#allocation15 + $0x70] sm:$0xff]
        %v1154 = vld [vmem:[#allocation15 + $0x78] sm:$0xff]
        %1155 = vmatpush.msra.mxu0 %v1154
        %1156 = vmatpush.msra.mxu0 %v1153
        %1157 = vmatpush.msra.mxu0 %v1152
        %1158 = vmatpush.msra.mxu0 %v1151
        %1159 = vmatpush.msra.mxu0 %v1150
        %1160 = vmatpush.msra.mxu0 %v1149
        %1161 = vmatpush.msra.mxu0 %v1148
        %1162 = vmatpush.msra.mxu0 %v1147
        %1163 = vmatpush.msra.mxu0 %v1146
        %1164 = vmatpush.msra.mxu0 %v1145
        %1165 = vmatpush.msra.mxu0 %v1144
        %1166 = vmatpush.msra.mxu0 %v1143
        %1167 = vmatpush.msra.mxu0 %v1142
        %1168 = vmatpush.msra.mxu0 %v1141
        %1169 = vmatpush.msra.mxu0 %v1140
        %1170 = vmatpush.msra.mxu0 %v1139
        %1171 = vmatmul.f32.gmra.mxu0 %v1138
        %v1172 = vpop.f32.mrf.mxu0
        %v1173 = vadd.f32 0.0, %v1172
        %1174 = vdwg.mxu0
        %1175 = vst [vmem:[#allocation3] sm:$0xff] %v1173
        %v1176 = vld [vmem:[#allocation3] sm:$0xff]
        %v1177 = vmul.f32 %v1176, 0.5
        %v1178 = vadd.f32 %v1177, 0.0
        %vm1179 = vcmp.ge.f32.partialorder %v1178, 1.0
        %v1180 = vsel %vm1179, 1, 0
        %v1181 = vcvt.s32.f32 %v1180
        %v1182 = vsub.f32 1.0, %v1181
        %v1183 = vmul.f32 %v1182, %v1178
        %v1185 = vrot.slane %v1183, 7
        %v1187 = vsub.f32 %v1176, %v1185
        %v1188 = vmul.f32 %v1187, 0.5
        %v1190 = vrot.slane %v1188, 1
        %v1192 = vadd.f32 %v1183, %v1190
        %vm1193 = vcmp.ge.f32.partialorder %v1192, 1.0
        %v1194 = vsel %vm1193, 1, 0
        %v1195 = vcvt.s32.f32 %v1194
        %v1196 = vsub.f32 1.0, %v1195
        %v1197 = vmul.f32 %v1196, %v1192
        %v1199 = vrot.slane %v1197, 6
        %v1201 = vsub.f32 %v1176, %v1199
        %v1202 = vmul.f32 %v1201, 0.5
        %v1204 = vrot.slane %v1202, 2
        %v1206 = vadd.f32 %v1197, %v1204
        %vm1207 = vcmp.ge.f32.partialorder %v1206, 1.0
        %v1208 = vsel %vm1207, 1, 0
        %v1209 = vcvt.s32.f32 %v1208
        %v1210 = vsub.f32 1.0, %v1209
        %v1211 = vmul.f32 %v1210, %v1206
        %v1213 = vrot.slane %v1211, 5
        %v1215 = vsub.f32 %v1176, %v1213
        %v1216 = vmul.f32 %v1215, 0.5
        %v1218 = vrot.slane %v1216, 3
        %v1220 = vadd.f32 %v1211, %v1218
        %vm1221 = vcmp.ge.f32.partialorder %v1220, 1.0
        %v1222 = vsel %vm1221, 1, 0
        %v1223 = vcvt.s32.f32 %v1222
        %v1224 = vsub.f32 1.0, %v1223
        %v1225 = vmul.f32 %v1224, %v1220
        %v1227 = vrot.slane %v1225, 4
        %v1229 = vsub.f32 %v1176, %v1227
        %v1230 = vmul.f32 %v1229, 0.5
        %v1232 = vrot.slane %v1230, 4
        %v1234 = vadd.f32 %v1225, %v1232
        %vm1235 = vcmp.ge.f32.partialorder %v1234, 1.0
        %v1236 = vsel %vm1235, 1, 0
        %v1237 = vcvt.s32.f32 %v1236
        %v1238 = vsub.f32 1.0, %v1237
        %v1239 = vmul.f32 %v1238, %v1234
        %v1241 = vrot.slane %v1239, 3
        %v1243 = vsub.f32 %v1176, %v1241
        %v1244 = vmul.f32 %v1243, 0.5
        %v1246 = vrot.slane %v1244, 5
        %v1248 = vadd.f32 %v1239, %v1246
        %vm1249 = vcmp.ge.f32.partialorder %v1248, 1.0
        %v1250 = vsel %vm1249, 1, 0
        %v1251 = vcvt.s32.f32 %v1250
        %v1252 = vsub.f32 1.0, %v1251
        %v1253 = vmul.f32 %v1252, %v1248
        %v1255 = vrot.slane %v1253, 2
        %v1257 = vsub.f32 %v1176, %v1255
        %v1258 = vmul.f32 %v1257, 0.5
        %v1260 = vrot.slane %v1258, 6
        %v1262 = vadd.f32 %v1253, %v1260
        %vm1263 = vcmp.ge.f32.partialorder %v1262, 1.0
        %v1264 = vsel %vm1263, 1, 0
        %v1265 = vcvt.s32.f32 %v1264
        %v1266 = vsub.f32 1.0, %v1265
        %v1267 = vmul.f32 %v1266, %v1262
        %v1269 = vrot.slane %v1267, 1
        %v1271 = vsub.f32 %v1176, %v1269
        %v1272 = vmul.f32 %v1271, 0.5
        %v1274 = vrot.slane %v1272, 7
        %v1276 = vadd.f32 %v1267, %v1274
        %vm1277 = vcmp.ge.f32.partialorder %v1276, 1.0
        %v1278 = vsel %vm1277, 1, 0
        %v1279 = vcvt.s32.f32 %v1278
        %v1281 = vrot.slane %v1195, 7
        %v1284 = vrot.slane %v1209, 6
        %v1287 = vrot.slane %v1223, 5
        %v1290 = vrot.slane %v1237, 4
        %v1293 = vrot.slane %v1251, 3
        %v1296 = vrot.slane %v1265, 2
        %v1299 = vrot.slane %v1279, 1
        %v1301 = vsel %vm1121, %v1181, %v1281
        %v1302 = vsel %vm1123, %v1301, %v1284
        %v1303 = vsel %vm1125, %v1302, %v1287
        %v1304 = vsel %vm1127, %v1303, %v1290
        %v1305 = vsel %vm1129, %v1304, %v1293
        %v1306 = vsel %vm1131, %v1305, %v1296
        %v1307 = vsel %vm1133, %v1306, %v1299
        %1308 = vst [vmem:[#allocation3] sm:$0xff] %v1307
        %v1309 = vld [vmem:[#allocation2] sm:$0xff]
        %v1310 = vld [vmem:[#allocation3] sm:$0xff]
        %v1311 = vadd.f32 %v1309, %v1310
        %1312 = vst [vmem:[#allocation2] sm:$0xff] %v1311
        %v1313 = vld [vmem:[#allocation2] sm:$0xff]
        %1314 = vadd.xlane.f32.xlu0 %v1313
        %v1315 = vpop.xlane.xlu0 %1314
        %v1316 = vmul.f32 %v1315, %v494
        %v1317 = vsub.f32 %v1313, %v1316
        %v1318 = vmul.f32 %v1317, %v1317
        %1319 = vadd.xlane.f32.xlu0 %v1318
        %v1320 = vpop.xlane.xlu0 %1319
        %v1321 = vmul.f32 %v1320, %v494
        %v1322 = vadd.f32 %v1321, 1e-05
        %v1323 = vrsqrt.pop %v1322
        %v1324 = vmul.f32 %v1323, %v1322
        %v1325 = vmul.f32 %v1324, %v1323
        %v1326 = vmul.f32 0.5, %v1325
        %v1327 = vsub.f32 1.5, %v1326
        %v1328 = vmul.f32 %v1323, %v1327
        %vm1329 = vweird.f32 %v1322
        %vm1330 = vweird.f32 %v1323
        %vm1331 = vmor %vm1329, %vm1330
        %v1332 = vsel %vm1331, %v1323, %v1328
        %v1333 = vmul.f32 %v1317, %v1332
        %v1334 = vld [vmem:[#allocation9 + $0x4] sm:$0x1]
        %v1335 = vperm.slane %v1334, 0
        %v1336 = vmul.f32 %v1333, %v1335
        %v1337 = vld [vmem:[#allocation9 + $0x5] sm:$0x1]
        %v1338 = vperm.slane %v1337, 0
        %v1339 = vadd.f32 %v1336, %v1338
        %v1340 = vrot.slane %v1339, 7
        %v1341 = vsel %vm484, 0.0, %v1340
        %v1342 = vld [vmem:[#allocation9 + $0x9] sm:$0x1]
        %v1343 = vperm.slane %v1342, 0
        %v1344 = vmul.f32 %v1343, %v1339
        %v1345 = vsub.f32 1.0, %v1342
        %v1346 = vperm.slane %v1345, 0
        %v1347 = vmul.f32 %v1346, %v1341
        %v1348 = vadd.f32 %v1344, %v1347
        %1349 = vst [vmem:[#allocation4] sm:$0xff] %v1348
        %v1350 = vld [vmem:[#allocation9 + $0xa] sm:$0x1]
        %v1351 = vperm.slane %v1350, 0
        %v1352 = vmul.f32 %v1351, %v1339
        %v1353 = vsub.f32 1.0, %v1350
        %v1354 = vperm.slane %v1353, 0
        %v1355 = vmul.f32 %v1354, %v1341
        %v1356 = vadd.f32 %v1352, %v1355
        %1357 = vst [vmem:[#allocation5] sm:$0xff] %v1356
        %v1358 = vld [vmem:[#allocation4] sm:$0xff]
        %v1359 = vld [vmem:[#allocation5] sm:$0xff]
        %v1360 = vld [vmem:[#allocation17] sm:$0xff]
        %v1361 = vld [vmem:[#allocation17 + $0x8] sm:$0xff]
        %v1362 = vld [vmem:[#allocation17 + $0x10] sm:$0xff]
        %v1363 = vld [vmem:[#allocation17 + $0x18] sm:$0xff]
        %v1364 = vld [vmem:[#allocation17 + $0x20] sm:$0xff]
        %v1365 = vld [vmem:[#allocation17 + $0x28] sm:$0xff]
        %v1366 = vld [vmem:[#allocation17 + $0x30] sm:$0xff]
        %v1367 = vld [vmem:[#allocation17 + $0x38] sm:$0xff]
        %v1368 = vld [vmem:[#allocation17 + $0x40] sm:$0xff]
        %v1369 = vld [vmem:[#allocation17 + $0x48] sm:$0xff]
        %v1370 = vld [vmem:[#allocation17 + $0x50] sm:$0xff]
        %v1371 = vld [vmem:[#allocation17 + $0x58] sm:$0xff]
        %v1372 = vld [vmem:[#allocation17 + $0x60] sm:$0xff]
        %v1373 = vld [vmem:[#allocation17 + $0x68] sm:$0xff]
        %v1374 = vld [vmem:[#allocation17 + $0x70] sm:$0xff]
        %v1375 = vld [vmem:[#allocation17 + $0x78] sm:$0xff]
        %v1376 = vld [vmem:[#allocation17 + $0x80] sm:$0xff]
        %v1377 = vld [vmem:[#allocation17 + $0x88] sm:$0xff]
        %v1378 = vld [vmem:[#allocation17 + $0x90] sm:$0xff]
        %v1379 = vld [vmem:[#allocation17 + $0x98] sm:$0xff]
        %v1380 = vld [vmem:[#allocation17 + $0xa0] sm:$0xff]
        %v1381 = vld [vmem:[#allocation17 + $0xa8] sm:$0xff]
        %v1382 = vld [vmem:[#allocation17 + $0xb0] sm:$0xff]
        %v1383 = vld [vmem:[#allocation17 + $0xb8] sm:$0xff]
        %v1384 = vld [vmem:[#allocation17 + $0xc0] sm:$0xff]
        %v1385 = vld [vmem:[#allocation17 + $0xc8] sm:$0xff]
        %v1386 = vld [vmem:[#allocation17 + $0xd0] sm:$0xff]
        %v1387 = vld [vmem:[#allocation17 + $0xd8] sm:$0xff]
        %v1388 = vld [vmem:[#allocation17 + $0xe0] sm:$0xff]
        %v1389 = vld [vmem:[#allocation17 + $0xe8] sm:$0xff]
        %v1390 = vld [vmem:[#allocation17 + $0xf0] sm:$0xff]
        %v1391 = vld [vmem:[#allocation17 + $0xf8] sm:$0xff]
        %v1392 = vld [vmem:[#allocation17 + $0x100] sm:$0xff]
        %v1393 = vld [vmem:[#allocation17 + $0x108] sm:$0xff]
        %v1394 = vld [vmem:[#allocation17 + $0x110] sm:$0xff]
        %v1395 = vld [vmem:[#allocation17 + $0x118] sm:$0xff]
        %v1396 = vld [vmem:[#allocation17 + $0x120] sm:$0xff]
        %v1397 = vld [vmem:[#allocation17 + $0x128] sm:$0xff]
        %v1398 = vld [vmem:[#allocation17 + $0x130] sm:$0xff]
        %v1399 = vld [vmem:[#allocation17 + $0x138] sm:$0xff]
        %v1400 = vld [vmem:[#allocation17 + $0x140] sm:$0xff]
        %v1401 = vld [vmem:[#allocation17 + $0x148] sm:$0xff]
        %v1402 = vld [vmem:[#allocation17 + $0x150] sm:$0xff]
        %v1403 = vld [vmem:[#allocation17 + $0x158] sm:$0xff]
        %v1404 = vld [vmem:[#allocation17 + $0x160] sm:$0xff]
        %v1405 = vld [vmem:[#allocation17 + $0x168] sm:$0xff]
        %v1406 = vld [vmem:[#allocation17 + $0x170] sm:$0xff]
        %v1407 = vld [vmem:[#allocation17 + $0x178] sm:$0xff]
        %v1408 = vld [vmem:[#allocation17 + $0x180] sm:$0xff]
        %v1409 = vld [vmem:[#allocation17 + $0x188] sm:$0xff]
        %v1410 = vld [vmem:[#allocation17 + $0x190] sm:$0xff]
        %v1411 = vld [vmem:[#allocation17 + $0x198] sm:$0xff]
        %v1412 = vld [vmem:[#allocation17 + $0x1a0] sm:$0xff]
        %v1413 = vld [vmem:[#allocation17 + $0x1a8] sm:$0xff]
        %v1414 = vld [vmem:[#allocation17 + $0x1b0] sm:$0xff]
        %v1415 = vld [vmem:[#allocation17 + $0x1b8] sm:$0xff]
        %v1416 = vld [vmem:[#allocation17 + $0x1c0] sm:$0xff]
        %v1417 = vld [vmem:[#allocation17 + $0x1c8] sm:$0xff]
        %v1418 = vld [vmem:[#allocation17 + $0x1d0] sm:$0xff]
        %v1419 = vld [vmem:[#allocation17 + $0x1d8] sm:$0xff]
        %v1420 = vld [vmem:[#allocation17 + $0x1e0] sm:$0xff]
        %v1421 = vld [vmem:[#allocation17 + $0x1e8] sm:$0xff]
        %v1422 = vld [vmem:[#allocation17 + $0x1f0] sm:$0xff]
        %v1423 = vld [vmem:[#allocation17 + $0x1f8] sm:$0xff]
        %1424 = vmatpush.msra.mxu0 %v1420
        %1425 = vmatpush.msra.mxu0 %v1416
        %1426 = vmatpush.msra.mxu0 %v1412
        %1427 = vmatpush.msra.mxu0 %v1408
        %1428 = vmatpush.msra.mxu0 %v1404
        %1429 = vmatpush.msra.mxu0 %v1400
        %1430 = vmatpush.msra.mxu0 %v1396
        %1431 = vmatpush.msra.mxu0 %v1392
        %1432 = vmatpush.msra.mxu0 %v1388
        %1433 = vmatpush.msra.mxu0 %v1384
        %1434 = vmatpush.msra.mxu0 %v1380
        %1435 = vmatpush.msra.mxu0 %v1376
        %1436 = vmatpush.msra.mxu0 %v1372
        %1437 = vmatpush.msra.mxu0 %v1368
        %1438 = vmatpush.msra.mxu0 %v1364
        %1439 = vmatpush.msra.mxu0 %v1360
        %1440 = vmatmul.f32.gmra.mxu0 %v1358
        %v1441 = vpop.f32.mrf.mxu0
        %v1442 = vadd.f32 0.0, %v1441
        %1443 = vdwg.mxu0
        %1444 = vmatpush.msra.mxu0 %v1421
        %1445 = vmatpush.msra.mxu0 %v1417
        %1446 = vmatpush.msra.mxu0 %v1413
        %1447 = vmatpush.msra.mxu0 %v1409
        %1448 = vmatpush.msra.mxu0 %v1405
        %1449 = vmatpush.msra.mxu0 %v1401
        %1450 = vmatpush.msra.mxu0 %v1397
        %1451 = vmatpush.msra.mxu0 %v1393
        %1452 = vmatpush.msra.mxu0 %v1389
        %1453 = vmatpush.msra.mxu0 %v1385
        %1454 = vmatpush.msra.mxu0 %v1381
        %1455 = vmatpush.msra.mxu0 %v1377
        %1456 = vmatpush.msra.mxu0 %v1373
        %1457 = vmatpush.msra.mxu0 %v1369
        %1458 = vmatpush.msra.mxu0 %v1365
        %1459 = vmatpush.msra.mxu0 %v1361
        %1460 = vmatmul.f32.gmra.mxu0 %v1358
        %v1461 = vpop.f32.mrf.mxu0
        %v1462 = vadd.f32 0.0, %v1461
        %1463 = vdwg.mxu0
        %1464 = vmatpush.msra.mxu0 %v1422
        %1465 = vmatpush.msra.mxu0 %v1418
        %1466 = vmatpush.msra.mxu0 %v1414
        %1467 = vmatpush.msra.mxu0 %v1410
        %1468 = vmatpush.msra.mxu0 %v1406
        %1469 = vmatpush.msra.mxu0 %v1402
        %1470 = vmatpush.msra.mxu0 %v1398
        %1471 = vmatpush.msra.mxu0 %v1394
        %1472 = vmatpush.msra.mxu0 %v1390
        %1473 = vmatpush.msra.mxu0 %v1386
        %1474 = vmatpush.msra.mxu0 %v1382
        %1475 = vmatpush.msra.mxu0 %v1378
        %1476 = vmatpush.msra.mxu0 %v1374
        %1477 = vmatpush.msra.mxu0 %v1370
        %1478 = vmatpush.msra.mxu0 %v1366
        %1479 = vmatpush.msra.mxu0 %v1362
        %1480 = vmatmul.f32.gmra.mxu0 %v1358
        %v1481 = vpop.f32.mrf.mxu0
        %v1482 = vadd.f32 0.0, %v1481
        %1483 = vdwg.mxu0
        %1484 = vmatpush.msra.mxu0 %v1423
        %1485 = vmatpush.msra.mxu0 %v1419
        %1486 = vmatpush.msra.mxu0 %v1415
        %1487 = vmatpush.msra.mxu0 %v1411
        %1488 = vmatpush.msra.mxu0 %v1407
        %1489 = vmatpush.msra.mxu0 %v1403
        %1490 = vmatpush.msra.mxu0 %v1399
        %1491 = vmatpush.msra.mxu0 %v1395
        %1492 = vmatpush.msra.mxu0 %v1391
        %1493 = vmatpush.msra.mxu0 %v1387
        %1494 = vmatpush.msra.mxu0 %v1383
        %1495 = vmatpush.msra.mxu0 %v1379
        %1496 = vmatpush.msra.mxu0 %v1375
        %1497 = vmatpush.msra.mxu0 %v1371
        %1498 = vmatpush.msra.mxu0 %v1367
        %1499 = vmatpush.msra.mxu0 %v1363
        %1500 = vmatmul.f32.gmra.mxu0 %v1358
        %v1501 = vpop.f32.mrf.mxu0
        %v1502 = vadd.f32 0.0, %v1501
        %1503 = vdwg.mxu0
        %v1504 = vmax.f32 %v1442, 0.0
        %v1505 = vmax.f32 %v1462, 0.0
        %v1506 = vmax.f32 %v1482, 0.0
        %v1507 = vmax.f32 %v1502, 0.0
        %v1508 = vmul.f32 %v1504, %v1504
        %v1509 = vmul.f32 %v1505, %v1505
        %v1510 = vmul.f32 %v1506, %v1506
        %v1511 = vmul.f32 %v1507, %v1507
        %v1512 = vld [vmem:[#allocation18] sm:$0xff]
        %v1513 = vld [vmem:[#allocation18 + $0x8] sm:$0xff]
        %v1514 = vld [vmem:[#allocation18 + $0x10] sm:$0xff]
        %v1515 = vld [vmem:[#allocation18 + $0x18] sm:$0xff]
        %v1516 = vld [vmem:[#allocation18 + $0x20] sm:$0xff]
        %v1517 = vld [vmem:[#allocation18 + $0x28] sm:$0xff]
        %v1518 = vld [vmem:[#allocation18 + $0x30] sm:$0xff]
        %v1519 = vld [vmem:[#allocation18 + $0x38] sm:$0xff]
        %v1520 = vld [vmem:[#allocation18 + $0x40] sm:$0xff]
        %v1521 = vld [vmem:[#allocation18 + $0x48] sm:$0xff]
        %v1522 = vld [vmem:[#allocation18 + $0x50] sm:$0xff]
        %v1523 = vld [vmem:[#allocation18 + $0x58] sm:$0xff]
        %v1524 = vld [vmem:[#allocation18 + $0x60] sm:$0xff]
        %v1525 = vld [vmem:[#allocation18 + $0x68] sm:$0xff]
        %v1526 = vld [vmem:[#allocation18 + $0x70] sm:$0xff]
        %v1527 = vld [vmem:[#allocation18 + $0x78] sm:$0xff]
        %v1528 = vld [vmem:[#allocation18 + $0x80] sm:$0xff]
        %v1529 = vld [vmem:[#allocation18 + $0x88] sm:$0xff]
        %v1530 = vld [vmem:[#allocation18 + $0x90] sm:$0xff]
        %v1531 = vld [vmem:[#allocation18 + $0x98] sm:$0xff]
        %v1532 = vld [vmem:[#allocation18 + $0xa0] sm:$0xff]
        %v1533 = vld [vmem:[#allocation18 + $0xa8] sm:$0xff]
        %v1534 = vld [vmem:[#allocation18 + $0xb0] sm:$0xff]
        %v1535 = vld [vmem:[#allocation18 + $0xb8] sm:$0xff]
        %v1536 = vld [vmem:[#allocation18 + $0xc0] sm:$0xff]
        %v1537 = vld [vmem:[#allocation18 + $0xc8] sm:$0xff]
        %v1538 = vld [vmem:[#allocation18 + $0xd0] sm:$0xff]
        %v1539 = vld [vmem:[#allocation18 + $0xd8] sm:$0xff]
        %v1540 = vld [vmem:[#allocation18 + $0xe0] sm:$0xff]
        %v1541 = vld [vmem:[#allocation18 + $0xe8] sm:$0xff]
        %v1542 = vld [vmem:[#allocation18 + $0xf0] sm:$0xff]
        %v1543 = vld [vmem:[#allocation18 + $0xf8] sm:$0xff]
        %v1544 = vld [vmem:[#allocation18 + $0x100] sm:$0xff]
        %v1545 = vld [vmem:[#allocation18 + $0x108] sm:$0xff]
        %v1546 = vld [vmem:[#allocation18 + $0x110] sm:$0xff]
        %v1547 = vld [vmem:[#allocation18 + $0x118] sm:$0xff]
        %v1548 = vld [vmem:[#allocation18 + $0x120] sm:$0xff]
        %v1549 = vld [vmem:[#allocation18 + $0x128] sm:$0xff]
        %v1550 = vld [vmem:[#allocation18 + $0x130] sm:$0xff]
        %v1551 = vld [vmem:[#allocation18 + $0x138] sm:$0xff]
        %v1552 = vld [vmem:[#allocation18 + $0x140] sm:$0xff]
        %v1553 = vld [vmem:[#allocation18 + $0x148] sm:$0xff]
        %v1554 = vld [vmem:[#allocation18 + $0x150] sm:$0xff]
        %v1555 = vld [vmem:[#allocation18 + $0x158] sm:$0xff]
        %v1556 = vld [vmem:[#allocation18 + $0x160] sm:$0xff]
        %v1557 = vld [vmem:[#allocation18 + $0x168] sm:$0xff]
        %v1558 = vld [vmem:[#allocation18 + $0x170] sm:$0xff]
        %v1559 = vld [vmem:[#allocation18 + $0x178] sm:$0xff]
        %v1560 = vld [vmem:[#allocation18 + $0x180] sm:$0xff]
        %v1561 = vld [vmem:[#allocation18 + $0x188] sm:$0xff]
        %v1562 = vld [vmem:[#allocation18 + $0x190] sm:$0xff]
        %v1563 = vld [vmem:[#allocation18 + $0x198] sm:$0xff]
        %v1564 = vld [vmem:[#allocation18 + $0x1a0] sm:$0xff]
        %v1565 = vld [vmem:[#allocation18 + $0x1a8] sm:$0xff]
        %v1566 = vld [vmem:[#allocation18 + $0x1b0] sm:$0xff]
        %v1567 = vld [vmem:[#allocation18 + $0x1b8] sm:$0xff]
        %v1568 = vld [vmem:[#allocation18 + $0x1c0] sm:$0xff]
        %v1569 = vld [vmem:[#allocation18 + $0x1c8] sm:$0xff]
        %v1570 = vld [vmem:[#allocation18 + $0x1d0] sm:$0xff]
        %v1571 = vld [vmem:[#allocation18 + $0x1d8] sm:$0xff]
        %v1572 = vld [vmem:[#allocation18 + $0x1e0] sm:$0xff]
        %v1573 = vld [vmem:[#allocation18 + $0x1e8] sm:$0xff]
        %v1574 = vld [vmem:[#allocation18 + $0x1f0] sm:$0xff]
        %v1575 = vld [vmem:[#allocation18 + $0x1f8] sm:$0xff]
        %1576 = vmatpush.msra.mxu0 %v1527
        %1577 = vmatpush.msra.mxu0 %v1526
        %1578 = vmatpush.msra.mxu0 %v1525
        %1579 = vmatpush.msra.mxu0 %v1524
        %1580 = vmatpush.msra.mxu0 %v1523
        %1581 = vmatpush.msra.mxu0 %v1522
        %1582 = vmatpush.msra.mxu0 %v1521
        %1583 = vmatpush.msra.mxu0 %v1520
        %1584 = vmatpush.msra.mxu0 %v1519
        %1585 = vmatpush.msra.mxu0 %v1518
        %1586 = vmatpush.msra.mxu0 %v1517
        %1587 = vmatpush.msra.mxu0 %v1516
        %1588 = vmatpush.msra.mxu0 %v1515
        %1589 = vmatpush.msra.mxu0 %v1514
        %1590 = vmatpush.msra.mxu0 %v1513
        %1591 = vmatpush.msra.mxu0 %v1512
        %1592 = vmatmul.f32.gmra.mxu0 %v1508
        %v1593 = vpop.f32.mrf.mxu0
        %v1594 = vadd.f32 0.0, %v1593
        %1595 = vdwg.mxu0
        %1596 = vmatpush.msra.mxu0 %v1543
        %1597 = vmatpush.msra.mxu0 %v1542
        %1598 = vmatpush.msra.mxu0 %v1541
        %1599 = vmatpush.msra.mxu0 %v1540
        %1600 = vmatpush.msra.mxu0 %v1539
        %1601 = vmatpush.msra.mxu0 %v1538
        %1602 = vmatpush.msra.mxu0 %v1537
        %1603 = vmatpush.msra.mxu0 %v1536
        %1604 = vmatpush.msra.mxu0 %v1535
        %1605 = vmatpush.msra.mxu0 %v1534
        %1606 = vmatpush.msra.mxu0 %v1533
        %1607 = vmatpush.msra.mxu0 %v1532
        %1608 = vmatpush.msra.mxu0 %v1531
        %1609 = vmatpush.msra.mxu0 %v1530
        %1610 = vmatpush.msra.mxu0 %v1529
        %1611 = vmatpush.msra.mxu0 %v1528
        %1612 = vmatmul.f32.gmra.mxu0 %v1509
        %v1613 = vpop.f32.mrf.mxu0
        %v1614 = vadd.f32 %v1594, %v1613
        %1615 = vdwg.mxu0
        %1616 = vmatpush.msra.mxu0 %v1559
        %1617 = vmatpush.msra.mxu0 %v1558
        %1618 = vmatpush.msra.mxu0 %v1557
        %1619 = vmatpush.msra.mxu0 %v1556
        %1620 = vmatpush.msra.mxu0 %v1555
        %1621 = vmatpush.msra.mxu0 %v1554
        %1622 = vmatpush.msra.mxu0 %v1553
        %1623 = vmatpush.msra.mxu0 %v1552
        %1624 = vmatpush.msra.mxu0 %v1551
        %1625 = vmatpush.msra.mxu0 %v1550
        %1626 = vmatpush.msra.mxu0 %v1549
        %1627 = vmatpush.msra.mxu0 %v1548
        %1628 = vmatpush.msra.mxu0 %v1547
        %1629 = vmatpush.msra.mxu0 %v1546
        %1630 = vmatpush.msra.mxu0 %v1545
        %1631 = vmatpush.msra.mxu0 %v1544
        %1632 = vmatmul.f32.gmra.mxu0 %v1510
        %v1633 = vpop.f32.mrf.mxu0
        %v1634 = vadd.f32 %v1614, %v1633
        %1635 = vdwg.mxu0
        %1636 = vmatpush.msra.mxu0 %v1575
        %1637 = vmatpush.msra.mxu0 %v1574
        %1638 = vmatpush.msra.mxu0 %v1573
        %1639 = vmatpush.msra.mxu0 %v1572
        %1640 = vmatpush.msra.mxu0 %v1571
        %1641 = vmatpush.msra.mxu0 %v1570
        %1642 = vmatpush.msra.mxu0 %v1569
        %1643 = vmatpush.msra.mxu0 %v1568
        %1644 = vmatpush.msra.mxu0 %v1567
        %1645 = vmatpush.msra.mxu0 %v1566
        %1646 = vmatpush.msra.mxu0 %v1565
        %1647 = vmatpush.msra.mxu0 %v1564
        %1648 = vmatpush.msra.mxu0 %v1563
        %1649 = vmatpush.msra.mxu0 %v1562
        %1650 = vmatpush.msra.mxu0 %v1561
        %1651 = vmatpush.msra.mxu0 %v1560
        %1652 = vmatmul.f32.gmra.mxu0 %v1511
        %v1653 = vpop.f32.mrf.mxu0
        %v1654 = vadd.f32 %v1634, %v1653
        %1655 = vdwg.mxu0
        %v1656 = vld [vmem:[#allocation20] sm:$0xff]
        %v1657 = vld [vmem:[#allocation20 + $0x8] sm:$0xff]
        %v1658 = vld [vmem:[#allocation20 + $0x10] sm:$0xff]
        %v1659 = vld [vmem:[#allocation20 + $0x18] sm:$0xff]
        %v1660 = vld [vmem:[#allocation20 + $0x20] sm:$0xff]
        %v1661 = vld [vmem:[#allocation20 + $0x28] sm:$0xff]
        %v1662 = vld [vmem:[#allocation20 + $0x30] sm:$0xff]
        %v1663 = vld [vmem:[#allocation20 + $0x38] sm:$0xff]
        %v1664 = vld [vmem:[#allocation20 + $0x40] sm:$0xff]
        %v1665 = vld [vmem:[#allocation20 + $0x48] sm:$0xff]
        %v1666 = vld [vmem:[#allocation20 + $0x50] sm:$0xff]
        %v1667 = vld [vmem:[#allocation20 + $0x58] sm:$0xff]
        %v1668 = vld [vmem:[#allocation20 + $0x60] sm:$0xff]
        %v1669 = vld [vmem:[#allocation20 + $0x68] sm:$0xff]
        %v1670 = vld [vmem:[#allocation20 + $0x70] sm:$0xff]
        %v1671 = vld [vmem:[#allocation20 + $0x78] sm:$0xff]
        %1672 = vmatpush.msra.mxu0 %v1671
        %1673 = vmatpush.msra.mxu0 %v1670
        %1674 = vmatpush.msra.mxu0 %v1669
        %1675 = vmatpush.msra.mxu0 %v1668
        %1676 = vmatpush.msra.mxu0 %v1667
        %1677 = vmatpush.msra.mxu0 %v1666
        %1678 = vmatpush.msra.mxu0 %v1665
        %1679 = vmatpush.msra.mxu0 %v1664
        %1680 = vmatpush.msra.mxu0 %v1663
        %1681 = vmatpush.msra.mxu0 %v1662
        %1682 = vmatpush.msra.mxu0 %v1661
        %1683 = vmatpush.msra.mxu0 %v1660
        %1684 = vmatpush.msra.mxu0 %v1659
        %1685 = vmatpush.msra.mxu0 %v1658
        %1686 = vmatpush.msra.mxu0 %v1657
        %1687 = vmatpush.msra.mxu0 %v1656
        %1688 = vmatmul.f32.gmra.mxu0 %v1359
        %v1689 = vpop.f32.mrf.mxu0
        %v1690 = vadd.f32 0.0, %v1689
        %1691 = vdwg.mxu0
        %v1692 = vxor.u32 %v1690, 2147483648
        %v1693 = vmul.f32 %v1692, 1.442695
        %v1694 = vpow.pop %v1693
        %v1695 = vadd.f32 %v1694, 1.0
        %v1696 = vrcp.pop %v1695
        %v1697 = vmul.f32 %v1695, %v1696
        %v1698 = vsub.f32 1.0, %v1697
        %v1699 = vmul.f32 %v1696, %v1698
        %v1700 = vadd.f32 %v1696, %v1699
        %vm1701 = vweird.f32 %v1695
        %vm1702 = vweird.f32 %v1696
        %vm1703 = vmor %vm1701, %vm1702
        %v1704 = vsel %vm1703, %v1696, %v1700
        %v1705 = vand.u32 2147483647, %v1695
        %vm1706 = vcmp.eq.f32.partialorder %v1705, 8.507059e+37
        %v1707 = vand.u32 %v1695, 2147483648
        %v1708 = vor.u32 1.1754944e-38, %v1707
        %v1709 = vsel %vm1706, %v1708, %v1704
        %v1710 = vmul.f32 1.0, %v1709
        %v1711 = vmul.f32 %v1710, %v1654
        %1712 = vst [vmem:[#allocation3] sm:$0xff] %v1711
        %v1713 = vld [vmem:[#allocation3] sm:$0xff]
        %v1714 = vmul.f32 %v1713, 0.5
        %v1715 = vadd.f32 %v1714, 0.0
        %vm1716 = vcmp.ge.f32.partialorder %v1715, 1.0
        %v1717 = vsel %vm1716, 1, 0
        %v1718 = vcvt.s32.f32 %v1717
        %v1719 = vsub.f32 1.0, %v1718
        %v1720 = vmul.f32 %v1719, %v1715
        %v1722 = vrot.slane %v1720, 7
        %v1724 = vsub.f32 %v1713, %v1722
        %v1725 = vmul.f32 %v1724, 0.5
        %v1727 = vrot.slane %v1725, 1
        %v1729 = vadd.f32 %v1720, %v1727
        %vm1730 = vcmp.ge.f32.partialorder %v1729, 1.0
        %v1731 = vsel %vm1730, 1, 0
        %v1732 = vcvt.s32.f32 %v1731
        %v1733 = vsub.f32 1.0, %v1732
        %v1734 = vmul.f32 %v1733, %v1729
        %v1736 = vrot.slane %v1734, 6
        %v1738 = vsub.f32 %v1713, %v1736
        %v1739 = vmul.f32 %v1738, 0.5
        %v1741 = vrot.slane %v1739, 2
        %v1743 = vadd.f32 %v1734, %v1741
        %vm1744 = vcmp.ge.f32.partialorder %v1743, 1.0
        %v1745 = vsel %vm1744, 1, 0
        %v1746 = vcvt.s32.f32 %v1745
        %v1747 = vsub.f32 1.0, %v1746
        %v1748 = vmul.f32 %v1747, %v1743
        %v1750 = vrot.slane %v1748, 5
        %v1752 = vsub.f32 %v1713, %v1750
        %v1753 = vmul.f32 %v1752, 0.5
        %v1755 = vrot.slane %v1753, 3
        %v1757 = vadd.f32 %v1748, %v1755
        %vm1758 = vcmp.ge.f32.partialorder %v1757, 1.0
        %v1759 = vsel %vm1758, 1, 0
        %v1760 = vcvt.s32.f32 %v1759
        %v1761 = vsub.f32 1.0, %v1760
        %v1762 = vmul.f32 %v1761, %v1757
        %v1764 = vrot.slane %v1762, 4
        %v1766 = vsub.f32 %v1713, %v1764
        %v1767 = vmul.f32 %v1766, 0.5
        %v1769 = vrot.slane %v1767, 4
        %v1771 = vadd.f32 %v1762, %v1769
        %vm1772 = vcmp.ge.f32.partialorder %v1771, 1.0
        %v1773 = vsel %vm1772, 1, 0
        %v1774 = vcvt.s32.f32 %v1773
        %v1775 = vsub.f32 1.0, %v1774
        %v1776 = vmul.f32 %v1775, %v1771
        %v1778 = vrot.slane %v1776, 3
        %v1780 = vsub.f32 %v1713, %v1778
        %v1781 = vmul.f32 %v1780, 0.5
        %v1783 = vrot.slane %v1781, 5
        %v1785 = vadd.f32 %v1776, %v1783
        %vm1786 = vcmp.ge.f32.partialorder %v1785, 1.0
        %v1787 = vsel %vm1786, 1, 0
        %v1788 = vcvt.s32.f32 %v1787
        %v1789 = vsub.f32 1.0, %v1788
        %v1790 = vmul.f32 %v1789, %v1785
        %v1792 = vrot.slane %v1790, 2
        %v1794 = vsub.f32 %v1713, %v1792
        %v1795 = vmul.f32 %v1794, 0.5
        %v1797 = vrot.slane %v1795, 6
        %v1799 = vadd.f32 %v1790, %v1797
        %vm1800 = vcmp.ge.f32.partialorder %v1799, 1.0
        %v1801 = vsel %vm1800, 1, 0
        %v1802 = vcvt.s32.f32 %v1801
        %v1803 = vsub.f32 1.0, %v1802
        %v1804 = vmul.f32 %v1803, %v1799
        %v1806 = vrot.slane %v1804, 1
        %v1808 = vsub.f32 %v1713, %v1806
        %v1809 = vmul.f32 %v1808, 0.5
        %v1811 = vrot.slane %v1809, 7
        %v1813 = vadd.f32 %v1804, %v1811
        %vm1814 = vcmp.ge.f32.partialorder %v1813, 1.0
        %v1815 = vsel %vm1814, 1, 0
        %v1816 = vcvt.s32.f32 %v1815
        %v1818 = vrot.slane %v1732, 7
        %v1821 = vrot.slane %v1746, 6
        %v1824 = vrot.slane %v1760, 5
        %v1827 = vrot.slane %v1774, 4
        %v1830 = vrot.slane %v1788, 3
        %v1833 = vrot.slane %v1802, 2
        %v1836 = vrot.slane %v1816, 1
        %v1838 = vsel %vm1121, %v1718, %v1818
        %v1839 = vsel %vm1123, %v1838, %v1821
        %v1840 = vsel %vm1125, %v1839, %v1824
        %v1841 = vsel %vm1127, %v1840, %v1827
        %v1842 = vsel %vm1129, %v1841, %v1830
        %v1843 = vsel %vm1131, %v1842, %v1833
        %v1844 = vsel %vm1133, %v1843, %v1836
        %1845 = vst [vmem:[#allocation3] sm:$0xff] %v1844
        %v1846 = vld [vmem:[#allocation2] sm:$0xff]
        %v1847 = vld [vmem:[#allocation3] sm:$0xff]
        %v1848 = vadd.f32 %v1846, %v1847
        %1849 = vst [vmem:[%s481] sm:$0xff] %v1848
        %s1850 = sand.u32 %s232, 1
        %s1851 = scalar_lea.sflag [#allocation8], %s1850
        %s1852 = sand.u32 %s232, 1
        %s1853 = smul.addr %s1852, 8
        %s1854 = scalar_lea.vmem [#allocation21], %s1853
        // Predicated region
        $region93: #{tpu_custom_call.1} parent=55 // pred_check
          %p1855 = pneg %p242
        $region94: #{tpu_custom_call.1} parent=55 // pred_check_branch
          %1857 = sbr.rel (%p1855) target = $region96
        $region95: #{tpu_custom_call.1} parent=55 // pred_region
          %1859 = vsyncadd %s1851, 0
          %s1860 = smul.addr %s30, 8
          %s1861 = scalar_lea.hbm %s9, %s1860
          %s1863 = sshll.u32 %s1854, 4
          %s1864 = int_to_ptr.vmem [resolvable:$true] %s1863
          %s1865 = sshll.u32 %s1861, 4
          %s1866 = int_to_ptr.hbm [resolvable:$true] %s1865
          %1868 = dma.vmem_to_hbm [thread:$0]  %s1864, 128, %s1866, %s1851
        $region96: #{tpu_custom_call.1} parent=55 // pred_fallthru
          _
      $region56: #{tpu_custom_call.1} parent=5 // pred_fallthru
        _
      %p1869 = scmp.le.s32.totalorder 2, %s25
      // Predicated region
      $region97: #{tpu_custom_call.1} parent=5 // pred_check
        %p1870 = pneg %p1869
      $region98: #{tpu_custom_call.1} parent=5 // pred_check_branch
        %1872 = sbr.rel (%p1870) target = $region100
      $region99: #{tpu_custom_call.1} parent=5 // pred_region
        %s1873 = ssub.s32 %s25, 2
        // Predicated region
        $region101: #{tpu_custom_call.1} parent=99 // pred_check
          %p1874 = pneg %p248
        $region102: #{tpu_custom_call.1} parent=99 // pred_check_branch
          %1876 = sbr.rel (%p1874) target = $region104
        $region103: #{tpu_custom_call.1} parent=99 // pred_region
          %s1877 = sand.u32 %s233, 1
          %s1878 = scalar_lea.sflag [#allocation8], %s1877
          %s1879 = sand.u32 %s233, 1
          %s1880 = smul.addr %s1879, 8
          %s1881 = scalar_lea.vmem [#allocation21], %s1880
          %1883 = dma.done %s1878, 128
        $region104: #{tpu_custom_call.1} parent=99 // pred_fallthru
          _
      $region100: #{tpu_custom_call.1} parent=5 // pred_fallthru
        _
    $region6: #{tpu_custom_call.1} parent=1 // loop_footer
      %s29 = sadd.s32 1, %s25
    $region7: #{tpu_custom_call.1} parent=1 // loop_footer_branch
      %24 = sbr.rel target = $region3
    $region8: #{tpu_custom_call.1} parent=1 // loop_exit
      _
    %1884 = vsyncpa [#allocation7], 1
    %s1885 = scalar_lea.sflag [#allocation7], 1
    %1886 = vsyncpa %s1885, 1
    %1887 = vsyncpa [#allocation10], 1
    %1888 = vsyncpa [#allocation13], 1
    %1889 = vsyncpa [#allocation16], 1
    %1890 = vsyncpa [#allocation19], 1
    %1891 = vsyncpa [#allocation8], 1
    %s1892 = scalar_lea.sflag [#allocation8], 1
    %1893 = vsyncpa %s1892, 1

// kernel: tpu_custom_call.1
$region0: #{tpu_custom_call.1}
  #allocation0 [shape = 'u32[]', space=smem, size = 0x4, offset = 0x4, fixed_abs, tag = 'smem constant byte address 0x4 - core index']
  #allocation1 [shape = 'u32[72,128]{1,0:T(1,128)}', space=vmem, size = 0x9000, scoped, tag = 'internal scratch']
  #allocation2 [shape = 'f32[8,128]{1,0:T(8,128)}', space=vmem, size = 0x1000, scoped, tag = 'scratch operand']
  #allocation3 [shape = 'f32[8,128]{1,0:T(8,128)}', space=vmem, size = 0x1000, scoped, tag = 'scratch operand']
  #allocation4 [shape = 'f32[8,128]{1,0:T(8,128)}', space=vmem, size = 0x1000, scoped, tag = 'scratch operand']
  #allocation5 [shape = 'f32[8,128]{1,0:T(8,128)}', space=vmem, size = 0x1000, scoped, tag = 'scratch operand']
  %s0 = inlined_call_operand.hbm [shape: f32[2,8,128], index: 0, kind: input, shape index: {}]
  %s1 = inlined_call_operand.hbm [shape: f32[16,128], index: 1, kind: input, shape index: {}]
  %s2 = inlined_call_operand.hbm [shape: f32[128,128], index: 2, kind: input, shape index: {}]
  %s3 = inlined_call_operand.hbm [shape: f32[128,128], index: 3, kind: input, shape index: {}]
  %s4 = inlined_call_operand.hbm [shape: f32[128,128], index: 4, kind: input, shape index: {}]
  %s5 = inlined_call_operand.hbm [shape: f32[128,128], index: 5, kind: input, shape index: {}]
  %s6 = inlined_call_operand.hbm [shape: f32[128,512], index: 6, kind: input, shape index: {}]
  %s7 = inlined_call_operand.hbm [shape: f32[512,128], index: 7, kind: input, shape index: {}]
  %s8 = inlined_call_operand.hbm [shape: f32[128,128], index: 8, kind: input, shape index: {}]
  %s9 = inlined_call_operand.hbm [shape: f32[2,8,128], index: 9, kind: output, shape index: {}]
  %s10 = sld [smem:[#allocation0]]
  $region105: #{tpu_custom_call.1} parent=0
    _
  %s12 = ssub.s32 1, %s10
  %s13 = scalar_select 0, %s12, %s10
  $region1: #{tpu_custom_call.1} parent=0
    #allocation6 [shape = 'u8[8192]{0}', space=vmem, size = 0x2000, scoped, tag = 'input window, operand 0']
    #allocation7 [shape = 's32[2]{0}', space=sflag, size = 0x8, scoped, tag = 'scoped memory for tpu_custom_call.1']
    #allocation8 [shape = 's32[2]{0}', space=sflag, size = 0x8, scoped, tag = 'scoped memory for tpu_custom_call.1']
    #allocation9 [shape = 'u8[8192]{0}', space=vmem, size = 0x2000, scoped, tag = 'input window, operand 1, single buffered']
    #allocation10 [shape = 's32[1]{0}', space=sflag, size = 0x4, scoped, tag = 'scoped memory for tpu_custom_call.1']
    #allocation11 [shape = 'u8[65536]{0}', space=vmem, size = 0x10000, scoped, tag = 'input window, operand 2, single buffered']
    #allocation12 [shape = 'u8[65536]{0}', space=vmem, size = 0x10000, scoped, tag = 'input window, operand 3, single buffered']
    #allocation13 [shape = 's32[1]{0}', space=sflag, size = 0x4, scoped, tag = 'scoped memory for tpu_custom_call.1']
    #allocation14 [shape = 'u8[65536]{0}', space=vmem, size = 0x10000, scoped, tag = 'input window, operand 4, single buffered']
    #allocation15 [shape = 'u8[65536]{0}', space=vmem, size = 0x10000, scoped, tag = 'input window, operand 5, single buffered']
    #allocation16 [shape = 's32[1]{0}', space=sflag, size = 0x4, scoped, tag = 'scoped memory for tpu_custom_call.1']
    #allocation17 [shape = 'u8[262144]{0}', space=vmem, size = 0x40000, scoped, tag = 'input window, operand 6, single buffered']
    #allocation18 [shape = 'u8[262144]{0}', space=vmem, size = 0x40000, scoped, tag = 'input window, operand 7, single buffered']
    #allocation19 [shape = 's32[1]{0}', space=sflag, size = 0x4, scoped, tag = 'scoped memory for tpu_custom_call.1']
    #allocation20 [shape = 'u8[65536]{0}', space=vmem, size = 0x10000, scoped, tag = 'input window, operand 8, single buffered']
    #allocation21 [shape = 'u8[8192]{0}', space=vmem, size = 0x2000, scoped, tag = 'output window, operand 0']
    %14 = vsyncpa [#allocation7], 0
    %s15 = scalar_lea.sflag [#allocation7], 1
    %16 = vsyncpa %s15, 0
    %17 = vsyncpa [#allocation10], 0
    %18 = vsyncpa [#allocation13], 0
    %19 = vsyncpa [#allocation16], 0
    %20 = vsyncpa [#allocation19], 0
    %21 = vsyncpa [#allocation8], 0
    %s22 = scalar_lea.sflag [#allocation8], 1
    %23 = vsyncpa %s22, 0
    loop: start=0, step=1, limit=4
    $region2: #{tpu_custom_call.1} parent=1 // loop_pre_header
      _
    $region3: #{tpu_custom_call.1} parent=1 // loop_header
      %s25 = sphi 0, %s29
      %p26 = scmp.ge.s32.totalorder %s25, 4
      %s35 = sphi 0, %s37
      %s38 = sphi 0, %s35
      %s39 = sphi 0, %s38
      %s55 = sphi 0, %s39
      %s59 = sphi 0, %s59
      %s61 = sphi 0, %s59
      %s62 = sphi 0, %s61
      %s76 = sphi 0, %s62
      %s80 = sphi 0, %s80
      %s82 = sphi 0, %s80
      %s83 = sphi 0, %s82
      %s97 = sphi 0, %s83
      %s101 = sphi 0, %s101
      %s103 = sphi 0, %s101
      %s104 = sphi 0, %s103
      %s118 = sphi 0, %s104
      %s122 = sphi 0, %s122
      %s124 = sphi 0, %s122
      %s125 = sphi 0, %s124
      %s139 = sphi 0, %s125
      %s143 = sphi 0, %s143
      %s145 = sphi 0, %s143
      %s146 = sphi 0, %s145
      %s160 = sphi 0, %s146
      %s164 = sphi 0, %s164
      %s166 = sphi 0, %s164
      %s167 = sphi 0, %s166
      %s181 = sphi 0, %s167
      %s185 = sphi 0, %s185
      %s187 = sphi 0, %s185
      %s188 = sphi 0, %s187
      %s202 = sphi 0, %s188
      %s206 = sphi 0, %s206
      %s208 = sphi 0, %s206
      %s209 = sphi 0, %s208
      %s223 = sphi 0, %s209
      %s229 = sphi 0, %s231
      %s232 = sphi 0, %s229
      %s233 = sphi 0, %s232
      %s249 = sphi 0, %s233
    $region4: #{tpu_custom_call.1} parent=1 // loop_header_branch
      %28 = sbr.rel (%p26) target = $region8
    $region5: #{tpu_custom_call.1} parent=1 // loop_body
      %s30 = ssub.s32 %s25, 1
      %s31 = ssub.s32 %s25, 2
      %s32 = sadd.s32 %s25, 1
      %s33 = ssub.s32 %s25, %s32
      %p34 = scmp.eq.s32.totalorder %s33, 0
      %s36 = sadd.s32 %s35, 1
      %s37 = scalar_select %p34, %s35, %s36
      %p40 = pneg %p34
      %p41 = scmp.eq.s32.totalorder %s25, 1
      %p42 = por %p40, %p41
      %p43 = scmp.ne.s32.totalorder %s35, %s38
      %p44 = scmp.eq.s32.totalorder %s25, 0
      %p45 = por %p43, %p44
      %p46 = scmp.ne.s32.totalorder %s35, %s38
      %p47 = scmp.eq.s32.totalorder %s30, 1
      %p48 = por %p46, %p47
      %p49 = scmp.ne.s32.totalorder %s38, %s39
      %p50 = scmp.eq.s32.totalorder %s30, 0
      %p51 = por %p49, %p50
      %p52 = scmp.ne.s32.totalorder %s38, %s39
      %p53 = scmp.eq.s32.totalorder %s31, 1
      %p54 = por %p52, %p53
      %p56 = scmp.ne.s32.totalorder %s39, %s55
      %p57 = scmp.eq.s32.totalorder %s31, 0
      %p58 = por %p56, %p57
      %s60 = sadd.s32 %s59, 1
      %p63 = scmp.eq.s32.totalorder %s25, 1
      %p64 = scmp.ne.s32.totalorder %s59, %s61
      %p65 = scmp.eq.s32.totalorder %s25, 0
      %p66 = por %p64, %p65
      %p67 = scmp.ne.s32.totalorder %s59, %s61
      %p68 = scmp.eq.s32.totalorder %s30, 1
      %p69 = por %p67, %p68
      %p70 = scmp.ne.s32.totalorder %s61, %s62
      %p71 = scmp.eq.s32.totalorder %s30, 0
      %p72 = por %p70, %p71
      %p73 = scmp.ne.s32.totalorder %s61, %s62
      %p74 = scmp.eq.s32.totalorder %s31, 1
      %p75 = por %p73, %p74
      %p77 = scmp.ne.s32.totalorder %s62, %s76
      %p78 = scmp.eq.s32.totalorder %s31, 0
      %p79 = por %p77, %p78
      %s81 = sadd.s32 %s80, 1
      %p84 = scmp.eq.s32.totalorder %s25, 1
      %p85 = scmp.ne.s32.totalorder %s80, %s82
      %p86 = scmp.eq.s32.totalorder %s25, 0
      %p87 = por %p85, %p86
      %p88 = scmp.ne.s32.totalorder %s80, %s82
      %p89 = scmp.eq.s32.totalorder %s30, 1
      %p90 = por %p88, %p89
      %p91 = scmp.ne.s32.totalorder %s82, %s83
      %p92 = scmp.eq.s32.totalorder %s30, 0
      %p93 = por %p91, %p92
      %p94 = scmp.ne.s32.totalorder %s82, %s83
      %p95 = scmp.eq.s32.totalorder %s31, 1
      %p96 = por %p94, %p95
      %p98 = scmp.ne.s32.totalorder %s83, %s97
      %p99 = scmp.eq.s32.totalorder %s31, 0
      %p100 = por %p98, %p99
      %s102 = sadd.s32 %s101, 1
      %p105 = scmp.eq.s32.totalorder %s25, 1
      %p106 = scmp.ne.s32.totalorder %s101, %s103
      %p107 = scmp.eq.s32.totalorder %s25, 0
      %p108 = por %p106, %p107
      %p109 = scmp.ne.s32.totalorder %s101, %s103
      %p110 = scmp.eq.s32.totalorder %s30, 1
      %p111 = por %p109, %p110
      %p112 = scmp.ne.s32.totalorder %s103, %s104
      %p113 = scmp.eq.s32.totalorder %s30, 0
      %p114 = por %p112, %p113
      %p115 = scmp.ne.s32.totalorder %s103, %s104
      %p116 = scmp.eq.s32.totalorder %s31, 1
      %p117 = por %p115, %p116
      %p119 = scmp.ne.s32.totalorder %s104, %s118
      %p120 = scmp.eq.s32.totalorder %s31, 0
      %p121 = por %p119, %p120
      %s123 = sadd.s32 %s122, 1
      %p126 = scmp.eq.s32.totalorder %s25, 1
      %p127 = scmp.ne.s32.totalorder %s122, %s124
      %p128 = scmp.eq.s32.totalorder %s25, 0
      %p129 = por %p127, %p128
      %p130 = scmp.ne.s32.totalorder %s122, %s124
      %p131 = scmp.eq.s32.totalorder %s30, 1
      %p132 = por %p130, %p131
      %p133 = scmp.ne.s32.totalorder %s124, %s125
      %p134 = scmp.eq.s32.totalorder %s30, 0
      %p135 = por %p133, %p134
      %p136 = scmp.ne.s32.totalorder %s124, %s125
      %p137 = scmp.eq.s32.totalorder %s31, 1
      %p138 = por %p136, %p137
      %p140 = scmp.ne.s32.totalorder %s125, %s139
      %p141 = scmp.eq.s32.totalorder %s31, 0
      %p142 = por %p140, %p141
      %s144 = sadd.s32 %s143, 1
      %p147 = scmp.eq.s32.totalorder %s25, 1
      %p148 = scmp.ne.s32.totalorder %s143, %s145
      %p149 = scmp.eq.s32.totalorder %s25, 0
      %p150 = por %p148, %p149
      %p151 = scmp.ne.s32.totalorder %s143, %s145
      %p152 = scmp.eq.s32.totalorder %s30, 1
      %p153 = por %p151, %p152
      %p154 = scmp.ne.s32.totalorder %s145, %s146
      %p155 = scmp.eq.s32.totalorder %s30, 0
      %p156 = por %p154, %p155
      %p157 = scmp.ne.s32.totalorder %s145, %s146
      %p158 = scmp.eq.s32.totalorder %s31, 1
      %p159 = por %p157, %p158
      %p161 = scmp.ne.s32.totalorder %s146, %s160
      %p162 = scmp.eq.s32.totalorder %s31, 0
      %p163 = por %p161, %p162
      %s165 = sadd.s32 %s164, 1
      %p168 = scmp.eq.s32.totalorder %s25, 1
      %p169 = scmp.ne.s32.totalorder %s164, %s166
      %p170 = scmp.eq.s32.totalorder %s25, 0
      %p171 = por %p169, %p170
      %p172 = scmp.ne.s32.totalorder %s164, %s166
      %p173 = scmp.eq.s32.totalorder %s30, 1
      %p174 = por %p172, %p173
      %p175 = scmp.ne.s32.totalorder %s166, %s167
      %p176 = scmp.eq.s32.totalorder %s30, 0
      %p177 = por %p175, %p176
      %p178 = scmp.ne.s32.totalorder %s166, %s167
      %p179 = scmp.eq.s32.totalorder %s31, 1
      %p180 = por %p178, %p179
      %p182 = scmp.ne.s32.totalorder %s167, %s181
      %p183 = scmp.eq.s32.totalorder %s31, 0
      %p184 = por %p182, %p183
      %s186 = sadd.s32 %s185, 1
      %p189 = scmp.eq.s32.totalorder %s25, 1
      %p190 = scmp.ne.s32.totalorder %s185, %s187
      %p191 = scmp.eq.s32.totalorder %s25, 0
      %p192 = por %p190, %p191
      %p193 = scmp.ne.s32.totalorder %s185, %s187
      %p194 = scmp.eq.s32.totalorder %s30, 1
      %p195 = por %p193, %p194
      %p196 = scmp.ne.s32.totalorder %s187, %s188
      %p197 = scmp.eq.s32.totalorder %s30, 0
      %p198 = por %p196, %p197
      %p199 = scmp.ne.s32.totalorder %s187, %s188
      %p200 = scmp.eq.s32.totalorder %s31, 1
      %p201 = por %p199, %p200
      %p203 = scmp.ne.s32.totalorder %s188, %s202
      %p204 = scmp.eq.s32.totalorder %s31, 0
      %p205 = por %p203, %p204
      %s207 = sadd.s32 %s206, 1
      %p210 = scmp.eq.s32.totalorder %s25, 1
      %p211 = scmp.ne.s32.totalorder %s206, %s208
      %p212 = scmp.eq.s32.totalorder %s25, 0
      %p213 = por %p211, %p212
      %p214 = scmp.ne.s32.totalorder %s206, %s208
      %p215 = scmp.eq.s32.totalorder %s30, 1
      %p216 = por %p214, %p215
      %p217 = scmp.ne.s32.totalorder %s208, %s209
      %p218 = scmp.eq.s32.totalorder %s30, 0
      %p219 = por %p217, %p218
      %p220 = scmp.ne.s32.totalorder %s208, %s209
      %p221 = scmp.eq.s32.totalorder %s31, 1
      %p222 = por %p220, %p221
      %p224 = scmp.ne.s32.totalorder %s209, %s223
      %p225 = scmp.eq.s32.totalorder %s31, 0
      %p226 = por %p224, %p225
      %s227 = ssub.s32 %s25, %s32
      %p228 = scmp.eq.s32.totalorder %s227, 0
      %s230 = sadd.s32 %s229, 1
      %s231 = scalar_select %p228, %s229, %s230
      %p234 = pneg %p228
      %p235 = scmp.eq.s32.totalorder %s25, 1
      %p236 = por %p234, %p235
      %p237 = scmp.ne.s32.totalorder %s229, %s232
      %p238 = scmp.eq.s32.totalorder %s25, 0
      %p239 = por %p237, %p238
      %p240 = scmp.ne.s32.totalorder %s229, %s232
      %p241 = scmp.eq.s32.totalorder %s30, 1
      %p242 = por %p240, %p241
      %p243 = scmp.ne.s32.totalorder %s232, %s233
      %p244 = scmp.eq.s32.totalorder %s30, 0
      %p245 = por %p243, %p244
      %p246 = scmp.ne.s32.totalorder %s232, %s233
      %p247 = scmp.eq.s32.totalorder %s31, 1
      %p248 = por %p246, %p247
      %p250 = scmp.ne.s32.totalorder %s233, %s249
      %p251 = scmp.eq.s32.totalorder %s31, 0
      %p252 = por %p250, %p251
      %p253 = scmp.le.s32.totalorder 1, %s25
      %p254 = scmp.lt.s32.totalorder %s25, 3
      %p255 = pnand %p253, %p254
      %p256 = pneg %p255
      // Predicated region
      $region9: #{tpu_custom_call.1} parent=5 // pred_check
        _
      $region10: #{tpu_custom_call.1} parent=5 // pred_check_branch
        %258 = sbr.rel (%p255) target = $region12
      $region11: #{tpu_custom_call.1} parent=5 // pred_region
        %s259 = ssub.s32 %s25, 1
        // Predicated region
        $region13: #{tpu_custom_call.1} parent=11 // pred_check
          %p260 = pneg %p72
        $region14: #{tpu_custom_call.1} parent=11 // pred_check_branch
          %262 = sbr.rel (%p260) target = $region16
        $region15: #{tpu_custom_call.1} parent=11 // pred_region
          %264 = vsyncadd [#allocation10], 0
          %s265 = sshll.u32 %s1, 4
          %s266 = int_to_ptr.hbm [resolvable:$true] %s265
          %s267 = sshll.u32 [#allocation9], 4
          %s268 = int_to_ptr.vmem [resolvable:$true] %s267
          %273 = dma.hbm_to_vmem [thread:$0]  %s266, 256, %s268, [#allocation10], 128, 128, 8
        $region16: #{tpu_custom_call.1} parent=11 // pred_fallthru
          _
        // Predicated region
        $region17: #{tpu_custom_call.1} parent=11 // pred_check
          %p274 = pneg %p93
        $region18: #{tpu_custom_call.1} parent=11 // pred_check_branch
          %276 = sbr.rel (%p274) target = $region20
        $region19: #{tpu_custom_call.1} parent=11 // pred_region
          %278 = vsyncadd [#allocation10], 0
          %s279 = sshll.u32 %s2, 4
          %s280 = int_to_ptr.hbm [resolvable:$true] %s279
          %s281 = sshll.u32 [#allocation11], 4
          %s282 = int_to_ptr.vmem [resolvable:$true] %s281
          %287 = dma.hbm_to_vmem [thread:$0]  %s280, 2048, %s282, [#allocation10], 128, 128, 8
        $region20: #{tpu_custom_call.1} parent=11 // pred_fallthru
          _
        // Predicated region
        $region21: #{tpu_custom_call.1} parent=11 // pred_check
          %p288 = pneg %p114
        $region22: #{tpu_custom_call.1} parent=11 // pred_check_branch
          %290 = sbr.rel (%p288) target = $region24
        $region23: #{tpu_custom_call.1} parent=11 // pred_region
          %292 = vsyncadd [#allocation13], 0
          %s293 = sshll.u32 %s3, 4
          %s294 = int_to_ptr.hbm [resolvable:$true] %s293
          %s295 = sshll.u32 [#allocation12], 4
          %s296 = int_to_ptr.vmem [resolvable:$true] %s295
          %301 = dma.hbm_to_vmem [thread:$0]  %s294, 2048, %s296, [#allocation13], 128, 128, 8
        $region24: #{tpu_custom_call.1} parent=11 // pred_fallthru
          _
        // Predicated region
        $region25: #{tpu_custom_call.1} parent=11 // pred_check
          %p302 = pneg %p135
        $region26: #{tpu_custom_call.1} parent=11 // pred_check_branch
          %304 = sbr.rel (%p302) target = $region28
        $region27: #{tpu_custom_call.1} parent=11 // pred_region
          %306 = vsyncadd [#allocation13], 0
          %s307 = sshll.u32 %s4, 4
          %s308 = int_to_ptr.hbm [resolvable:$true] %s307
          %s309 = sshll.u32 [#allocation14], 4
          %s310 = int_to_ptr.vmem [resolvable:$true] %s309
          %315 = dma.hbm_to_vmem [thread:$0]  %s308, 2048, %s310, [#allocation13], 128, 128, 8
        $region28: #{tpu_custom_call.1} parent=11 // pred_fallthru
          _
        // Predicated region
        $region29: #{tpu_custom_call.1} parent=11 // pred_check
          %p316 = pneg %p156
        $region30: #{tpu_custom_call.1} parent=11 // pred_check_branch
          %318 = sbr.rel (%p316) target = $region32
        $region31: #{tpu_custom_call.1} parent=11 // pred_region
          %320 = vsyncadd [#allocation16], 0
          %s321 = sshll.u32 %s5, 4
          %s322 = int_to_ptr.hbm [resolvable:$true] %s321
          %s323 = sshll.u32 [#allocation15], 4
          %s324 = int_to_ptr.vmem [resolvable:$true] %s323
          %329 = dma.hbm_to_vmem [thread:$0]  %s322, 2048, %s324, [#allocation16], 128, 128, 8
        $region32: #{tpu_custom_call.1} parent=11 // pred_fallthru
          _
        // Predicated region
        $region33: #{tpu_custom_call.1} parent=11 // pred_check
          %p330 = pneg %p177
        $region34: #{tpu_custom_call.1} parent=11 // pred_check_branch
          %332 = sbr.rel (%p330) target = $region36
        $region35: #{tpu_custom_call.1} parent=11 // pred_region
          %334 = vsyncadd [#allocation16], 0
          %s335 = sshll.u32 %s6, 4
          %s336 = int_to_ptr.hbm [resolvable:$true] %s335
          %s337 = sshll.u32 [#allocation17], 4
          %s338 = int_to_ptr.vmem [resolvable:$true] %s337
          %343 = dma.hbm_to_vmem [thread:$0]  %s336, 8192, %s338, [#allocation16], 512, 512, 32
        $region36: #{tpu_custom_call.1} parent=11 // pred_fallthru
          _
        // Predicated region
        $region37: #{tpu_custom_call.1} parent=11 // pred_check
          %p344 = pneg %p198
        $region38: #{tpu_custom_call.1} parent=11 // pred_check_branch
          %346 = sbr.rel (%p344) target = $region40
        $region39: #{tpu_custom_call.1} parent=11 // pred_region
          %348 = vsyncadd [#allocation19], 0
          %s349 = sshll.u32 %s7, 4
          %s350 = int_to_ptr.hbm [resolvable:$true] %s349
          %s351 = sshll.u32 [#allocation18], 4
          %s352 = int_to_ptr.vmem [resolvable:$true] %s351
          %357 = dma.hbm_to_vmem [thread:$0]  %s350, 8192, %s352, [#allocation19], 128, 128, 8
        $region40: #{tpu_custom_call.1} parent=11 // pred_fallthru
          _
        // Predicated region
        $region41: #{tpu_custom_call.1} parent=11 // pred_check
          %p358 = pneg %p219
        $region42: #{tpu_custom_call.1} parent=11 // pred_check_branch
          %360 = sbr.rel (%p358) target = $region44
        $region43: #{tpu_custom_call.1} parent=11 // pred_region
          %362 = vsyncadd [#allocation19], 0
          %s363 = sshll.u32 %s8, 4
          %s364 = int_to_ptr.hbm [resolvable:$true] %s363
          %s365 = sshll.u32 [#allocation20], 4
          %s366 = int_to_ptr.vmem [resolvable:$true] %s365
          %371 = dma.hbm_to_vmem [thread:$0]  %s364, 2048, %s366, [#allocation19], 128, 128, 8
        $region44: #{tpu_custom_call.1} parent=11 // pred_fallthru
          _
      $region12: #{tpu_custom_call.1} parent=5 // pred_fallthru
        _
      %p372 = scmp.lt.s32.totalorder %s25, 2
      // Predicated region
      $region45: #{tpu_custom_call.1} parent=5 // pred_check
        %p373 = pneg %p372
      $region46: #{tpu_custom_call.1} parent=5 // pred_check_branch
        %375 = sbr.rel (%p373) target = $region48
      $region47: #{tpu_custom_call.1} parent=5 // pred_region
        // Predicated region
        $region49: #{tpu_custom_call.1} parent=47 // pred_check
          %p376 = pneg %p45
        $region50: #{tpu_custom_call.1} parent=47 // pred_check_branch
          %378 = sbr.rel (%p376) target = $region52
        $region51: #{tpu_custom_call.1} parent=47 // pred_region
          %s379 = sand.u32 %s35, 1
          %s380 = scalar_lea.sflag [#allocation7], %s379
          %s381 = sand.u32 %s35, 1
          %s382 = smul.addr %s381, 8
          %s383 = scalar_lea.vmem [#allocation6], %s382
          %385 = vsyncadd %s380, 0
          %s386 = smul.addr %s25, 8
          %s387 = scalar_lea.hbm %s0, %s386
          %s389 = sshll.u32 %s387, 4
          %s390 = int_to_ptr.hbm [resolvable:$true] %s389
          %s391 = sshll.u32 %s383, 4
          %s392 = int_to_ptr.vmem [resolvable:$true] %s391
          %394 = dma.hbm_to_vmem [thread:$0]  %s390, 128, %s392, %s380
        $region52: #{tpu_custom_call.1} parent=47 // pred_fallthru
          _
      $region48: #{tpu_custom_call.1} parent=5 // pred_fallthru
        _
      %p395 = scmp.le.s32.totalorder 1, %s25
      %p396 = scmp.lt.s32.totalorder %s25, 3
      %p397 = pnand %p395, %p396
      %p398 = pneg %p397
      // Predicated region
      $region53: #{tpu_custom_call.1} parent=5 // pred_check
        _
      $region54: #{tpu_custom_call.1} parent=5 // pred_check_branch
        %400 = sbr.rel (%p397) target = $region56
      $region55: #{tpu_custom_call.1} parent=5 // pred_region
        %s401 = ssub.s32 %s25, 1
        %s402 = sand.u32 %s38, 1
        %s403 = scalar_lea.sflag [#allocation7], %s402
        %s404 = sand.u32 %s38, 1
        %s405 = smul.addr %s404, 8
        %s406 = scalar_lea.vmem [#allocation6], %s405
        // Predicated region
        $region57: #{tpu_custom_call.1} parent=55 // pred_check
          %p407 = pneg %p51
        $region58: #{tpu_custom_call.1} parent=55 // pred_check_branch
          %409 = sbr.rel (%p407) target = $region60
        $region59: #{tpu_custom_call.1} parent=55 // pred_region
          %411 = dma.done %s403, 128
        $region60: #{tpu_custom_call.1} parent=55 // pred_fallthru
          _
        // Predicated region
        $region61: #{tpu_custom_call.1} parent=55 // pred_check
          %p412 = pneg %p72
        $region62: #{tpu_custom_call.1} parent=55 // pred_check_branch
          %414 = sbr.rel (%p412) target = $region64
        $region63: #{tpu_custom_call.1} parent=55 // pred_region
          %416 = dma.done [#allocation10], 256
        $region64: #{tpu_custom_call.1} parent=55 // pred_fallthru
          _
        // Predicated region
        $region65: #{tpu_custom_call.1} parent=55 // pred_check
          %p417 = pneg %p93
        $region66: #{tpu_custom_call.1} parent=55 // pred_check_branch
          %419 = sbr.rel (%p417) target = $region68
        $region67: #{tpu_custom_call.1} parent=55 // pred_region
          %421 = dma.done [#allocation10], 2048
        $region68: #{tpu_custom_call.1} parent=55 // pred_fallthru
          _
        // Predicated region
        $region69: #{tpu_custom_call.1} parent=55 // pred_check
          %p422 = pneg %p114
        $region70: #{tpu_custom_call.1} parent=55 // pred_check_branch
          %424 = sbr.rel (%p422) target = $region72
        $region71: #{tpu_custom_call.1} parent=55 // pred_region
          %426 = dma.done [#allocation13], 2048
        $region72: #{tpu_custom_call.1} parent=55 // pred_fallthru
          _
        // Predicated region
        $region73: #{tpu_custom_call.1} parent=55 // pred_check
          %p427 = pneg %p135
        $region74: #{tpu_custom_call.1} parent=55 // pred_check_branch
          %429 = sbr.rel (%p427) target = $region76
        $region75: #{tpu_custom_call.1} parent=55 // pred_region
          %431 = dma.done [#allocation13], 2048
        $region76: #{tpu_custom_call.1} parent=55 // pred_fallthru
          _
        // Predicated region
        $region77: #{tpu_custom_call.1} parent=55 // pred_check
          %p432 = pneg %p156
        $region78: #{tpu_custom_call.1} parent=55 // pred_check_branch
          %434 = sbr.rel (%p432) target = $region80
        $region79: #{tpu_custom_call.1} parent=55 // pred_region
          %436 = dma.done [#allocation16], 2048
        $region80: #{tpu_custom_call.1} parent=55 // pred_fallthru
          _
        // Predicated region
        $region81: #{tpu_custom_call.1} parent=55 // pred_check
          %p437 = pneg %p177
        $region82: #{tpu_custom_call.1} parent=55 // pred_check_branch
          %439 = sbr.rel (%p437) target = $region84
        $region83: #{tpu_custom_call.1} parent=55 // pred_region
          %441 = dma.done [#allocation16], 8192
        $region84: #{tpu_custom_call.1} parent=55 // pred_fallthru
          _
        // Predicated region
        $region85: #{tpu_custom_call.1} parent=55 // pred_check
          %p442 = pneg %p198
        $region86: #{tpu_custom_call.1} parent=55 // pred_check_branch
          %444 = sbr.rel (%p442) target = $region88
        $region87: #{tpu_custom_call.1} parent=55 // pred_region
          %446 = dma.done [#allocation19], 8192
        $region88: #{tpu_custom_call.1} parent=55 // pred_fallthru
          _
        // Predicated region
        $region89: #{tpu_custom_call.1} parent=55 // pred_check
          %p447 = pneg %p219
        $region90: #{tpu_custom_call.1} parent=55 // pred_check_branch
          %449 = sbr.rel (%p447) target = $region92
        $region91: #{tpu_custom_call.1} parent=55 // pred_region
          %451 = dma.done [#allocation19], 2048
        $region92: #{tpu_custom_call.1} parent=55 // pred_fallthru
          _
        %s452 = sand.u32 %s38, 1
        %s453 = scalar_lea.sflag [#allocation7], %s452
        %s454 = sand.u32 %s38, 1
        %s455 = smul.addr %s454, 8
        %s456 = scalar_lea.vmem [#allocation6], %s455
        %p457 = pneg %p51
        %p458 = pneg %p48
        %p459 = pneg %p72
        %p460 = pneg %p69
        %p461 = pneg %p93
        %p462 = pneg %p90
        %p463 = pneg %p114
        %p464 = pneg %p111
        %p465 = pneg %p135
        %p466 = pneg %p132
        %p467 = pneg %p156
        %p468 = pneg %p153
        %p469 = pneg %p177
        %p470 = pneg %p174
        %p471 = pneg %p198
        %p472 = pneg %p195
        %p473 = pneg %p219
        %p474 = pneg %p216
        %p475 = pneg %p245
        %p476 = pneg %p242
        %s477 = sand.u32 %s232, 1
        %s478 = scalar_lea.sflag [#allocation8], %s477
        %s479 = sand.u32 %s232, 1
        %s480 = smul.addr %s479, 8
        %s481 = scalar_lea.vmem [#allocation21], %s480
        %v482 = vlaneseq
        %v483 = vshrl.u32 %v482, 7
        %vm484 = vcmp.eq.s32.totalorder %v483, 0
        %v485 = vld [vmem:[%s406] sm:$0xff]
        %486 = vadd.xlane.f32.xlu0 %v485
        %v487 = vpop.xlane.xlu0 %486
        %v488 = vrcp.pop 128.0
        %v489 = vmul.f32 128.0, %v488
        %v490 = vsub.f32 1.0, %v489
        %v491 = vmul.f32 %v488, %v490
        %v492 = vadd.f32 %v488, %v491
        %vm493 = vweird.f32 %v488
        %v494 = vsel %vm493, %v488, %v492
        %v495 = vmul.f32 %v487, %v494
        %v496 = vsub.f32 %v485, %v495
        %v497 = vmul.f32 %v496, %v496
        %498 = vadd.xlane.f32.xlu0 %v497
        %v499 = vpop.xlane.xlu0 %498
        %v500 = vmul.f32 %v499, %v494
        %v501 = vadd.f32 %v500, 1e-05
        %v502 = vrsqrt.pop %v501
        %v503 = vmul.f32 %v502, %v501
        %v504 = vmul.f32 %v503, %v502
        %v505 = vmul.f32 0.5, %v504
        %v506 = vsub.f32 1.5, %v505
        %v507 = vmul.f32 %v502, %v506
        %vm508 = vweird.f32 %v501
        %vm509 = vweird.f32 %v502
        %vm510 = vmor %vm508, %vm509
        %v511 = vsel %vm510, %v502, %v507
        %v512 = vmul.f32 %v496, %v511
        %v513 = vld [vmem:[#allocation9] sm:$0x1]
        %v514 = vperm.slane %v513, 0
        %v515 = vmul.f32 %v512, %v514
        %v516 = vld [vmem:[#allocation9 + $0x1] sm:$0x1]
        %v517 = vperm.slane %v516, 0
        %v518 = vadd.f32 %v515, %v517
        %519 = vst [vmem:[#allocation2] sm:$0xff] %v518
        %520 = vadd.xlane.f32.xlu0 %v518
        %v521 = vpop.xlane.xlu0 %520
        %v522 = vmul.f32 %v521, %v494
        %v523 = vsub.f32 %v518, %v522
        %v524 = vmul.f32 %v523, %v523
        %525 = vadd.xlane.f32.xlu0 %v524
        %v526 = vpop.xlane.xlu0 %525
        %v527 = vmul.f32 %v526, %v494
        %v528 = vadd.f32 %v527, 1e-05
        %v529 = vrsqrt.pop %v528
        %v530 = vmul.f32 %v529, %v528
        %v531 = vmul.f32 %v530, %v529
        %v532 = vmul.f32 0.5, %v531
        %v533 = vsub.f32 1.5, %v532
        %v534 = vmul.f32 %v529, %v533
        %vm535 = vweird.f32 %v528
        %vm536 = vweird.f32 %v529
        %vm537 = vmor %vm535, %vm536
        %v538 = vsel %vm537, %v529, %v534
        %v539 = vmul.f32 %v523, %v538
        %v540 = vld [vmem:[#allocation9 + $0x2] sm:$0x1]
        %v541 = vperm.slane %v540, 0
        %v542 = vmul.f32 %v539, %v541
        %v543 = vld [vmem:[#allocation9 + $0x3] sm:$0x1]
        %v544 = vperm.slane %v543, 0
        %v545 = vadd.f32 %v542, %v544
        %v546 = vrot.slane %v545, 7
        %v547 = vsel %vm484, 0.0, %v546
        %v548 = vld [vmem:[#allocation9 + $0x6] sm:$0x1]
        %v549 = vperm.slane %v548, 0
        %v550 = vmul.f32 %v549, %v545
        %v551 = vsub.f32 1.0, %v548
        %v552 = vperm.slane %v551, 0
        %v553 = vmul.f32 %v552, %v547
        %v554 = vadd.f32 %v550, %v553
        %v555 = vld [vmem:[#allocation11] sm:$0xff]
        %v556 = vld [vmem:[#allocation11 + $0x8] sm:$0xff]
        %v557 = vld [vmem:[#allocation11 + $0x10] sm:$0xff]
        %v558 = vld [vmem:[#allocation11 + $0x18] sm:$0xff]
        %v559 = vld [vmem:[#allocation11 + $0x20] sm:$0xff]
        %v560 = vld [vmem:[#allocation11 + $0x28] sm:$0xff]
        %v561 = vld [vmem:[#allocation11 + $0x30] sm:$0xff]
        %v562 = vld [vmem:[#allocation11 + $0x38] sm:$0xff]
        %v563 = vld [vmem:[#allocation11 + $0x40] sm:$0xff]
        %v564 = vld [vmem:[#allocation11 + $0x48] sm:$0xff]
        %v565 = vld [vmem:[#allocation11 + $0x50] sm:$0xff]
        %v566 = vld [vmem:[#allocation11 + $0x58] sm:$0xff]
        %v567 = vld [vmem:[#allocation11 + $0x60] sm:$0xff]
        %v568 = vld [vmem:[#allocation11 + $0x68] sm:$0xff]
        %v569 = vld [vmem:[#allocation11 + $0x70] sm:$0xff]
        %v570 = vld [vmem:[#allocation11 + $0x78] sm:$0xff]
        %571 = vmatpush.msra.mxu0 %v570
        %572 = vmatpush.msra.mxu0 %v569
        %573 = vmatpush.msra.mxu0 %v568
        %574 = vmatpush.msra.mxu0 %v567
        %575 = vmatpush.msra.mxu0 %v566
        %576 = vmatpush.msra.mxu0 %v565
        %577 = vmatpush.msra.mxu0 %v564
        %578 = vmatpush.msra.mxu0 %v563
        %579 = vmatpush.msra.mxu0 %v562
        %580 = vmatpush.msra.mxu0 %v561
        %581 = vmatpush.msra.mxu0 %v560
        %582 = vmatpush.msra.mxu0 %v559
        %583 = vmatpush.msra.mxu0 %v558
        %584 = vmatpush.msra.mxu0 %v557
        %585 = vmatpush.msra.mxu0 %v556
        %586 = vmatpush.msra.mxu0 %v555
        %587 = vmatmul.f32.gmra.mxu0 %v554
        %v588 = vpop.f32.mrf.mxu0
        %v589 = vadd.f32 0.0, %v588
        %590 = vdwg.mxu0
        %591 = vst [vmem:[#allocation4] sm:$0xff] %v589
        %v592 = vld [vmem:[#allocation9 + $0x7] sm:$0x1]
        %v593 = vperm.slane %v592, 0
        %v594 = vmul.f32 %v593, %v545
        %v595 = vsub.f32 1.0, %v592
        %v596 = vperm.slane %v595, 0
        %v597 = vmul.f32 %v596, %v547
        %v598 = vadd.f32 %v594, %v597
        %v599 = vld [vmem:[#allocation12] sm:$0xff]
        %v600 = vld [vmem:[#allocation12 + $0x8] sm:$0xff]
        %v601 = vld [vmem:[#allocation12 + $0x10] sm:$0xff]
        %v602 = vld [vmem:[#allocation12 + $0x18] sm:$0xff]
        %v603 = vld [vmem:[#allocation12 + $0x20] sm:$0xff]
        %v604 = vld [vmem:[#allocation12 + $0x28] sm:$0xff]
        %v605 = vld [vmem:[#allocation12 + $0x30] sm:$0xff]
        %v606 = vld [vmem:[#allocation12 + $0x38] sm:$0xff]
        %v607 = vld [vmem:[#allocation12 + $0x40] sm:$0xff]
        %v608 = vld [vmem:[#allocation12 + $0x48] sm:$0xff]
        %v609 = vld [vmem:[#allocation12 + $0x50] sm:$0xff]
        %v610 = vld [vmem:[#allocation12 + $0x58] sm:$0xff]
        %v611 = vld [vmem:[#allocation12 + $0x60] sm:$0xff]
        %v612 = vld [vmem:[#allocation12 + $0x68] sm:$0xff]
        %v613 = vld [vmem:[#allocation12 + $0x70] sm:$0xff]
        %v614 = vld [vmem:[#allocation12 + $0x78] sm:$0xff]
        %615 = vmatpush.msra.mxu0 %v614
        %616 = vmatpush.msra.mxu0 %v613
        %617 = vmatpush.msra.mxu0 %v612
        %618 = vmatpush.msra.mxu0 %v611
        %619 = vmatpush.msra.mxu0 %v610
        %620 = vmatpush.msra.mxu0 %v609
        %621 = vmatpush.msra.mxu0 %v608
        %622 = vmatpush.msra.mxu0 %v607
        %623 = vmatpush.msra.mxu0 %v606
        %624 = vmatpush.msra.mxu0 %v605
        %625 = vmatpush.msra.mxu0 %v604
        %626 = vmatpush.msra.mxu0 %v603
        %627 = vmatpush.msra.mxu0 %v602
        %628 = vmatpush.msra.mxu0 %v601
        %629 = vmatpush.msra.mxu0 %v600
        %630 = vmatpush.msra.mxu0 %v599
        %631 = vmatmul.f32.gmra.mxu0 %v598
        %v632 = vpop.f32.mrf.mxu0
        %v633 = vadd.f32 0.0, %v632
        %634 = vdwg.mxu0
        %635 = vst [vmem:[#allocation5] sm:$0xff] %v633
        %v636 = vld [vmem:[#allocation9 + $0x8] sm:$0x1]
        %v637 = vperm.slane %v636, 0
        %v638 = vmul.f32 %v637, %v545
        %v639 = vsub.f32 1.0, %v636
        %v640 = vperm.slane %v639, 0
        %v641 = vmul.f32 %v640, %v547
        %v642 = vadd.f32 %v638, %v641
        %v643 = vld [vmem:[#allocation14] sm:$0xff]
        %v644 = vld [vmem:[#allocation14 + $0x8] sm:$0xff]
        %v645 = vld [vmem:[#allocation14 + $0x10] sm:$0xff]
        %v646 = vld [vmem:[#allocation14 + $0x18] sm:$0xff]
        %v647 = vld [vmem:[#allocation14 + $0x20] sm:$0xff]
        %v648 = vld [vmem:[#allocation14 + $0x28] sm:$0xff]
        %v649 = vld [vmem:[#allocation14 + $0x30] sm:$0xff]
        %v650 = vld [vmem:[#allocation14 + $0x38] sm:$0xff]
        %v651 = vld [vmem:[#allocation14 + $0x40] sm:$0xff]
        %v652 = vld [vmem:[#allocation14 + $0x48] sm:$0xff]
        %v653 = vld [vmem:[#allocation14 + $0x50] sm:$0xff]
        %v654 = vld [vmem:[#allocation14 + $0x58] sm:$0xff]
        %v655 = vld [vmem:[#allocation14 + $0x60] sm:$0xff]
        %v656 = vld [vmem:[#allocation14 + $0x68] sm:$0xff]
        %v657 = vld [vmem:[#allocation14 + $0x70] sm:$0xff]
        %v658 = vld [vmem:[#allocation14 + $0x78] sm:$0xff]
        %659 = vmatpush.msra.mxu0 %v658
        %660 = vmatpush.msra.mxu0 %v657
        %661 = vmatpush.msra.mxu0 %v656
        %662 = vmatpush.msra.mxu0 %v655
        %663 = vmatpush.msra.mxu0 %v654
        %664 = vmatpush.msra.mxu0 %v653
        %665 = vmatpush.msra.mxu0 %v652
        %666 = vmatpush.msra.mxu0 %v651
        %667 = vmatpush.msra.mxu0 %v650
        %668 = vmatpush.msra.mxu0 %v649
        %669 = vmatpush.msra.mxu0 %v648
        %670 = vmatpush.msra.mxu0 %v647
        %671 = vmatpush.msra.mxu0 %v646
        %672 = vmatpush.msra.mxu0 %v645
        %673 = vmatpush.msra.mxu0 %v644
        %674 = vmatpush.msra.mxu0 %v643
        %675 = vmatmul.f32.gmra.mxu0 %v642
        %v676 = vpop.f32.mrf.mxu0
        %v677 = vadd.f32 0.0, %v676
        %678 = vdwg.mxu0
        %v679 = vxor.u32 %v677, 2147483648
        %v680 = vmul.f32 %v679, 1.442695
        %v681 = vpow.pop %v680
        %v682 = vadd.f32 %v681, 1.0
        %v683 = vrcp.pop %v682
        %v684 = vmul.f32 %v682, %v683
        %v685 = vsub.f32 1.0, %v684
        %v686 = vmul.f32 %v683, %v685
        %v687 = vadd.f32 %v683, %v686
        %vm688 = vweird.f32 %v682
        %vm689 = vweird.f32 %v683
        %vm690 = vmor %vm688, %vm689
        %v691 = vsel %vm690, %v683, %v687
        %v692 = vand.u32 2147483647, %v682
        %vm693 = vcmp.eq.f32.partialorder %v692, 8.507059e+37
        %v694 = vand.u32 %v682, 2147483648
        %v695 = vor.u32 1.1754944e-38, %v694
        %v696 = vsel %vm693, %v695, %v691
        %v697 = vmul.f32 1.0, %v696
        %698 = vst [vmem:[#allocation3] sm:$0xff] %v697
        %v699 = vld [vmem:[#allocation9 + $0xb] sm:$0x1]
        %v700 = vld [vmem:[#allocation9 + $0xc] sm:$0x1]
        %v701 = vld [vmem:[#allocation4] sm:$0xff]
        %v702 = vld [vmem:[#allocation5] sm:$0xff]
        %v703 = vadd.f32 %v700, %v701
        %v704 = vmax.f32 %v703, -1e+38
        %v705 = vsub.f32 -1e+38, %v704
        %v706 = vmul.f32 %v705, 1.442695
        %v707 = vpow.pop %v706
        %v708 = vsub.f32 %v703, %v704
        %v709 = vmul.f32 %v708, 1.442695
        %v710 = vpow.pop %v709
        %v711 = vmul.f32 %v707, 0.0
        %v712 = vmul.f32 %v710, %v702
        %v713 = vadd.f32 %v711, %v712
        %v714 = vadd.f32 %v711, %v710
        %v715 = vrcp.pop %v714
        %v716 = vmul.f32 %v714, %v715
        %v717 = vsub.f32 1.0, %v716
        %v718 = vmul.f32 %v715, %v717
        %v719 = vadd.f32 %v715, %v718
        %vm720 = vweird.f32 %v714
        %vm721 = vweird.f32 %v715
        %vm722 = vmor %vm720, %vm721
        %v723 = vsel %vm722, %v715, %v719
        %v724 = vand.u32 2147483647, %v714
        %vm725 = vcmp.eq.f32.partialorder %v724, 8.507059e+37
        %v726 = vand.u32 %v714, 2147483648
        %v727 = vor.u32 1.1754944e-38, %v726
        %v728 = vsel %vm725, %v727, %v723
        %v729 = vmul.f32 %v713, %v728
        %v730 = vadd.f32 %v699, -1e+38
        %v731 = vmax.f32 %v730, %v701
        %v732 = vsub.f32 %v730, %v731
        %v733 = vmul.f32 %v732, 1.442695
        %v734 = vpow.pop %v733
        %v735 = vsub.f32 %v701, %v731
        %v736 = vmul.f32 %v735, 1.442695
        %v737 = vpow.pop %v736
        %v738 = vmul.f32 %v734, 0.0
        %v739 = vmul.f32 %v737, %v702
        %v740 = vadd.f32 %v738, %v739
        %v741 = vadd.f32 %v738, %v737
        %v743 = vrot.slane %v701, 1
        %v745 = vadd.f32 %v700, %v743
        %v746 = vmax.f32 %v731, %v745
        %v747 = vsub.f32 %v731, %v746
        %v748 = vmul.f32 %v747, 1.442695
        %v749 = vpow.pop %v748
        %v750 = vsub.f32 %v745, %v746
        %v751 = vmul.f32 %v750, 1.442695
        %v752 = vpow.pop %v751
        %v753 = vmul.f32 %v749, %v740
        %v755 = vrot.slane %v702, 1
        %v757 = vmul.f32 %v752, %v755
        %v758 = vadd.f32 %v753, %v757
        %v759 = vmul.f32 %v749, %v741
        %v760 = vadd.f32 %v759, %v752
        %v761 = vrcp.pop %v760
        %v762 = vmul.f32 %v760, %v761
        %v763 = vsub.f32 1.0, %v762
        %v764 = vmul.f32 %v761, %v763
        %v765 = vadd.f32 %v761, %v764
        %vm766 = vweird.f32 %v760
        %vm767 = vweird.f32 %v761
        %vm768 = vmor %vm766, %vm767
        %v769 = vsel %vm768, %v761, %v765
        %v770 = vand.u32 2147483647, %v760
        %vm771 = vcmp.eq.f32.partialorder %v770, 8.507059e+37
        %v772 = vand.u32 %v760, 2147483648
        %v773 = vor.u32 1.1754944e-38, %v772
        %v774 = vsel %vm771, %v773, %v769
        %v775 = vmul.f32 %v758, %v774
        %v776 = vadd.f32 %v699, %v731
        %v777 = vmax.f32 %v776, %v743
        %v778 = vsub.f32 %v776, %v777
        %v779 = vmul.f32 %v778, 1.442695
        %v780 = vpow.pop %v779
        %v782 = vrot.slane %v777, 7
        %v784 = vsub.f32 %v701, %v782
        %v785 = vmul.f32 %v784, 1.442695
        %v786 = vpow.pop %v785
        %v787 = vmul.f32 %v780, %v740
        %v788 = vmul.f32 %v786, %v702
        %v790 = vrot.slane %v788, 1
        %v792 = vadd.f32 %v787, %v790
        %v793 = vmul.f32 %v780, %v741
        %v795 = vrot.slane %v786, 1
        %v797 = vadd.f32 %v793, %v795
        %v798 = vrot.slane %v701, 2
        %v800 = vadd.f32 %v700, %v798
        %v801 = vmax.f32 %v777, %v800
        %v802 = vsub.f32 %v777, %v801
        %v803 = vmul.f32 %v802, 1.442695
        %v804 = vpow.pop %v803
        %v805 = vsub.f32 %v800, %v801
        %v806 = vmul.f32 %v805, 1.442695
        %v807 = vpow.pop %v806
        %v808 = vmul.f32 %v804, %v792
        %v809 = vrot.slane %v702, 2
        %v811 = vmul.f32 %v807, %v809
        %v812 = vadd.f32 %v808, %v811
        %v813 = vmul.f32 %v804, %v797
        %v814 = vadd.f32 %v813, %v807
        %v815 = vrcp.pop %v814
        %v816 = vmul.f32 %v814, %v815
        %v817 = vsub.f32 1.0, %v816
        %v818 = vmul.f32 %v815, %v817
        %v819 = vadd.f32 %v815, %v818
        %vm820 = vweird.f32 %v814
        %vm821 = vweird.f32 %v815
        %vm822 = vmor %vm820, %vm821
        %v823 = vsel %vm822, %v815, %v819
        %v824 = vand.u32 2147483647, %v814
        %vm825 = vcmp.eq.f32.partialorder %v824, 8.507059e+37
        %v826 = vand.u32 %v814, 2147483648
        %v827 = vor.u32 1.1754944e-38, %v826
        %v828 = vsel %vm825, %v827, %v823
        %v829 = vmul.f32 %v812, %v828
        %v830 = vadd.f32 %v699, %v777
        %v831 = vmax.f32 %v830, %v798
        %v832 = vsub.f32 %v830, %v831
        %v833 = vmul.f32 %v832, 1.442695
        %v834 = vpow.pop %v833
        %v836 = vrot.slane %v831, 6
        %v838 = vsub.f32 %v701, %v836
        %v839 = vmul.f32 %v838, 1.442695
        %v840 = vpow.pop %v839
        %v841 = vmul.f32 %v834, %v792
        %v842 = vmul.f32 %v840, %v702
        %v844 = vrot.slane %v842, 2
        %v846 = vadd.f32 %v841, %v844
        %v847 = vmul.f32 %v834, %v797
        %v849 = vrot.slane %v840, 2
        %v851 = vadd.f32 %v847, %v849
        %v852 = vrot.slane %v701, 3
        %v854 = vadd.f32 %v700, %v852
        %v855 = vmax.f32 %v831, %v854
        %v856 = vsub.f32 %v831, %v855
        %v857 = vmul.f32 %v856, 1.442695
        %v858 = vpow.pop %v857
        %v859 = vsub.f32 %v854, %v855
        %v860 = vmul.f32 %v859, 1.442695
        %v861 = vpow.pop %v860
        %v862 = vmul.f32 %v858, %v846
        %v863 = vrot.slane %v702, 3
        %v865 = vmul.f32 %v861, %v863
        %v866 = vadd.f32 %v862, %v865
        %v867 = vmul.f32 %v858, %v851
        %v868 = vadd.f32 %v867, %v861
        %v869 = vrcp.pop %v868
        %v870 = vmul.f32 %v868, %v869
        %v871 = vsub.f32 1.0, %v870
        %v872 = vmul.f32 %v869, %v871
        %v873 = vadd.f32 %v869, %v872
        %vm874 = vweird.f32 %v868
        %vm875 = vweird.f32 %v869
        %vm876 = vmor %vm874, %vm875
        %v877 = vsel %vm876, %v869, %v873
        %v878 = vand.u32 2147483647, %v868
        %vm879 = vcmp.eq.f32.partialorder %v878, 8.507059e+37
        %v880 = vand.u32 %v868, 2147483648
        %v881 = vor.u32 1.1754944e-38, %v880
        %v882 = vsel %vm879, %v881, %v877
        %v883 = vmul.f32 %v866, %v882
        %v884 = vadd.f32 %v699, %v831
        %v885 = vmax.f32 %v884, %v852
        %v886 = vsub.f32 %v884, %v885
        %v887 = vmul.f32 %v886, 1.442695
        %v888 = vpow.pop %v887
        %v890 = vrot.slane %v885, 5
        %v892 = vsub.f32 %v701, %v890
        %v893 = vmul.f32 %v892, 1.442695
        %v894 = vpow.pop %v893
        %v895 = vmul.f32 %v888, %v846
        %v896 = vmul.f32 %v894, %v702
        %v898 = vrot.slane %v896, 3
        %v900 = vadd.f32 %v895, %v898
        %v901 = vmul.f32 %v888, %v851
        %v903 = vrot.slane %v894, 3
        %v905 = vadd.f32 %v901, %v903
        %v906 = vrot.slane %v701, 4
        %v908 = vadd.f32 %v700, %v906
        %v909 = vmax.f32 %v885, %v908
        %v910 = vsub.f32 %v885, %v909
        %v911 = vmul.f32 %v910, 1.442695
        %v912 = vpow.pop %v911
        %v913 = vsub.f32 %v908, %v909
        %v914 = vmul.f32 %v913, 1.442695
        %v915 = vpow.pop %v914
        %v916 = vmul.f32 %v912, %v900
        %v917 = vrot.slane %v702, 4
        %v919 = vmul.f32 %v915, %v917
        %v920 = vadd.f32 %v916, %v919
        %v921 = vmul.f32 %v912, %v905
        %v922 = vadd.f32 %v921, %v915
        %v923 = vrcp.pop %v922
        %v924 = vmul.f32 %v922, %v923
        %v925 = vsub.f32 1.0, %v924
        %v926 = vmul.f32 %v923, %v925
        %v927 = vadd.f32 %v923, %v926
        %vm928 = vweird.f32 %v922
        %vm929 = vweird.f32 %v923
        %vm930 = vmor %vm928, %vm929
        %v931 = vsel %vm930, %v923, %v927
        %v932 = vand.u32 2147483647, %v922
        %vm933 = vcmp.eq.f32.partialorder %v932, 8.507059e+37
        %v934 = vand.u32 %v922, 2147483648
        %v935 = vor.u32 1.1754944e-38, %v934
        %v936 = vsel %vm933, %v935, %v931
        %v937 = vmul.f32 %v920, %v936
        %v938 = vadd.f32 %v699, %v885
        %v939 = vmax.f32 %v938, %v906
        %v940 = vsub.f32 %v938, %v939
        %v941 = vmul.f32 %v940, 1.442695
        %v942 = vpow.pop %v941
        %v944 = vrot.slane %v939, 4
        %v946 = vsub.f32 %v701, %v944
        %v947 = vmul.f32 %v946, 1.442695
        %v948 = vpow.pop %v947
        %v949 = vmul.f32 %v942, %v900
        %v950 = vmul.f32 %v948, %v702
        %v952 = vrot.slane %v950, 4
        %v954 = vadd.f32 %v949, %v952
        %v955 = vmul.f32 %v942, %v905
        %v957 = vrot.slane %v948, 4
        %v959 = vadd.f32 %v955, %v957
        %v960 = vrot.slane %v701, 5
        %v962 = vadd.f32 %v700, %v960
        %v963 = vmax.f32 %v939, %v962
        %v964 = vsub.f32 %v939, %v963
        %v965 = vmul.f32 %v964, 1.442695
        %v966 = vpow.pop %v965
        %v967 = vsub.f32 %v962, %v963
        %v968 = vmul.f32 %v967, 1.442695
        %v969 = vpow.pop %v968
        %v970 = vmul.f32 %v966, %v954
        %v971 = vrot.slane %v702, 5
        %v973 = vmul.f32 %v969, %v971
        %v974 = vadd.f32 %v970, %v973
        %v975 = vmul.f32 %v966, %v959
        %v976 = vadd.f32 %v975, %v969
        %v977 = vrcp.pop %v976
        %v978 = vmul.f32 %v976, %v977
        %v979 = vsub.f32 1.0, %v978
        %v980 = vmul.f32 %v977, %v979
        %v981 = vadd.f32 %v977, %v980
        %vm982 = vweird.f32 %v976
        %vm983 = vweird.f32 %v977
        %vm984 = vmor %vm982, %vm983
        %v985 = vsel %vm984, %v977, %v981
        %v986 = vand.u32 2147483647, %v976
        %vm987 = vcmp.eq.f32.partialorder %v986, 8.507059e+37
        %v988 = vand.u32 %v976, 2147483648
        %v989 = vor.u32 1.1754944e-38, %v988
        %v990 = vsel %vm987, %v989, %v985
        %v991 = vmul.f32 %v974, %v990
        %v992 = vadd.f32 %v699, %v939
        %v993 = vmax.f32 %v992, %v960
        %v994 = vsub.f32 %v992, %v993
        %v995 = vmul.f32 %v994, 1.442695
        %v996 = vpow.pop %v995
        %v998 = vrot.slane %v993, 3
        %v1000 = vsub.f32 %v701, %v998
        %v1001 = vmul.f32 %v1000, 1.442695
        %v1002 = vpow.pop %v1001
        %v1003 = vmul.f32 %v996, %v954
        %v1004 = vmul.f32 %v1002, %v702
        %v1006 = vrot.slane %v1004, 5
        %v1008 = vadd.f32 %v1003, %v1006
        %v1009 = vmul.f32 %v996, %v959
        %v1011 = vrot.slane %v1002, 5
        %v1013 = vadd.f32 %v1009, %v1011
        %v1014 = vrot.slane %v701, 6
        %v1016 = vadd.f32 %v700, %v1014
        %v1017 = vmax.f32 %v993, %v1016
        %v1018 = vsub.f32 %v993, %v1017
        %v1019 = vmul.f32 %v1018, 1.442695
        %v1020 = vpow.pop %v1019
        %v1021 = vsub.f32 %v1016, %v1017
        %v1022 = vmul.f32 %v1021, 1.442695
        %v1023 = vpow.pop %v1022
        %v1024 = vmul.f32 %v1020, %v1008
        %v1025 = vrot.slane %v702, 6
        %v1027 = vmul.f32 %v1023, %v1025
        %v1028 = vadd.f32 %v1024, %v1027
        %v1029 = vmul.f32 %v1020, %v1013
        %v1030 = vadd.f32 %v1029, %v1023
        %v1031 = vrcp.pop %v1030
        %v1032 = vmul.f32 %v1030, %v1031
        %v1033 = vsub.f32 1.0, %v1032
        %v1034 = vmul.f32 %v1031, %v1033
        %v1035 = vadd.f32 %v1031, %v1034
        %vm1036 = vweird.f32 %v1030
        %vm1037 = vweird.f32 %v1031
        %vm1038 = vmor %vm1036, %vm1037
        %v1039 = vsel %vm1038, %v1031, %v1035
        %v1040 = vand.u32 2147483647, %v1030
        %vm1041 = vcmp.eq.f32.partialorder %v1040, 8.507059e+37
        %v1042 = vand.u32 %v1030, 2147483648
        %v1043 = vor.u32 1.1754944e-38, %v1042
        %v1044 = vsel %vm1041, %v1043, %v1039
        %v1045 = vmul.f32 %v1028, %v1044
        %v1046 = vadd.f32 %v699, %v993
        %v1047 = vmax.f32 %v1046, %v1014
        %v1048 = vsub.f32 %v1046, %v1047
        %v1049 = vmul.f32 %v1048, 1.442695
        %v1050 = vpow.pop %v1049
        %v1052 = vrot.slane %v1047, 2
        %v1054 = vsub.f32 %v701, %v1052
        %v1055 = vmul.f32 %v1054, 1.442695
        %v1056 = vpow.pop %v1055
        %v1057 = vmul.f32 %v1050, %v1008
        %v1058 = vmul.f32 %v1056, %v702
        %v1060 = vrot.slane %v1058, 6
        %v1062 = vadd.f32 %v1057, %v1060
        %v1063 = vmul.f32 %v1050, %v1013
        %v1065 = vrot.slane %v1056, 6
        %v1067 = vadd.f32 %v1063, %v1065
        %v1068 = vrot.slane %v701, 7
        %v1070 = vadd.f32 %v700, %v1068
        %v1071 = vmax.f32 %v1047, %v1070
        %v1072 = vsub.f32 %v1047, %v1071
        %v1073 = vmul.f32 %v1072, 1.442695
        %v1074 = vpow.pop %v1073
        %v1075 = vsub.f32 %v1070, %v1071
        %v1076 = vmul.f32 %v1075, 1.442695
        %v1077 = vpow.pop %v1076
        %v1078 = vmul.f32 %v1074, %v1062
        %v1079 = vrot.slane %v702, 7
        %v1081 = vmul.f32 %v1077, %v1079
        %v1082 = vadd.f32 %v1078, %v1081
        %v1083 = vmul.f32 %v1074, %v1067
        %v1084 = vadd.f32 %v1083, %v1077
        %v1085 = vrcp.pop %v1084
        %v1086 = vmul.f32 %v1084, %v1085
        %v1087 = vsub.f32 1.0, %v1086
        %v1088 = vmul.f32 %v1085, %v1087
        %v1089 = vadd.f32 %v1085, %v1088
        %vm1090 = vweird.f32 %v1084
        %vm1091 = vweird.f32 %v1085
        %vm1092 = vmor %vm1090, %vm1091
        %v1093 = vsel %vm1092, %v1085, %v1089
        %v1094 = vand.u32 2147483647, %v1084
        %vm1095 = vcmp.eq.f32.partialorder %v1094, 8.507059e+37
        %v1096 = vand.u32 %v1084, 2147483648
        %v1097 = vor.u32 1.1754944e-38, %v1096
        %v1098 = vsel %vm1095, %v1097, %v1093
        %v1099 = vmul.f32 %v1082, %v1098
        %v1101 = vrot.slane %v775, 7
        %v1104 = vrot.slane %v829, 6
        %v1107 = vrot.slane %v883, 5
        %v1110 = vrot.slane %v937, 4
        %v1113 = vrot.slane %v991, 3
        %v1116 = vrot.slane %v1045, 2
        %v1119 = vrot.slane %v1099, 1
        %vm1121 = vcmask 1040384
        %v1122 = vsel %vm1121, %v729, %v1101
        %vm1123 = vcmask 1041408
        %v1124 = vsel %vm1123, %v1122, %v1104
        %vm1125 = vcmask 1042432
        %v1126 = vsel %vm1125, %v1124, %v1107
        %vm1127 = vcmask 1043456
        %v1128 = vsel %vm1127, %v1126, %v1110
        %vm1129 = vcmask 1044480
        %v1130 = vsel %vm1129, %v1128, %v1113
        %vm1131 = vcmask 1045504
        %v1132 = vsel %vm1131, %v1130, %v1116
        %vm1133 = vcmask 1046528
        %v1134 = vsel %vm1133, %v1132, %v1119
        %1135 = vst [vmem:[#allocation4] sm:$0xff] %v1134
        %v1136 = vld [vmem:[#allocation3] sm:$0xff]
        %v1137 = vld [vmem:[#allocation4] sm:$0xff]
        %v1138 = vmul.f32 %v1136, %v1137
        %v1139 = vld [vmem:[#allocation15] sm:$0xff]
        %v1140 = vld [vmem:[#allocation15 + $0x8] sm:$0xff]
        %v1141 = vld [vmem:[#allocation15 + $0x10] sm:$0xff]
        %v1142 = vld [vmem:[#allocation15 + $0x18] sm:$0xff]
        %v1143 = vld [vmem:[#allocation15 + $0x20] sm:$0xff]
        %v1144 = vld [vmem:[#allocation15 + $0x28] sm:$0xff]
        %v1145 = vld [vmem:[#allocation15 + $0x30] sm:$0xff]
        %v1146 = vld [vmem:[#allocation15 + $0x38] sm:$0xff]
        %v1147 = vld [vmem:[#allocation15 + $0x40] sm:$0xff]
        %v1148 = vld [vmem:[#allocation15 + $0x48] sm:$0xff]
        %v1149 = vld [vmem:[#allocation15 + $0x50] sm:$0xff]
        %v1150 = vld [vmem:[#allocation15 + $0x58] sm:$0xff]
        %v1151 = vld [vmem:[#allocation15 + $0x60] sm:$0xff]
        %v1152 = vld [vmem:[#allocation15 + $0x68] sm:$0xff]
        %v1153 = vld [vmem:[#allocation15 + $0x70] sm:$0xff]
        %v1154 = vld [vmem:[#allocation15 + $0x78] sm:$0xff]
        %1155 = vmatpush.msra.mxu0 %v1154
        %1156 = vmatpush.msra.mxu0 %v1153
        %1157 = vmatpush.msra.mxu0 %v1152
        %1158 = vmatpush.msra.mxu0 %v1151
        %1159 = vmatpush.msra.mxu0 %v1150
        %1160 = vmatpush.msra.mxu0 %v1149
        %1161 = vmatpush.msra.mxu0 %v1148
        %1162 = vmatpush.msra.mxu0 %v1147
        %1163 = vmatpush.msra.mxu0 %v1146
        %1164 = vmatpush.msra.mxu0 %v1145
        %1165 = vmatpush.msra.mxu0 %v1144
        %1166 = vmatpush.msra.mxu0 %v1143
        %1167 = vmatpush.msra.mxu0 %v1142
        %1168 = vmatpush.msra.mxu0 %v1141
        %1169 = vmatpush.msra.mxu0 %v1140
        %1170 = vmatpush.msra.mxu0 %v1139
        %1171 = vmatmul.f32.gmra.mxu0 %v1138
        %v1172 = vpop.f32.mrf.mxu0
        %v1173 = vadd.f32 0.0, %v1172
        %1174 = vdwg.mxu0
        %1175 = vst [vmem:[#allocation3] sm:$0xff] %v1173
        %v1176 = vld [vmem:[#allocation3] sm:$0xff]
        %v1177 = vmul.f32 %v1176, 0.5
        %v1178 = vadd.f32 %v1177, 0.0
        %vm1179 = vcmp.ge.f32.partialorder %v1178, 1.0
        %v1180 = vsel %vm1179, 1, 0
        %v1181 = vcvt.s32.f32 %v1180
        %v1182 = vsub.f32 1.0, %v1181
        %v1183 = vmul.f32 %v1182, %v1178
        %v1185 = vrot.slane %v1183, 7
        %v1187 = vsub.f32 %v1176, %v1185
        %v1188 = vmul.f32 %v1187, 0.5
        %v1190 = vrot.slane %v1188, 1
        %v1192 = vadd.f32 %v1183, %v1190
        %vm1193 = vcmp.ge.f32.partialorder %v1192, 1.0
        %v1194 = vsel %vm1193, 1, 0
        %v1195 = vcvt.s32.f32 %v1194
        %v1196 = vsub.f32 1.0, %v1195
        %v1197 = vmul.f32 %v1196, %v1192
        %v1199 = vrot.slane %v1197, 6
        %v1201 = vsub.f32 %v1176, %v1199
        %v1202 = vmul.f32 %v1201, 0.5
        %v1204 = vrot.slane %v1202, 2
        %v1206 = vadd.f32 %v1197, %v1204
        %vm1207 = vcmp.ge.f32.partialorder %v1206, 1.0
        %v1208 = vsel %vm1207, 1, 0
        %v1209 = vcvt.s32.f32 %v1208
        %v1210 = vsub.f32 1.0, %v1209
        %v1211 = vmul.f32 %v1210, %v1206
        %v1213 = vrot.slane %v1211, 5
        %v1215 = vsub.f32 %v1176, %v1213
        %v1216 = vmul.f32 %v1215, 0.5
        %v1218 = vrot.slane %v1216, 3
        %v1220 = vadd.f32 %v1211, %v1218
        %vm1221 = vcmp.ge.f32.partialorder %v1220, 1.0
        %v1222 = vsel %vm1221, 1, 0
        %v1223 = vcvt.s32.f32 %v1222
        %v1224 = vsub.f32 1.0, %v1223
        %v1225 = vmul.f32 %v1224, %v1220
        %v1227 = vrot.slane %v1225, 4
        %v1229 = vsub.f32 %v1176, %v1227
        %v1230 = vmul.f32 %v1229, 0.5
        %v1232 = vrot.slane %v1230, 4
        %v1234 = vadd.f32 %v1225, %v1232
        %vm1235 = vcmp.ge.f32.partialorder %v1234, 1.0
        %v1236 = vsel %vm1235, 1, 0
        %v1237 = vcvt.s32.f32 %v1236
        %v1238 = vsub.f32 1.0, %v1237
        %v1239 = vmul.f32 %v1238, %v1234
        %v1241 = vrot.slane %v1239, 3
        %v1243 = vsub.f32 %v1176, %v1241
        %v1244 = vmul.f32 %v1243, 0.5
        %v1246 = vrot.slane %v1244, 5
        %v1248 = vadd.f32 %v1239, %v1246
        %vm1249 = vcmp.ge.f32.partialorder %v1248, 1.0
        %v1250 = vsel %vm1249, 1, 0
        %v1251 = vcvt.s32.f32 %v1250
        %v1252 = vsub.f32 1.0, %v1251
        %v1253 = vmul.f32 %v1252, %v1248
        %v1255 = vrot.slane %v1253, 2
        %v1257 = vsub.f32 %v1176, %v1255
        %v1258 = vmul.f32 %v1257, 0.5
        %v1260 = vrot.slane %v1258, 6
        %v1262 = vadd.f32 %v1253, %v1260
        %vm1263 = vcmp.ge.f32.partialorder %v1262, 1.0
        %v1264 = vsel %vm1263, 1, 0
        %v1265 = vcvt.s32.f32 %v1264
        %v1266 = vsub.f32 1.0, %v1265
        %v1267 = vmul.f32 %v1266, %v1262
        %v1269 = vrot.slane %v1267, 1
        %v1271 = vsub.f32 %v1176, %v1269
        %v1272 = vmul.f32 %v1271, 0.5
        %v1274 = vrot.slane %v1272, 7
        %v1276 = vadd.f32 %v1267, %v1274
        %vm1277 = vcmp.ge.f32.partialorder %v1276, 1.0
        %v1278 = vsel %vm1277, 1, 0
        %v1279 = vcvt.s32.f32 %v1278
        %v1281 = vrot.slane %v1195, 7
        %v1284 = vrot.slane %v1209, 6
        %v1287 = vrot.slane %v1223, 5
        %v1290 = vrot.slane %v1237, 4
        %v1293 = vrot.slane %v1251, 3
        %v1296 = vrot.slane %v1265, 2
        %v1299 = vrot.slane %v1279, 1
        %v1301 = vsel %vm1121, %v1181, %v1281
        %v1302 = vsel %vm1123, %v1301, %v1284
        %v1303 = vsel %vm1125, %v1302, %v1287
        %v1304 = vsel %vm1127, %v1303, %v1290
        %v1305 = vsel %vm1129, %v1304, %v1293
        %v1306 = vsel %vm1131, %v1305, %v1296
        %v1307 = vsel %vm1133, %v1306, %v1299
        %1308 = vst [vmem:[#allocation3] sm:$0xff] %v1307
        %v1309 = vld [vmem:[#allocation2] sm:$0xff]
        %v1310 = vld [vmem:[#allocation3] sm:$0xff]
        %v1311 = vadd.f32 %v1309, %v1310
        %1312 = vst [vmem:[#allocation2] sm:$0xff] %v1311
        %v1313 = vld [vmem:[#allocation2] sm:$0xff]
        %1314 = vadd.xlane.f32.xlu0 %v1313
        %v1315 = vpop.xlane.xlu0 %1314
        %v1316 = vmul.f32 %v1315, %v494
        %v1317 = vsub.f32 %v1313, %v1316
        %v1318 = vmul.f32 %v1317, %v1317
        %1319 = vadd.xlane.f32.xlu0 %v1318
        %v1320 = vpop.xlane.xlu0 %1319
        %v1321 = vmul.f32 %v1320, %v494
        %v1322 = vadd.f32 %v1321, 1e-05
        %v1323 = vrsqrt.pop %v1322
        %v1324 = vmul.f32 %v1323, %v1322
        %v1325 = vmul.f32 %v1324, %v1323
        %v1326 = vmul.f32 0.5, %v1325
        %v1327 = vsub.f32 1.5, %v1326
        %v1328 = vmul.f32 %v1323, %v1327
        %vm1329 = vweird.f32 %v1322
        %vm1330 = vweird.f32 %v1323
        %vm1331 = vmor %vm1329, %vm1330
        %v1332 = vsel %vm1331, %v1323, %v1328
        %v1333 = vmul.f32 %v1317, %v1332
        %v1334 = vld [vmem:[#allocation9 + $0x4] sm:$0x1]
        %v1335 = vperm.slane %v1334, 0
        %v1336 = vmul.f32 %v1333, %v1335
        %v1337 = vld [vmem:[#allocation9 + $0x5] sm:$0x1]
        %v1338 = vperm.slane %v1337, 0
        %v1339 = vadd.f32 %v1336, %v1338
        %v1340 = vrot.slane %v1339, 7
        %v1341 = vsel %vm484, 0.0, %v1340
        %v1342 = vld [vmem:[#allocation9 + $0x9] sm:$0x1]
        %v1343 = vperm.slane %v1342, 0
        %v1344 = vmul.f32 %v1343, %v1339
        %v1345 = vsub.f32 1.0, %v1342
        %v1346 = vperm.slane %v1345, 0
        %v1347 = vmul.f32 %v1346, %v1341
        %v1348 = vadd.f32 %v1344, %v1347
        %1349 = vst [vmem:[#allocation4] sm:$0xff] %v1348
        %v1350 = vld [vmem:[#allocation9 + $0xa] sm:$0x1]
        %v1351 = vperm.slane %v1350, 0
        %v1352 = vmul.f32 %v1351, %v1339
        %v1353 = vsub.f32 1.0, %v1350
        %v1354 = vperm.slane %v1353, 0
        %v1355 = vmul.f32 %v1354, %v1341
        %v1356 = vadd.f32 %v1352, %v1355
        %1357 = vst [vmem:[#allocation5] sm:$0xff] %v1356
        %v1358 = vld [vmem:[#allocation4] sm:$0xff]
        %v1359 = vld [vmem:[#allocation5] sm:$0xff]
        %v1360 = vld [vmem:[#allocation17] sm:$0xff]
        %v1361 = vld [vmem:[#allocation17 + $0x8] sm:$0xff]
        %v1362 = vld [vmem:[#allocation17 + $0x10] sm:$0xff]
        %v1363 = vld [vmem:[#allocation17 + $0x18] sm:$0xff]
        %v1364 = vld [vmem:[#allocation17 + $0x20] sm:$0xff]
        %v1365 = vld [vmem:[#allocation17 + $0x28] sm:$0xff]
        %v1366 = vld [vmem:[#allocation17 + $0x30] sm:$0xff]
        %v1367 = vld [vmem:[#allocation17 + $0x38] sm:$0xff]
        %v1368 = vld [vmem:[#allocation17 + $0x40] sm:$0xff]
        %v1369 = vld [vmem:[#allocation17 + $0x48] sm:$0xff]
        %v1370 = vld [vmem:[#allocation17 + $0x50] sm:$0xff]
        %v1371 = vld [vmem:[#allocation17 + $0x58] sm:$0xff]
        %v1372 = vld [vmem:[#allocation17 + $0x60] sm:$0xff]
        %v1373 = vld [vmem:[#allocation17 + $0x68] sm:$0xff]
        %v1374 = vld [vmem:[#allocation17 + $0x70] sm:$0xff]
        %v1375 = vld [vmem:[#allocation17 + $0x78] sm:$0xff]
        %v1376 = vld [vmem:[#allocation17 + $0x80] sm:$0xff]
        %v1377 = vld [vmem:[#allocation17 + $0x88] sm:$0xff]
        %v1378 = vld [vmem:[#allocation17 + $0x90] sm:$0xff]
        %v1379 = vld [vmem:[#allocation17 + $0x98] sm:$0xff]
        %v1380 = vld [vmem:[#allocation17 + $0xa0] sm:$0xff]
        %v1381 = vld [vmem:[#allocation17 + $0xa8] sm:$0xff]
        %v1382 = vld [vmem:[#allocation17 + $0xb0] sm:$0xff]
        %v1383 = vld [vmem:[#allocation17 + $0xb8] sm:$0xff]
        %v1384 = vld [vmem:[#allocation17 + $0xc0] sm:$0xff]
        %v1385 = vld [vmem:[#allocation17 + $0xc8] sm:$0xff]
        %v1386 = vld [vmem:[#allocation17 + $0xd0] sm:$0xff]
        %v1387 = vld [vmem:[#allocation17 + $0xd8] sm:$0xff]
        %v1388 = vld [vmem:[#allocation17 + $0xe0] sm:$0xff]
        %v1389 = vld [vmem:[#allocation17 + $0xe8] sm:$0xff]
        %v1390 = vld [vmem:[#allocation17 + $0xf0] sm:$0xff]
        %v1391 = vld [vmem:[#allocation17 + $0xf8] sm:$0xff]
        %v1392 = vld [vmem:[#allocation17 + $0x100] sm:$0xff]
        %v1393 = vld [vmem:[#allocation17 + $0x108] sm:$0xff]
        %v1394 = vld [vmem:[#allocation17 + $0x110] sm:$0xff]
        %v1395 = vld [vmem:[#allocation17 + $0x118] sm:$0xff]
        %v1396 = vld [vmem:[#allocation17 + $0x120] sm:$0xff]
        %v1397 = vld [vmem:[#allocation17 + $0x128] sm:$0xff]
        %v1398 = vld [vmem:[#allocation17 + $0x130] sm:$0xff]
        %v1399 = vld [vmem:[#allocation17 + $0x138] sm:$0xff]
        %v1400 = vld [vmem:[#allocation17 + $0x140] sm:$0xff]
        %v1401 = vld [vmem:[#allocation17 + $0x148] sm:$0xff]
        %v1402 = vld [vmem:[#allocation17 + $0x150] sm:$0xff]
        %v1403 = vld [vmem:[#allocation17 + $0x158] sm:$0xff]
        %v1404 = vld [vmem:[#allocation17 + $0x160] sm:$0xff]
        %v1405 = vld [vmem:[#allocation17 + $0x168] sm:$0xff]
        %v1406 = vld [vmem:[#allocation17 + $0x170] sm:$0xff]
        %v1407 = vld [vmem:[#allocation17 + $0x178] sm:$0xff]
        %v1408 = vld [vmem:[#allocation17 + $0x180] sm:$0xff]
        %v1409 = vld [vmem:[#allocation17 + $0x188] sm:$0xff]
        %v1410 = vld [vmem:[#allocation17 + $0x190] sm:$0xff]
        %v1411 = vld [vmem:[#allocation17 + $0x198] sm:$0xff]
        %v1412 = vld [vmem:[#allocation17 + $0x1a0] sm:$0xff]
        %v1413 = vld [vmem:[#allocation17 + $0x1a8] sm:$0xff]
        %v1414 = vld [vmem:[#allocation17 + $0x1b0] sm:$0xff]
        %v1415 = vld [vmem:[#allocation17 + $0x1b8] sm:$0xff]
        %v1416 = vld [vmem:[#allocation17 + $0x1c0] sm:$0xff]
        %v1417 = vld [vmem:[#allocation17 + $0x1c8] sm:$0xff]
        %v1418 = vld [vmem:[#allocation17 + $0x1d0] sm:$0xff]
        %v1419 = vld [vmem:[#allocation17 + $0x1d8] sm:$0xff]
        %v1420 = vld [vmem:[#allocation17 + $0x1e0] sm:$0xff]
        %v1421 = vld [vmem:[#allocation17 + $0x1e8] sm:$0xff]
        %v1422 = vld [vmem:[#allocation17 + $0x1f0] sm:$0xff]
        %v1423 = vld [vmem:[#allocation17 + $0x1f8] sm:$0xff]
        %1424 = vmatpush.msra.mxu0 %v1420
        %1425 = vmatpush.msra.mxu0 %v1416
        %1426 = vmatpush.msra.mxu0 %v1412
        %1427 = vmatpush.msra.mxu0 %v1408
        %1428 = vmatpush.msra.mxu0 %v1404
        %1429 = vmatpush.msra.mxu0 %v1400
        %1430 = vmatpush.msra.mxu0 %v1396
        %1431 = vmatpush.msra.mxu0 %v1392
        %1432 = vmatpush.msra.mxu0 %v1388
        %1433 = vmatpush.msra.mxu0 %v1384
        %1434 = vmatpush.msra.mxu0 %v1380
        %1435 = vmatpush.msra.mxu0 %v1376
        %1436 = vmatpush.msra.mxu0 %v1372
        %1437 = vmatpush.msra.mxu0 %v1368
        %1438 = vmatpush.msra.mxu0 %v1364
        %1439 = vmatpush.msra.mxu0 %v1360
        %1440 = vmatmul.f32.gmra.mxu0 %v1358
        %v1441 = vpop.f32.mrf.mxu0
        %v1442 = vadd.f32 0.0, %v1441
        %1443 = vdwg.mxu0
        %1444 = vmatpush.msra.mxu0 %v1421
        %1445 = vmatpush.msra.mxu0 %v1417
        %1446 = vmatpush.msra.mxu0 %v1413
        %1447 = vmatpush.msra.mxu0 %v1409
        %1448 = vmatpush.msra.mxu0 %v1405
        %1449 = vmatpush.msra.mxu0 %v1401
        %1450 = vmatpush.msra.mxu0 %v1397
        %1451 = vmatpush.msra.mxu0 %v1393
        %1452 = vmatpush.msra.mxu0 %v1389
        %1453 = vmatpush.msra.mxu0 %v1385
        %1454 = vmatpush.msra.mxu0 %v1381
        %1455 = vmatpush.msra.mxu0 %v1377
        %1456 = vmatpush.msra.mxu0 %v1373
        %1457 = vmatpush.msra.mxu0 %v1369
        %1458 = vmatpush.msra.mxu0 %v1365
        %1459 = vmatpush.msra.mxu0 %v1361
        %1460 = vmatmul.f32.gmra.mxu0 %v1358
        %v1461 = vpop.f32.mrf.mxu0
        %v1462 = vadd.f32 0.0, %v1461
        %1463 = vdwg.mxu0
        %1464 = vmatpush.msra.mxu0 %v1422
        %1465 = vmatpush.msra.mxu0 %v1418
        %1466 = vmatpush.msra.mxu0 %v1414
        %1467 = vmatpush.msra.mxu0 %v1410
        %1468 = vmatpush.msra.mxu0 %v1406
        %1469 = vmatpush.msra.mxu0 %v1402
        %1470 = vmatpush.msra.mxu0 %v1398
        %1471 = vmatpush.msra.mxu0 %v1394
        %1472 = vmatpush.msra.mxu0 %v1390
        %1473 = vmatpush.msra.mxu0 %v1386
        %1474 = vmatpush.msra.mxu0 %v1382
        %1475 = vmatpush.msra.mxu0 %v1378
        %1476 = vmatpush.msra.mxu0 %v1374
        %1477 = vmatpush.msra.mxu0 %v1370
        %1478 = vmatpush.msra.mxu0 %v1366
        %1479 = vmatpush.msra.mxu0 %v1362
        %1480 = vmatmul.f32.gmra.mxu0 %v1358
        %v1481 = vpop.f32.mrf.mxu0
        %v1482 = vadd.f32 0.0, %v1481
        %1483 = vdwg.mxu0
        %1484 = vmatpush.msra.mxu0 %v1423
        %1485 = vmatpush.msra.mxu0 %v1419
        %1486 = vmatpush.msra.mxu0 %v1415
        %1487 = vmatpush.msra.mxu0 %v1411
        %1488 = vmatpush.msra.mxu0 %v1407
        %1489 = vmatpush.msra.mxu0 %v1403
        %1490 = vmatpush.msra.mxu0 %v1399
        %1491 = vmatpush.msra.mxu0 %v1395
        %1492 = vmatpush.msra.mxu0 %v1391
        %1493 = vmatpush.msra.mxu0 %v1387
        %1494 = vmatpush.msra.mxu0 %v1383
        %1495 = vmatpush.msra.mxu0 %v1379
        %1496 = vmatpush.msra.mxu0 %v1375
        %1497 = vmatpush.msra.mxu0 %v1371
        %1498 = vmatpush.msra.mxu0 %v1367
        %1499 = vmatpush.msra.mxu0 %v1363
        %1500 = vmatmul.f32.gmra.mxu0 %v1358
        %v1501 = vpop.f32.mrf.mxu0
        %v1502 = vadd.f32 0.0, %v1501
        %1503 = vdwg.mxu0
        %v1504 = vmax.f32 %v1442, 0.0
        %v1505 = vmax.f32 %v1462, 0.0
        %v1506 = vmax.f32 %v1482, 0.0
        %v1507 = vmax.f32 %v1502, 0.0
        %v1508 = vmul.f32 %v1504, %v1504
        %v1509 = vmul.f32 %v1505, %v1505
        %v1510 = vmul.f32 %v1506, %v1506
        %v1511 = vmul.f32 %v1507, %v1507
        %v1512 = vld [vmem:[#allocation18] sm:$0xff]
        %v1513 = vld [vmem:[#allocation18 + $0x8] sm:$0xff]
        %v1514 = vld [vmem:[#allocation18 + $0x10] sm:$0xff]
        %v1515 = vld [vmem:[#allocation18 + $0x18] sm:$0xff]
        %v1516 = vld [vmem:[#allocation18 + $0x20] sm:$0xff]
        %v1517 = vld [vmem:[#allocation18 + $0x28] sm:$0xff]
        %v1518 = vld [vmem:[#allocation18 + $0x30] sm:$0xff]
        %v1519 = vld [vmem:[#allocation18 + $0x38] sm:$0xff]
        %v1520 = vld [vmem:[#allocation18 + $0x40] sm:$0xff]
        %v1521 = vld [vmem:[#allocation18 + $0x48] sm:$0xff]
        %v1522 = vld [vmem:[#allocation18 + $0x50] sm:$0xff]
        %v1523 = vld [vmem:[#allocation18 + $0x58] sm:$0xff]
        %v1524 = vld [vmem:[#allocation18 + $0x60] sm:$0xff]
        %v1525 = vld [vmem:[#allocation18 + $0x68] sm:$0xff]
        %v1526 = vld [vmem:[#allocation18 + $0x70] sm:$0xff]
        %v1527 = vld [vmem:[#allocation18 + $0x78] sm:$0xff]
        %v1528 = vld [vmem:[#allocation18 + $0x80] sm:$0xff]
        %v1529 = vld [vmem:[#allocation18 + $0x88] sm:$0xff]
        %v1530 = vld [vmem:[#allocation18 + $0x90] sm:$0xff]
        %v1531 = vld [vmem:[#allocation18 + $0x98] sm:$0xff]
        %v1532 = vld [vmem:[#allocation18 + $0xa0] sm:$0xff]
        %v1533 = vld [vmem:[#allocation18 + $0xa8] sm:$0xff]
        %v1534 = vld [vmem:[#allocation18 + $0xb0] sm:$0xff]
        %v1535 = vld [vmem:[#allocation18 + $0xb8] sm:$0xff]
        %v1536 = vld [vmem:[#allocation18 + $0xc0] sm:$0xff]
        %v1537 = vld [vmem:[#allocation18 + $0xc8] sm:$0xff]
        %v1538 = vld [vmem:[#allocation18 + $0xd0] sm:$0xff]
        %v1539 = vld [vmem:[#allocation18 + $0xd8] sm:$0xff]
        %v1540 = vld [vmem:[#allocation18 + $0xe0] sm:$0xff]
        %v1541 = vld [vmem:[#allocation18 + $0xe8] sm:$0xff]
        %v1542 = vld [vmem:[#allocation18 + $0xf0] sm:$0xff]
        %v1543 = vld [vmem:[#allocation18 + $0xf8] sm:$0xff]
        %v1544 = vld [vmem:[#allocation18 + $0x100] sm:$0xff]
        %v1545 = vld [vmem:[#allocation18 + $0x108] sm:$0xff]
        %v1546 = vld [vmem:[#allocation18 + $0x110] sm:$0xff]
        %v1547 = vld [vmem:[#allocation18 + $0x118] sm:$0xff]
        %v1548 = vld [vmem:[#allocation18 + $0x120] sm:$0xff]
        %v1549 = vld [vmem:[#allocation18 + $0x128] sm:$0xff]
        %v1550 = vld [vmem:[#allocation18 + $0x130] sm:$0xff]
        %v1551 = vld [vmem:[#allocation18 + $0x138] sm:$0xff]
        %v1552 = vld [vmem:[#allocation18 + $0x140] sm:$0xff]
        %v1553 = vld [vmem:[#allocation18 + $0x148] sm:$0xff]
        %v1554 = vld [vmem:[#allocation18 + $0x150] sm:$0xff]
        %v1555 = vld [vmem:[#allocation18 + $0x158] sm:$0xff]
        %v1556 = vld [vmem:[#allocation18 + $0x160] sm:$0xff]
        %v1557 = vld [vmem:[#allocation18 + $0x168] sm:$0xff]
        %v1558 = vld [vmem:[#allocation18 + $0x170] sm:$0xff]
        %v1559 = vld [vmem:[#allocation18 + $0x178] sm:$0xff]
        %v1560 = vld [vmem:[#allocation18 + $0x180] sm:$0xff]
        %v1561 = vld [vmem:[#allocation18 + $0x188] sm:$0xff]
        %v1562 = vld [vmem:[#allocation18 + $0x190] sm:$0xff]
        %v1563 = vld [vmem:[#allocation18 + $0x198] sm:$0xff]
        %v1564 = vld [vmem:[#allocation18 + $0x1a0] sm:$0xff]
        %v1565 = vld [vmem:[#allocation18 + $0x1a8] sm:$0xff]
        %v1566 = vld [vmem:[#allocation18 + $0x1b0] sm:$0xff]
        %v1567 = vld [vmem:[#allocation18 + $0x1b8] sm:$0xff]
        %v1568 = vld [vmem:[#allocation18 + $0x1c0] sm:$0xff]
        %v1569 = vld [vmem:[#allocation18 + $0x1c8] sm:$0xff]
        %v1570 = vld [vmem:[#allocation18 + $0x1d0] sm:$0xff]
        %v1571 = vld [vmem:[#allocation18 + $0x1d8] sm:$0xff]
        %v1572 = vld [vmem:[#allocation18 + $0x1e0] sm:$0xff]
        %v1573 = vld [vmem:[#allocation18 + $0x1e8] sm:$0xff]
        %v1574 = vld [vmem:[#allocation18 + $0x1f0] sm:$0xff]
        %v1575 = vld [vmem:[#allocation18 + $0x1f8] sm:$0xff]
        %1576 = vmatpush.msra.mxu0 %v1527
        %1577 = vmatpush.msra.mxu0 %v1526
        %1578 = vmatpush.msra.mxu0 %v1525
        %1579 = vmatpush.msra.mxu0 %v1524
        %1580 = vmatpush.msra.mxu0 %v1523
        %1581 = vmatpush.msra.mxu0 %v1522
        %1582 = vmatpush.msra.mxu0 %v1521
        %1583 = vmatpush.msra.mxu0 %v1520
        %1584 = vmatpush.msra.mxu0 %v1519
        %1585 = vmatpush.msra.mxu0 %v1518
        %1586 = vmatpush.msra.mxu0 %v1517
        %1587 = vmatpush.msra.mxu0 %v1516
        %1588 = vmatpush.msra.mxu0 %v1515
        %1589 = vmatpush.msra.mxu0 %v1514
        %1590 = vmatpush.msra.mxu0 %v1513
        %1591 = vmatpush.msra.mxu0 %v1512
        %1592 = vmatmul.f32.gmra.mxu0 %v1508
        %v1593 = vpop.f32.mrf.mxu0
        %v1594 = vadd.f32 0.0, %v1593
        %1595 = vdwg.mxu0
        %1596 = vmatpush.msra.mxu0 %v1543
        %1597 = vmatpush.msra.mxu0 %v1542
        %1598 = vmatpush.msra.mxu0 %v1541
        %1599 = vmatpush.msra.mxu0 %v1540
        %1600 = vmatpush.msra.mxu0 %v1539
        %1601 = vmatpush.msra.mxu0 %v1538
        %1602 = vmatpush.msra.mxu0 %v1537
        %1603 = vmatpush.msra.mxu0 %v1536
        %1604 = vmatpush.msra.mxu0 %v1535
        %1605 = vmatpush.msra.mxu0 %v1534
        %1606 = vmatpush.msra.mxu0 %v1533
        %1607 = vmatpush.msra.mxu0 %v1532
        %1608 = vmatpush.msra.mxu0 %v1531
        %1609 = vmatpush.msra.mxu0 %v1530
        %1610 = vmatpush.msra.mxu0 %v1529
        %1611 = vmatpush.msra.mxu0 %v1528
        %1612 = vmatmul.f32.gmra.mxu0 %v1509
        %v1613 = vpop.f32.mrf.mxu0
        %v1614 = vadd.f32 %v1594, %v1613
        %1615 = vdwg.mxu0
        %1616 = vmatpush.msra.mxu0 %v1559
        %1617 = vmatpush.msra.mxu0 %v1558
        %1618 = vmatpush.msra.mxu0 %v1557
        %1619 = vmatpush.msra.mxu0 %v1556
        %1620 = vmatpush.msra.mxu0 %v1555
        %1621 = vmatpush.msra.mxu0 %v1554
        %1622 = vmatpush.msra.mxu0 %v1553
        %1623 = vmatpush.msra.mxu0 %v1552
        %1624 = vmatpush.msra.mxu0 %v1551
        %1625 = vmatpush.msra.mxu0 %v1550
        %1626 = vmatpush.msra.mxu0 %v1549
        %1627 = vmatpush.msra.mxu0 %v1548
        %1628 = vmatpush.msra.mxu0 %v1547
        %1629 = vmatpush.msra.mxu0 %v1546
        %1630 = vmatpush.msra.mxu0 %v1545
        %1631 = vmatpush.msra.mxu0 %v1544
        %1632 = vmatmul.f32.gmra.mxu0 %v1510
        %v1633 = vpop.f32.mrf.mxu0
        %v1634 = vadd.f32 %v1614, %v1633
        %1635 = vdwg.mxu0
        %1636 = vmatpush.msra.mxu0 %v1575
        %1637 = vmatpush.msra.mxu0 %v1574
        %1638 = vmatpush.msra.mxu0 %v1573
        %1639 = vmatpush.msra.mxu0 %v1572
        %1640 = vmatpush.msra.mxu0 %v1571
        %1641 = vmatpush.msra.mxu0 %v1570
        %1642 = vmatpush.msra.mxu0 %v1569
        %1643 = vmatpush.msra.mxu0 %v1568
        %1644 = vmatpush.msra.mxu0 %v1567
        %1645 = vmatpush.msra.mxu0 %v1566
        %1646 = vmatpush.msra.mxu0 %v1565
        %1647 = vmatpush.msra.mxu0 %v1564
        %1648 = vmatpush.msra.mxu0 %v1563
        %1649 = vmatpush.msra.mxu0 %v1562
        %1650 = vmatpush.msra.mxu0 %v1561
        %1651 = vmatpush.msra.mxu0 %v1560
        %1652 = vmatmul.f32.gmra.mxu0 %v1511
        %v1653 = vpop.f32.mrf.mxu0
        %v1654 = vadd.f32 %v1634, %v1653
        %1655 = vdwg.mxu0
        %v1656 = vld [vmem:[#allocation20] sm:$0xff]
        %v1657 = vld [vmem:[#allocation20 + $0x8] sm:$0xff]
        %v1658 = vld [vmem:[#allocation20 + $0x10] sm:$0xff]
        %v1659 = vld [vmem:[#allocation20 + $0x18] sm:$0xff]
        %v1660 = vld [vmem:[#allocation20 + $0x20] sm:$0xff]
        %v1661 = vld [vmem:[#allocation20 + $0x28] sm:$0xff]
        %v1662 = vld [vmem:[#allocation20 + $0x30] sm:$0xff]
        %v1663 = vld [vmem:[#allocation20 + $0x38] sm:$0xff]
        %v1664 = vld [vmem:[#allocation20 + $0x40] sm:$0xff]
        %v1665 = vld [vmem:[#allocation20 + $0x48] sm:$0xff]
        %v1666 = vld [vmem:[#allocation20 + $0x50] sm:$0xff]
        %v1667 = vld [vmem:[#allocation20 + $0x58] sm:$0xff]
        %v1668 = vld [vmem:[#allocation20 + $0x60] sm:$0xff]
        %v1669 = vld [vmem:[#allocation20 + $0x68] sm:$0xff]
        %v1670 = vld [vmem:[#allocation20 + $0x70] sm:$0xff]
        %v1671 = vld [vmem:[#allocation20 + $0x78] sm:$0xff]
        %1672 = vmatpush.msra.mxu0 %v1671
        %1673 = vmatpush.msra.mxu0 %v1670
        %1674 = vmatpush.msra.mxu0 %v1669
        %1675 = vmatpush.msra.mxu0 %v1668
        %1676 = vmatpush.msra.mxu0 %v1667
        %1677 = vmatpush.msra.mxu0 %v1666
        %1678 = vmatpush.msra.mxu0 %v1665
        %1679 = vmatpush.msra.mxu0 %v1664
        %1680 = vmatpush.msra.mxu0 %v1663
        %1681 = vmatpush.msra.mxu0 %v1662
        %1682 = vmatpush.msra.mxu0 %v1661
        %1683 = vmatpush.msra.mxu0 %v1660
        %1684 = vmatpush.msra.mxu0 %v1659
        %1685 = vmatpush.msra.mxu0 %v1658
        %1686 = vmatpush.msra.mxu0 %v1657
        %1687 = vmatpush.msra.mxu0 %v1656
        %1688 = vmatmul.f32.gmra.mxu0 %v1359
        %v1689 = vpop.f32.mrf.mxu0
        %v1690 = vadd.f32 0.0, %v1689
        %1691 = vdwg.mxu0
        %v1692 = vxor.u32 %v1690, 2147483648
        %v1693 = vmul.f32 %v1692, 1.442695
        %v1694 = vpow.pop %v1693
        %v1695 = vadd.f32 %v1694, 1.0
        %v1696 = vrcp.pop %v1695
        %v1697 = vmul.f32 %v1695, %v1696
        %v1698 = vsub.f32 1.0, %v1697
        %v1699 = vmul.f32 %v1696, %v1698
        %v1700 = vadd.f32 %v1696, %v1699
        %vm1701 = vweird.f32 %v1695
        %vm1702 = vweird.f32 %v1696
        %vm1703 = vmor %vm1701, %vm1702
        %v1704 = vsel %vm1703, %v1696, %v1700
        %v1705 = vand.u32 2147483647, %v1695
        %vm1706 = vcmp.eq.f32.partialorder %v1705, 8.507059e+37
        %v1707 = vand.u32 %v1695, 2147483648
        %v1708 = vor.u32 1.1754944e-38, %v1707
        %v1709 = vsel %vm1706, %v1708, %v1704
        %v1710 = vmul.f32 1.0, %v1709
        %v1711 = vmul.f32 %v1710, %v1654
        %1712 = vst [vmem:[#allocation3] sm:$0xff] %v1711
        %v1713 = vld [vmem:[#allocation3] sm:$0xff]
        %v1714 = vmul.f32 %v1713, 0.5
        %v1715 = vadd.f32 %v1714, 0.0
        %vm1716 = vcmp.ge.f32.partialorder %v1715, 1.0
        %v1717 = vsel %vm1716, 1, 0
        %v1718 = vcvt.s32.f32 %v1717
        %v1719 = vsub.f32 1.0, %v1718
        %v1720 = vmul.f32 %v1719, %v1715
        %v1722 = vrot.slane %v1720, 7
        %v1724 = vsub.f32 %v1713, %v1722
        %v1725 = vmul.f32 %v1724, 0.5
        %v1727 = vrot.slane %v1725, 1
        %v1729 = vadd.f32 %v1720, %v1727
        %vm1730 = vcmp.ge.f32.partialorder %v1729, 1.0
        %v1731 = vsel %vm1730, 1, 0
        %v1732 = vcvt.s32.f32 %v1731
        %v1733 = vsub.f32 1.0, %v1732
        %v1734 = vmul.f32 %v1733, %v1729
        %v1736 = vrot.slane %v1734, 6
        %v1738 = vsub.f32 %v1713, %v1736
        %v1739 = vmul.f32 %v1738, 0.5
        %v1741 = vrot.slane %v1739, 2
        %v1743 = vadd.f32 %v1734, %v1741
        %vm1744 = vcmp.ge.f32.partialorder %v1743, 1.0
        %v1745 = vsel %vm1744, 1, 0
        %v1746 = vcvt.s32.f32 %v1745
        %v1747 = vsub.f32 1.0, %v1746
        %v1748 = vmul.f32 %v1747, %v1743
        %v1750 = vrot.slane %v1748, 5
        %v1752 = vsub.f32 %v1713, %v1750
        %v1753 = vmul.f32 %v1752, 0.5
        %v1755 = vrot.slane %v1753, 3
        %v1757 = vadd.f32 %v1748, %v1755
        %vm1758 = vcmp.ge.f32.partialorder %v1757, 1.0
        %v1759 = vsel %vm1758, 1, 0
        %v1760 = vcvt.s32.f32 %v1759
        %v1761 = vsub.f32 1.0, %v1760
        %v1762 = vmul.f32 %v1761, %v1757
        %v1764 = vrot.slane %v1762, 4
        %v1766 = vsub.f32 %v1713, %v1764
        %v1767 = vmul.f32 %v1766, 0.5
        %v1769 = vrot.slane %v1767, 4
        %v1771 = vadd.f32 %v1762, %v1769
        %vm1772 = vcmp.ge.f32.partialorder %v1771, 1.0
        %v1773 = vsel %vm1772, 1, 0
        %v1774 = vcvt.s32.f32 %v1773
        %v1775 = vsub.f32 1.0, %v1774
        %v1776 = vmul.f32 %v1775, %v1771
        %v1778 = vrot.slane %v1776, 3
        %v1780 = vsub.f32 %v1713, %v1778
        %v1781 = vmul.f32 %v1780, 0.5
        %v1783 = vrot.slane %v1781, 5
        %v1785 = vadd.f32 %v1776, %v1783
        %vm1786 = vcmp.ge.f32.partialorder %v1785, 1.0
        %v1787 = vsel %vm1786, 1, 0
        %v1788 = vcvt.s32.f32 %v1787
        %v1789 = vsub.f32 1.0, %v1788
        %v1790 = vmul.f32 %v1789, %v1785
        %v1792 = vrot.slane %v1790, 2
        %v1794 = vsub.f32 %v1713, %v1792
        %v1795 = vmul.f32 %v1794, 0.5
        %v1797 = vrot.slane %v1795, 6
        %v1799 = vadd.f32 %v1790, %v1797
        %vm1800 = vcmp.ge.f32.partialorder %v1799, 1.0
        %v1801 = vsel %vm1800, 1, 0
        %v1802 = vcvt.s32.f32 %v1801
        %v1803 = vsub.f32 1.0, %v1802
        %v1804 = vmul.f32 %v1803, %v1799
        %v1806 = vrot.slane %v1804, 1
        %v1808 = vsub.f32 %v1713, %v1806
        %v1809 = vmul.f32 %v1808, 0.5
        %v1811 = vrot.slane %v1809, 7
        %v1813 = vadd.f32 %v1804, %v1811
        %vm1814 = vcmp.ge.f32.partialorder %v1813, 1.0
        %v1815 = vsel %vm1814, 1, 0
        %v1816 = vcvt.s32.f32 %v1815
        %v1818 = vrot.slane %v1732, 7
        %v1821 = vrot.slane %v1746, 6
        %v1824 = vrot.slane %v1760, 5
        %v1827 = vrot.slane %v1774, 4
        %v1830 = vrot.slane %v1788, 3
        %v1833 = vrot.slane %v1802, 2
        %v1836 = vrot.slane %v1816, 1
        %v1838 = vsel %vm1121, %v1718, %v1818
        %v1839 = vsel %vm1123, %v1838, %v1821
        %v1840 = vsel %vm1125, %v1839, %v1824
        %v1841 = vsel %vm1127, %v1840, %v1827
        %v1842 = vsel %vm1129, %v1841, %v1830
        %v1843 = vsel %vm1131, %v1842, %v1833
        %v1844 = vsel %vm1133, %v1843, %v1836
        %1845 = vst [vmem:[#allocation3] sm:$0xff] %v1844
        %v1846 = vld [vmem:[#allocation2] sm:$0xff]
        %v1847 = vld [vmem:[#allocation3] sm:$0xff]
        %v1848 = vadd.f32 %v1846, %v1847
        %1849 = vst [vmem:[%s481] sm:$0xff] %v1848
        %s1850 = sand.u32 %s232, 1
        %s1851 = scalar_lea.sflag [#allocation8], %s1850
        %s1852 = sand.u32 %s232, 1
        %s1853 = smul.addr %s1852, 8
        %s1854 = scalar_lea.vmem [#allocation21], %s1853
        // Predicated region
        $region93: #{tpu_custom_call.1} parent=55 // pred_check
          %p1855 = pneg %p242
        $region94: #{tpu_custom_call.1} parent=55 // pred_check_branch
          %1857 = sbr.rel (%p1855) target = $region96
        $region95: #{tpu_custom_call.1} parent=55 // pred_region
          %1859 = vsyncadd %s1851, 0
          %s1860 = smul.addr %s30, 8
          %s1861 = scalar_lea.hbm %s9, %s1860
          %s1863 = sshll.u32 %s1854, 4
          %s1864 = int_to_ptr.vmem [resolvable:$true] %s1863
          %s1865 = sshll.u32 %s1861, 4
          %s1866 = int_to_ptr.hbm [resolvable:$true] %s1865
          %1868 = dma.vmem_to_hbm [thread:$0]  %s1864, 128, %s1866, %s1851
        $region96: #{tpu_custom_call.1} parent=55 // pred_fallthru
          _
      $region56: #{tpu_custom_call.1} parent=5 // pred_fallthru
        _
      %p1869 = scmp.le.s32.totalorder 2, %s25
      // Predicated region
      $region97: #{tpu_custom_call.1} parent=5 // pred_check
        %p1870 = pneg %p1869
      $region98: #{tpu_custom_call.1} parent=5 // pred_check_branch
        %1872 = sbr.rel (%p1870) target = $region100
      $region99: #{tpu_custom_call.1} parent=5 // pred_region
        %s1873 = ssub.s32 %s25, 2
        // Predicated region
        $region101: #{tpu_custom_call.1} parent=99 // pred_check
          %p1874 = pneg %p248
        $region102: #{tpu_custom_call.1} parent=99 // pred_check_branch
          %1876 = sbr.rel (%p1874) target = $region104
        $region103: #{tpu_custom_call.1} parent=99 // pred_region
          %s1877 = sand.u32 %s233, 1
          %s1878 = scalar_lea.sflag [#allocation8], %s1877
          %s1879 = sand.u32 %s233, 1
          %s1880 = smul.addr %s1879, 8
          %s1881 = scalar_lea.vmem [#allocation21], %s1880
          %1883 = dma.done %s1878, 128
        $region104: #{tpu_custom_call.1} parent=99 // pred_fallthru
          _
      $region100: #{tpu_custom_call.1} parent=5 // pred_fallthru
        _
    $region6: #{tpu_custom_call.1} parent=1 // loop_footer
      %s29 = sadd.s32 1, %s25
    $region7: #{tpu_custom_call.1} parent=1 // loop_footer_branch
      %24 = sbr.rel target = $region3
    $region8: #{tpu_custom_call.1} parent=1 // loop_exit
      _
    %1884 = vsyncpa [#allocation7], 1
    %s1885 = scalar_lea.sflag [#allocation7], 1
    %1886 = vsyncpa %s1885, 1
    %1887 = vsyncpa [#allocation10], 1
    %1888 = vsyncpa [#allocation13], 1
    %1889 = vsyncpa [#allocation16], 1
    %1890 = vsyncpa [#allocation19], 1
    %1891 = vsyncpa [#allocation8], 1
    %s1892 = scalar_lea.sflag [#allocation8], 1
    %1893 = vsyncpa %s1892, 1

</llo_original>
